<compile_context>
chip_gen: v7x
topology: tpu7x:2x2x1
jax: 0.10.0
libtpu: 0.0.40
codegen_flags: <defaults>
</compile_context>

<pallas_src>
import jax
import jax.numpy as jnp
from jax import lax
from jax.experimental import pallas as pl
from jax.experimental.pallas import tpu as pltpu


def _round_up(x, m):
    return (x + m - 1) // m * m


# ---------------------------------------------------------------------------
# Fused Pallas kernel (all LSTM layers + final fc) — single invocation, no grid
# ---------------------------------------------------------------------------
def _make_fused_lstm_kernel(num_layers, S, Bp, Hp, nbuf):
    """Builds the fused kernel for a static (num_layers, S, Bp, Hp) configuration."""

    def kernel(*refs):
        idx = 0
        x_ref = refs[idx]; idx += 1                      # (S*Bp, D)
        layer_w = []
        for _ in range(num_layers):
            layer_w.append((refs[idx], refs[idx + 1], refs[idx + 2]))
            idx += 3
        fcw_ref = refs[idx]; idx += 1                    # (Hp, Op)
        fcb_ref = refs[idx]; idx += 1                    # (1, Op)
        out_ref = refs[idx]; idx += 1                    # (num_layers*Bp, Op)
        gx_ref = refs[idx]; idx += 1                     # (S*Bp, 4*Hp) pre-gates
        h_ref = refs[idx]; idx += 1                      # (Bp, Hp)
        c_ref = refs[idx]; idx += 1                      # (Bp, Hp)
        hstack_ref = refs[idx]; idx += 1                 # (num_layers*Bp, Hp)
        seq_refs = list(refs[idx:idx + nbuf])            # inter-layer activations (VMEM)

        for l in range(num_layers):
            wih_ref, whh_ref, b_ref = layer_w[l]

            # ---- hoisted input projection: ONE matmul over the whole sequence ----
            x_in = x_ref[...] if l == 0 else seq_refs[(l - 1) % nbuf][...]
            gx_ref[...] = (
                jnp.dot(x_in, wih_ref[...], preferred_element_type=jnp.float32)
                + b_ref[...])

            # ---- recurrence over time, h/c resident in VMEM scratch ----
            h_ref[...] = jnp.zeros_like(h_ref)
            c_ref[...] = jnp.zeros_like(c_ref)
            is_last = (l == num_layers - 1)
            out_buf = None if is_last else seq_refs[l % nbuf]
            whh = whh_ref[...]                           # weights stay VMEM-resident

            def step(t, carry, out_buf=out_buf, whh=whh):
                row = t * Bp                             # Bp-aligned (sublane tile) offset
                gates = (gx_ref[pl.ds(row, Bp), :]
                         + jnp.dot(h_ref[...], whh,
                                   preferred_element_type=jnp.float32))
                # PyTorch gate order i, f, g, o; each gate block is 128-lane aligned.
                i_g = jax.nn.sigmoid(gates[:, 0 * Hp:1 * Hp])
                f_g = jax.nn.sigmoid(gates[:, 1 * Hp:2 * Hp])
                g_g = jnp.tanh(gates[:, 2 * Hp:3 * Hp])
                o_g = jax.nn.sigmoid(gates[:, 3 * Hp:4 * Hp])
                c_new = f_g * c_ref[...] + i_g * g_g
                h_new = o_g * jnp.tanh(c_new)
                c_ref[...] = c_new
                h_ref[...] = h_new
                if out_buf is not None:                  # next layer's input (VMEM only)
                    out_buf[pl.ds(row, Bp), :] = h_new
                return carry

            lax.fori_loop(0, S, step, 0, unroll=True)

            # final hidden state of this layer (layer-major stacking, like h_out.view(-1, H))
            hstack_ref[l * Bp:(l + 1) * Bp, :] = h_ref[...]

        # ---- fused fc on the stacked final hidden states (lane-dense output) ----
        out_ref[...] = (
            jnp.dot(hstack_ref[...], fcw_ref[...], preferred_element_type=jnp.float32)
            + fcb_ref[...])

    return kernel


# ---------------------------------------------------------------------------
# Wrapper: padding to TPU-friendly shapes + single pallas_call
# ---------------------------------------------------------------------------
def _pad_gate_cols(w, H, Hp):
    """(R, 4H) -> (R, 4Hp): gate g occupies lane-aligned columns [g*Hp, g*Hp + H)."""
    parts = [jnp.pad(w[:, g * H:(g + 1) * H], ((0, 0), (0, Hp - H))) for g in range(4)]
    return jnp.concatenate(parts, axis=1)


def lstm_model(x, params):
    """Mirrors the PyTorch module: multi-layer LSTM (batch_first, zero init state),
    then fc applied to the stacked final hidden states of all layers."""
    B, S, D = x.shape
    H = params["hidden_size"]
    O = params["fc_w_t"].shape[1]
    L = len(params["layers"])

    Bp = _round_up(B, 8)        # sublane alignment
    Hp = _round_up(H, 128)      # lane alignment for states / gate blocks
    Op = _round_up(O, 128)      # lane-dense final store
    nbuf = min(2, L - 1) if L > 1 else 0

    # time-major, pad batch, flatten to (S*Bp, D)
    x_t = jnp.transpose(x, (1, 0, 2))                        # (S, B, D)
    x_p = jnp.pad(x_t, ((0, 0), (0, Bp - B), (0, 0)))        # (S, Bp, D)
    x2d = x_p.reshape(S * Bp, D).astype(jnp.float32)

    operands = [x2d]
    for l, layer in enumerate(params["layers"]):
        wih = _pad_gate_cols(layer["wih_t"], H, Hp)          # (d_in, 4Hp)
        if l > 0:
            wih = jnp.pad(wih, ((0, Hp - H), (0, 0)))        # pad input rows H -> Hp
        whh = jnp.pad(_pad_gate_cols(layer["whh_t"], H, Hp), ((0, Hp - H), (0, 0)))
        b = _pad_gate_cols(layer["b"], H, Hp)                # (1, 4Hp)
        operands += [wih, whh, b]
    fcw = jnp.pad(params["fc_w_t"], ((0, Hp - H), (0, Op - O)))
    fcb = jnp.pad(params["fc_b"], ((0, 0), (0, Op - O)))
    operands += [fcw, fcb]

    vmem = pl.BlockSpec(memory_space=pltpu.MemorySpace.VMEM)
    out_p = pl.pallas_call(
        _make_fused_lstm_kernel(L, S, Bp, Hp, nbuf),
        out_shape=jax.ShapeDtypeStruct((L * Bp, Op), jnp.float32),
        in_specs=[vmem] * len(operands),
        out_specs=vmem,
        scratch_shapes=[
            pltpu.VMEM((S * Bp, 4 * Hp), jnp.float32),       # hoisted pre-gates
            pltpu.VMEM((Bp, Hp), jnp.float32),               # h state
            pltpu.VMEM((Bp, Hp), jnp.float32),               # c state
            pltpu.VMEM((L * Bp, Hp), jnp.float32),           # stacked final h
        ] + [pltpu.VMEM((S * Bp, Hp), jnp.float32) for _ in range(nbuf)],
    )(*operands)

    # strip padding: (L*Bp, Op) -> (L, Bp, Op) -> (L*B, O), layer-major like h_out.view(-1, H)
    return out_p.reshape(L, Bp, Op)[:, :B, :O].reshape(L * B, O)


# ---------------------------------------------------------------------------
# Parameter init (deterministic, PyTorch-style U(-1/sqrt(H), 1/sqrt(H)))
# ---------------------------------------------------------------------------
def init_params(key, input_size, hidden_size, output_size, num_layers):
    bound = 1.0 / (hidden_size ** 0.5)
    layers = []
    for l in range(num_layers):
        d_in = input_size if l == 0 else hidden_size
        key, k1, k2, k3, k4 = jax.random.split(key, 5)
        w_ih = jax.random.uniform(k1, (4 * hidden_size, d_in), jnp.float32, -bound, bound)
        w_hh = jax.random.uniform(k2, (4 * hidden_size, hidden_size), jnp.float32, -bound, bound)
        b_ih = jax.random.uniform(k3, (4 * hidden_size,), jnp.float32, -bound, bound)
        b_hh = jax.random.uniform(k4, (4 * hidden_size,), jnp.float32, -bound, bound)
        layers.append({
            "wih_t": jnp.transpose(w_ih),                    # (d_in, 4H)
            "whh_t": jnp.transpose(w_hh),                    # (H, 4H)
            "b": (b_ih + b_hh).reshape(1, 4 * hidden_size),
        })
    key, k5, k6 = jax.random.split(key, 3)
    fc_w = jax.random.uniform(k5, (output_size, hidden_size), jnp.float32, -bound, bound)
    fc_b = jax.random.uniform(k6, (output_size,), jnp.float32, -bound, bound)
    return {
        "hidden_size": hidden_size,
        "layers": layers,
        "fc_w_t": jnp.transpose(fc_w),                       # (H, O)
        "fc_b": fc_b.reshape(1, output_size),
    }


# ---------------------------------------------------------------------------
# Pure-JAX reference (for correctness check)
# ---------------------------------------------------------------------------
def lstm_ref(x, params):
    B = x.shape[0]
    H = params["hidden_size"]
    inp = x
    h_finals = []
    for layer in params["layers"]:
        wih_t, whh_t, b = layer["wih_t"], layer["whh_t"], layer["b"]

        def step(carry, x_t):
            h, c = carry
            gates = x_t @ wih_t + h @ whh_t + b
            i = jax.nn.sigmoid(gates[:, :H])
            f = jax.nn.sigmoid(gates[:, H:2 * H])
            g = jnp.tanh(gates[:, 2 * H:3 * H])
            o = jax.nn.sigmoid(gates[:, 3 * H:])
            c = f * c + i * g
            h = o * jnp.tanh(c)
            return (h, c), h

        (h, _), ys = jax.lax.scan(
            step,
            (jnp.zeros((B, H), jnp.float32), jnp.zeros((B, H), jnp.float32)),
            jnp.transpose(inp, (1, 0, 2)))
        h_finals.append(h)
        inp = jnp.transpose(ys, (1, 0, 2))
    h_stack = jnp.concatenate(h_finals, axis=0)
    return h_stack @ params["fc_w_t"] + params["fc_b"]


# ---------------------------------------------------------------------------
if __name__ == "__main__":
    batch, seq, input_size = 2, 8, 16
    hidden_size, output_size, num_layers = 32, 4, 2

    key = jax.random.PRNGKey(0)
    key, kx, kp = jax.random.split(key, 3)
    x = jax.random.normal(kx, (batch, seq, input_size), jnp.float32)
    params = init_params(kp, input_size, hidden_size, output_size, num_layers)

    out = lstm_model(x, params)
    out = jax.block_until_ready(out)

    ref = jax.block_until_ready(lstm_ref(x, params))
    assert out.shape == (num_layers * batch, output_size), out.shape
    assert jnp.allclose(out, ref, atol=2e-4, rtol=2e-4), (
        f"max err {jnp.max(jnp.abs(out - ref))}")

    print("KERNEL_OK")
</pallas_src>

<mosaic_0001>
module attributes {stable_mosaic.version = 11 : i64} {
  func.func @kernel(%arg0: memref<64x16xf32, #tpu.memory_space<vmem>>, %arg1: memref<16x512xf32, #tpu.memory_space<vmem>>, %arg2: memref<128x512xf32, #tpu.memory_space<vmem>>, %arg3: memref<1x512xf32, #tpu.memory_space<vmem>>, %arg4: memref<128x512xf32, #tpu.memory_space<vmem>>, %arg5: memref<128x512xf32, #tpu.memory_space<vmem>>, %arg6: memref<1x512xf32, #tpu.memory_space<vmem>>, %arg7: memref<128x128xf32, #tpu.memory_space<vmem>>, %arg8: memref<1x128xf32, #tpu.memory_space<vmem>>, %arg9: memref<16x128xf32, #tpu.memory_space<vmem>>, %arg10: memref<64x512xf32, #tpu.memory_space<vmem>>, %arg11: memref<8x128xf32, #tpu.memory_space<vmem>>, %arg12: memref<8x128xf32, #tpu.memory_space<vmem>>, %arg13: memref<16x128xf32, #tpu.memory_space<vmem>>, %arg14: memref<64x128xf32, #tpu.memory_space<vmem>>) attributes {dimension_semantics = [], scalar_prefetch = 0 : i64, scratch_operands = 5 : i64, tpu.core_type = #tpu.core_type<tc>} {
    %c0 = arith.constant 0 : index
    %c0_0 = arith.constant 0 : index
    %0 = vector.load %arg0[%c0, %c0_0] : memref<64x16xf32, #tpu.memory_space<vmem>>, vector<64x16xf32>
    %c0_1 = arith.constant 0 : index
    %c0_2 = arith.constant 0 : index
    %1 = vector.load %arg1[%c0_1, %c0_2] : memref<16x512xf32, #tpu.memory_space<vmem>>, vector<16x512xf32>
    %cst = arith.constant dense<0.000000e+00> : vector<64x512xf32>
    %2 = tpu.matmul %0, %1, %cst {dimension_numbers = #tpu.dot_dimension_numbers<[1], [0], [0], [1], [0, 0, 1, 1], [], []>} : vector<64x16xf32>, vector<16x512xf32>, vector<64x512xf32> -> vector<64x512xf32>
    %c0_3 = arith.constant 0 : index
    %c0_4 = arith.constant 0 : index
    %3 = vector.load %arg3[%c0_3, %c0_4] : memref<1x512xf32, #tpu.memory_space<vmem>>, vector<1x512xf32>
    %4 = vector.broadcast %3 : vector<1x512xf32> to vector<64x512xf32>
    %5 = arith.addf %2, %4 : vector<64x512xf32>
    %c0_5 = arith.constant 0 : index
    %c0_6 = arith.constant 0 : index
    %6 = vector.load %arg10[%c0_5, %c0_6] : memref<64x512xf32, #tpu.memory_space<vmem>>, vector<64x512xf32>
    tpu.vector_store %arg10[%c0_5, %c0_6], %5 {strides = array<i32>} : memref<64x512xf32, #tpu.memory_space<vmem>>, vector<64x512xf32>,
    %cst_7 = arith.constant 0.000000e+00 : f32
    %7 = vector.broadcast %cst_7 : f32 to vector<8x128xf32>
    %c0_8 = arith.constant 0 : index
    %c0_9 = arith.constant 0 : index
    %8 = vector.load %arg11[%c0_8, %c0_9] : memref<8x128xf32, #tpu.memory_space<vmem>>, vector<8x128xf32>
    tpu.vector_store %arg11[%c0_8, %c0_9], %7 {strides = array<i32>} : memref<8x128xf32, #tpu.memory_space<vmem>>, vector<8x128xf32>,
    %cst_10 = arith.constant 0.000000e+00 : f32
    %9 = vector.broadcast %cst_10 : f32 to vector<8x128xf32>
    %c0_11 = arith.constant 0 : index
    %c0_12 = arith.constant 0 : index
    %10 = vector.load %arg12[%c0_11, %c0_12] : memref<8x128xf32, #tpu.memory_space<vmem>>, vector<8x128xf32>
    tpu.vector_store %arg12[%c0_11, %c0_12], %9 {strides = array<i32>} : memref<8x128xf32, #tpu.memory_space<vmem>>, vector<8x128xf32>,
    %c0_13 = arith.constant 0 : index
    %c0_14 = arith.constant 0 : index
    %11 = vector.load %arg2[%c0_13, %c0_14] : memref<128x512xf32, #tpu.memory_space<vmem>>, vector<128x512xf32>
    %c0_i32 = arith.constant 0 : i32
    %c8_i32 = arith.constant 8 : i32
    %12 = arith.muli %c0_i32, %c8_i32 : i32
    %13 = arith.index_cast %12 : i32 to index
    %c0_15 = arith.constant 0 : index
    %14 = vector.load %arg10[%13, %c0_15] : memref<64x512xf32, #tpu.memory_space<vmem>>, vector<8x512xf32>
    %c0_16 = arith.constant 0 : index
    %c0_17 = arith.constant 0 : index
    %15 = vector.load %arg11[%c0_16, %c0_17] : memref<8x128xf32, #tpu.memory_space<vmem>>, vector<8x128xf32>
    %cst_18 = arith.constant dense<0.000000e+00> : vector<8x512xf32>
    %16 = tpu.matmul %15, %11, %cst_18 {dimension_numbers = #tpu.dot_dimension_numbers<[1], [0], [0], [1], [0, 0, 1, 1], [], []>} : vector<8x128xf32>, vector<128x512xf32>, vector<8x512xf32> -> vector<8x512xf32>
    %17 = arith.addf %14, %16 : vector<8x512xf32>
    %18 = vector.extract_strided_slice %17 {offsets = [0, 0], sizes = [8, 128], strides = [1, 1]} : vector<8x512xf32> to vector<8x128xf32>
    %19 = arith.negf %18 : vector<8x128xf32>
    %20 = math.exp %19 : vector<8x128xf32>
    %cst_19 = arith.constant 1.000000e+00 : f32
    %21 = vector.broadcast %cst_19 : f32 to vector<8x128xf32>
    %22 = arith.addf %21, %20 : vector<8x128xf32>
    %23 = arith.divf %21, %22 : vector<8x128xf32>
    %24 = vector.extract_strided_slice %17 {offsets = [0, 128], sizes = [8, 128], strides = [1, 1]} : vector<8x512xf32> to vector<8x128xf32>
    %25 = arith.negf %24 : vector<8x128xf32>
    %26 = math.exp %25 : vector<8x128xf32>
    %cst_20 = arith.constant 1.000000e+00 : f32
    %27 = vector.broadcast %cst_20 : f32 to vector<8x128xf32>
    %28 = arith.addf %27, %26 : vector<8x128xf32>
    %29 = arith.divf %27, %28 : vector<8x128xf32>
    %30 = vector.extract_strided_slice %17 {offsets = [0, 256], sizes = [8, 128], strides = [1, 1]} : vector<8x512xf32> to vector<8x128xf32>
    %31 = math.tanh %30 : vector<8x128xf32>
    %32 = vector.extract_strided_slice %17 {offsets = [0, 384], sizes = [8, 128], strides = [1, 1]} : vector<8x512xf32> to vector<8x128xf32>
    %33 = arith.negf %32 : vector<8x128xf32>
    %34 = math.exp %33 : vector<8x128xf32>
    %cst_21 = arith.constant 1.000000e+00 : f32
    %35 = vector.broadcast %cst_21 : f32 to vector<8x128xf32>
    %36 = arith.addf %35, %34 : vector<8x128xf32>
    %37 = arith.divf %35, %36 : vector<8x128xf32>
    %c0_22 = arith.constant 0 : index
    %c0_23 = arith.constant 0 : index
    %38 = vector.load %arg12[%c0_22, %c0_23] : memref<8x128xf32, #tpu.memory_space<vmem>>, vector<8x128xf32>
    %39 = arith.mulf %29, %38 : vector<8x128xf32>
    %40 = arith.mulf %23, %31 : vector<8x128xf32>
    %41 = arith.addf %39, %40 : vector<8x128xf32>
    %42 = math.tanh %41 : vector<8x128xf32>
    %43 = arith.mulf %37, %42 : vector<8x128xf32>
    %c0_24 = arith.constant 0 : index
    %c0_25 = arith.constant 0 : index
    %44 = vector.load %arg12[%c0_24, %c0_25] : memref<8x128xf32, #tpu.memory_space<vmem>>, vector<8x128xf32>
    tpu.vector_store %arg12[%c0_24, %c0_25], %41 {strides = array<i32>} : memref<8x128xf32, #tpu.memory_space<vmem>>, vector<8x128xf32>,
    %c0_26 = arith.constant 0 : index
    %c0_27 = arith.constant 0 : index
    %45 = vector.load %arg11[%c0_26, %c0_27] : memref<8x128xf32, #tpu.memory_space<vmem>>, vector<8x128xf32>
    tpu.vector_store %arg11[%c0_26, %c0_27], %43 {strides = array<i32>} : memref<8x128xf32, #tpu.memory_space<vmem>>, vector<8x128xf32>,
    %46 = arith.index_cast %12 : i32 to index
    %c0_28 = arith.constant 0 : index
    %47 = vector.load %arg14[%46, %c0_28] : memref<64x128xf32, #tpu.memory_space<vmem>>, vector<8x128xf32>
    tpu.vector_store %arg14[%46, %c0_28], %43 {strides = array<i32>} : memref<64x128xf32, #tpu.memory_space<vmem>>, vector<8x128xf32>,
    %c1_i32 = arith.constant 1 : i32
    %c8_i32_29 = arith.constant 8 : i32
    %48 = arith.muli %c1_i32, %c8_i32_29 : i32
    %49 = arith.index_cast %48 : i32 to index
    %c0_30 = arith.constant 0 : index
    %50 = vector.load %arg10[%49, %c0_30] : memref<64x512xf32, #tpu.memory_space<vmem>>, vector<8x512xf32>
    %c0_31 = arith.constant 0 : index
    %c0_32 = arith.constant 0 : index
    %51 = vector.load %arg11[%c0_31, %c0_32] : memref<8x128xf32, #tpu.memory_space<vmem>>, vector<8x128xf32>
    %cst_33 = arith.constant dense<0.000000e+00> : vector<8x512xf32>
    %52 = tpu.matmul %51, %11, %cst_33 {dimension_numbers = #tpu.dot_dimension_numbers<[1], [0], [0], [1], [0, 0, 1, 1], [], []>} : vector<8x128xf32>, vector<128x512xf32>, vector<8x512xf32> -> vector<8x512xf32>
    %53 = arith.addf %50, %52 : vector<8x512xf32>
    %54 = vector.extract_strided_slice %53 {offsets = [0, 0], sizes = [8, 128], strides = [1, 1]} : vector<8x512xf32> to vector<8x128xf32>
    %55 = arith.negf %54 : vector<8x128xf32>
    %56 = math.exp %55 : vector<8x128xf32>
    %cst_34 = arith.constant 1.000000e+00 : f32
    %57 = vector.broadcast %cst_34 : f32 to vector<8x128xf32>
    %58 = arith.addf %57, %56 : vector<8x128xf32>
    %59 = arith.divf %57, %58 : vector<8x128xf32>
    %60 = vector.extract_strided_slice %53 {offsets = [0, 128], sizes = [8, 128], strides = [1, 1]} : vector<8x512xf32> to vector<8x128xf32>
    %61 = arith.negf %60 : vector<8x128xf32>
    %62 = math.exp %61 : vector<8x128xf32>
    %cst_35 = arith.constant 1.000000e+00 : f32
    %63 = vector.broadcast %cst_35 : f32 to vector<8x128xf32>
    %64 = arith.addf %63, %62 : vector<8x128xf32>
    %65 = arith.divf %63, %64 : vector<8x128xf32>
    %66 = vector.extract_strided_slice %53 {offsets = [0, 256], sizes = [8, 128], strides = [1, 1]} : vector<8x512xf32> to vector<8x128xf32>
    %67 = math.tanh %66 : vector<8x128xf32>
    %68 = vector.extract_strided_slice %53 {offsets = [0, 384], sizes = [8, 128], strides = [1, 1]} : vector<8x512xf32> to vector<8x128xf32>
    %69 = arith.negf %68 : vector<8x128xf32>
    %70 = math.exp %69 : vector<8x128xf32>
    %cst_36 = arith.constant 1.000000e+00 : f32
    %71 = vector.broadcast %cst_36 : f32 to vector<8x128xf32>
    %72 = arith.addf %71, %70 : vector<8x128xf32>
    %73 = arith.divf %71, %72 : vector<8x128xf32>
    %c0_37 = arith.constant 0 : index
    %c0_38 = arith.constant 0 : index
    %74 = vector.load %arg12[%c0_37, %c0_38] : memref<8x128xf32, #tpu.memory_space<vmem>>, vector<8x128xf32>
    %75 = arith.mulf %65, %74 : vector<8x128xf32>
    %76 = arith.mulf %59, %67 : vector<8x128xf32>
    %77 = arith.addf %75, %76 : vector<8x128xf32>
    %78 = math.tanh %77 : vector<8x128xf32>
    %79 = arith.mulf %73, %78 : vector<8x128xf32>
    %c0_39 = arith.constant 0 : index
    %c0_40 = arith.constant 0 : index
    %80 = vector.load %arg12[%c0_39, %c0_40] : memref<8x128xf32, #tpu.memory_space<vmem>>, vector<8x128xf32>
    tpu.vector_store %arg12[%c0_39, %c0_40], %77 {strides = array<i32>} : memref<8x128xf32, #tpu.memory_space<vmem>>, vector<8x128xf32>,
    %c0_41 = arith.constant 0 : index
    %c0_42 = arith.constant 0 : index
    %81 = vector.load %arg11[%c0_41, %c0_42] : memref<8x128xf32, #tpu.memory_space<vmem>>, vector<8x128xf32>
    tpu.vector_store %arg11[%c0_41, %c0_42], %79 {strides = array<i32>} : memref<8x128xf32, #tpu.memory_space<vmem>>, vector<8x128xf32>,
    %82 = arith.index_cast %48 : i32 to index
    %c0_43 = arith.constant 0 : index
    %83 = vector.load %arg14[%82, %c0_43] : memref<64x128xf32, #tpu.memory_space<vmem>>, vector<8x128xf32>
    tpu.vector_store %arg14[%82, %c0_43], %79 {strides = array<i32>} : memref<64x128xf32, #tpu.memory_space<vmem>>, vector<8x128xf32>,
    %c2_i32 = arith.constant 2 : i32
    %c8_i32_44 = arith.constant 8 : i32
    %84 = arith.muli %c2_i32, %c8_i32_44 : i32
    %85 = arith.index_cast %84 : i32 to index
    %c0_45 = arith.constant 0 : index
    %86 = vector.load %arg10[%85, %c0_45] : memref<64x512xf32, #tpu.memory_space<vmem>>, vector<8x512xf32>
    %c0_46 = arith.constant 0 : index
    %c0_47 = arith.constant 0 : index
    %87 = vector.load %arg11[%c0_46, %c0_47] : memref<8x128xf32, #tpu.memory_space<vmem>>, vector<8x128xf32>
    %cst_48 = arith.constant dense<0.000000e+00> : vector<8x512xf32>
    %88 = tpu.matmul %87, %11, %cst_48 {dimension_numbers = #tpu.dot_dimension_numbers<[1], [0], [0], [1], [0, 0, 1, 1], [], []>} : vector<8x128xf32>, vector<128x512xf32>, vector<8x512xf32> -> vector<8x512xf32>
    %89 = arith.addf %86, %88 : vector<8x512xf32>
    %90 = vector.extract_strided_slice %89 {offsets = [0, 0], sizes = [8, 128], strides = [1, 1]} : vector<8x512xf32> to vector<8x128xf32>
    %91 = arith.negf %90 : vector<8x128xf32>
    %92 = math.exp %91 : vector<8x128xf32>
    %cst_49 = arith.constant 1.000000e+00 : f32
    %93 = vector.broadcast %cst_49 : f32 to vector<8x128xf32>
    %94 = arith.addf %93, %92 : vector<8x128xf32>
    %95 = arith.divf %93, %94 : vector<8x128xf32>
    %96 = vector.extract_strided_slice %89 {offsets = [0, 128], sizes = [8, 128], strides = [1, 1]} : vector<8x512xf32> to vector<8x128xf32>
    %97 = arith.negf %96 : vector<8x128xf32>
    %98 = math.exp %97 : vector<8x128xf32>
    %cst_50 = arith.constant 1.000000e+00 : f32
    %99 = vector.broadcast %cst_50 : f32 to vector<8x128xf32>
    %100 = arith.addf %99, %98 : vector<8x128xf32>
    %101 = arith.divf %99, %100 : vector<8x128xf32>
    %102 = vector.extract_strided_slice %89 {offsets = [0, 256], sizes = [8, 128], strides = [1, 1]} : vector<8x512xf32> to vector<8x128xf32>
    %103 = math.tanh %102 : vector<8x128xf32>
    %104 = vector.extract_strided_slice %89 {offsets = [0, 384], sizes = [8, 128], strides = [1, 1]} : vector<8x512xf32> to vector<8x128xf32>
    %105 = arith.negf %104 : vector<8x128xf32>
    %106 = math.exp %105 : vector<8x128xf32>
    %cst_51 = arith.constant 1.000000e+00 : f32
    %107 = vector.broadcast %cst_51 : f32 to vector<8x128xf32>
    %108 = arith.addf %107, %106 : vector<8x128xf32>
    %109 = arith.divf %107, %108 : vector<8x128xf32>
    %c0_52 = arith.constant 0 : index
    %c0_53 = arith.constant 0 : index
    %110 = vector.load %arg12[%c0_52, %c0_53] : memref<8x128xf32, #tpu.memory_space<vmem>>, vector<8x128xf32>
    %111 = arith.mulf %101, %110 : vector<8x128xf32>
    %112 = arith.mulf %95, %103 : vector<8x128xf32>
    %113 = arith.addf %111, %112 : vector<8x128xf32>
    %114 = math.tanh %113 : vector<8x128xf32>
    %115 = arith.mulf %109, %114 : vector<8x128xf32>
    %c0_54 = arith.constant 0 : index
    %c0_55 = arith.constant 0 : index
    %116 = vector.load %arg12[%c0_54, %c0_55] : memref<8x128xf32, #tpu.memory_space<vmem>>, vector<8x128xf32>
    tpu.vector_store %arg12[%c0_54, %c0_55], %113 {strides = array<i32>} : memref<8x128xf32, #tpu.memory_space<vmem>>, vector<8x128xf32>,
    %c0_56 = arith.constant 0 : index
    %c0_57 = arith.constant 0 : index
    %117 = vector.load %arg11[%c0_56, %c0_57] : memref<8x128xf32, #tpu.memory_space<vmem>>, vector<8x128xf32>
    tpu.vector_store %arg11[%c0_56, %c0_57], %115 {strides = array<i32>} : memref<8x128xf32, #tpu.memory_space<vmem>>, vector<8x128xf32>,
    %118 = arith.index_cast %84 : i32 to index
    %c0_58 = arith.constant 0 : index
    %119 = vector.load %arg14[%118, %c0_58] : memref<64x128xf32, #tpu.memory_space<vmem>>, vector<8x128xf32>
    tpu.vector_store %arg14[%118, %c0_58], %115 {strides = array<i32>} : memref<64x128xf32, #tpu.memory_space<vmem>>, vector<8x128xf32>,
    %c3_i32 = arith.constant 3 : i32
    %c8_i32_59 = arith.constant 8 : i32
    %120 = arith.muli %c3_i32, %c8_i32_59 : i32
    %121 = arith.index_cast %120 : i32 to index
    %c0_60 = arith.constant 0 : index
    %122 = vector.load %arg10[%121, %c0_60] : memref<64x512xf32, #tpu.memory_space<vmem>>, vector<8x512xf32>
    %c0_61 = arith.constant 0 : index
    %c0_62 = arith.constant 0 : index
    %123 = vector.load %arg11[%c0_61, %c0_62] : memref<8x128xf32, #tpu.memory_space<vmem>>, vector<8x128xf32>
    %cst_63 = arith.constant dense<0.000000e+00> : vector<8x512xf32>
    %124 = tpu.matmul %123, %11, %cst_63 {dimension_numbers = #tpu.dot_dimension_numbers<[1], [0], [0], [1], [0, 0, 1, 1], [], []>} : vector<8x128xf32>, vector<128x512xf32>, vector<8x512xf32> -> vector<8x512xf32>
    %125 = arith.addf %122, %124 : vector<8x512xf32>
    %126 = vector.extract_strided_slice %125 {offsets = [0, 0], sizes = [8, 128], strides = [1, 1]} : vector<8x512xf32> to vector<8x128xf32>
    %127 = arith.negf %126 : vector<8x128xf32>
    %128 = math.exp %127 : vector<8x128xf32>
    %cst_64 = arith.constant 1.000000e+00 : f32
    %129 = vector.broadcast %cst_64 : f32 to vector<8x128xf32>
    %130 = arith.addf %129, %128 : vector<8x128xf32>
    %131 = arith.divf %129, %130 : vector<8x128xf32>
    %132 = vector.extract_strided_slice %125 {offsets = [0, 128], sizes = [8, 128], strides = [1, 1]} : vector<8x512xf32> to vector<8x128xf32>
    %133 = arith.negf %132 : vector<8x128xf32>
    %134 = math.exp %133 : vector<8x128xf32>
    %cst_65 = arith.constant 1.000000e+00 : f32
    %135 = vector.broadcast %cst_65 : f32 to vector<8x128xf32>
    %136 = arith.addf %135, %134 : vector<8x128xf32>
    %137 = arith.divf %135, %136 : vector<8x128xf32>
    %138 = vector.extract_strided_slice %125 {offsets = [0, 256], sizes = [8, 128], strides = [1, 1]} : vector<8x512xf32> to vector<8x128xf32>
    %139 = math.tanh %138 : vector<8x128xf32>
    %140 = vector.extract_strided_slice %125 {offsets = [0, 384], sizes = [8, 128], strides = [1, 1]} : vector<8x512xf32> to vector<8x128xf32>
    %141 = arith.negf %140 : vector<8x128xf32>
    %142 = math.exp %141 : vector<8x128xf32>
    %cst_66 = arith.constant 1.000000e+00 : f32
    %143 = vector.broadcast %cst_66 : f32 to vector<8x128xf32>
    %144 = arith.addf %143, %142 : vector<8x128xf32>
    %145 = arith.divf %143, %144 : vector<8x128xf32>
    %c0_67 = arith.constant 0 : index
    %c0_68 = arith.constant 0 : index
    %146 = vector.load %arg12[%c0_67, %c0_68] : memref<8x128xf32, #tpu.memory_space<vmem>>, vector<8x128xf32>
    %147 = arith.mulf %137, %146 : vector<8x128xf32>
    %148 = arith.mulf %131, %139 : vector<8x128xf32>
    %149 = arith.addf %147, %148 : vector<8x128xf32>
    %150 = math.tanh %149 : vector<8x128xf32>
    %151 = arith.mulf %145, %150 : vector<8x128xf32>
    %c0_69 = arith.constant 0 : index
    %c0_70 = arith.constant 0 : index
    %152 = vector.load %arg12[%c0_69, %c0_70] : memref<8x128xf32, #tpu.memory_space<vmem>>, vector<8x128xf32>
    tpu.vector_store %arg12[%c0_69, %c0_70], %149 {strides = array<i32>} : memref<8x128xf32, #tpu.memory_space<vmem>>, vector<8x128xf32>,
    %c0_71 = arith.constant 0 : index
    %c0_72 = arith.constant 0 : index
    %153 = vector.load %arg11[%c0_71, %c0_72] : memref<8x128xf32, #tpu.memory_space<vmem>>, vector<8x128xf32>
    tpu.vector_store %arg11[%c0_71, %c0_72], %151 {strides = array<i32>} : memref<8x128xf32, #tpu.memory_space<vmem>>, vector<8x128xf32>,
    %154 = arith.index_cast %120 : i32 to index
    %c0_73 = arith.constant 0 : index
    %155 = vector.load %arg14[%154, %c0_73] : memref<64x128xf32, #tpu.memory_space<vmem>>, vector<8x128xf32>
    tpu.vector_store %arg14[%154, %c0_73], %151 {strides = array<i32>} : memref<64x128xf32, #tpu.memory_space<vmem>>, vector<8x128xf32>,
    %c4_i32 = arith.constant 4 : i32
    %c8_i32_74 = arith.constant 8 : i32
    %156 = arith.muli %c4_i32, %c8_i32_74 : i32
    %157 = arith.index_cast %156 : i32 to index
    %c0_75 = arith.constant 0 : index
    %158 = vector.load %arg10[%157, %c0_75] : memref<64x512xf32, #tpu.memory_space<vmem>>, vector<8x512xf32>
    %c0_76 = arith.constant 0 : index
    %c0_77 = arith.constant 0 : index
    %159 = vector.load %arg11[%c0_76, %c0_77] : memref<8x128xf32, #tpu.memory_space<vmem>>, vector<8x128xf32>
    %cst_78 = arith.constant dense<0.000000e+00> : vector<8x512xf32>
    %160 = tpu.matmul %159, %11, %cst_78 {dimension_numbers = #tpu.dot_dimension_numbers<[1], [0], [0], [1], [0, 0, 1, 1], [], []>} : vector<8x128xf32>, vector<128x512xf32>, vector<8x512xf32> -> vector<8x512xf32>
    %161 = arith.addf %158, %160 : vector<8x512xf32>
    %162 = vector.extract_strided_slice %161 {offsets = [0, 0], sizes = [8, 128], strides = [1, 1]} : vector<8x512xf32> to vector<8x128xf32>
    %163 = arith.negf %162 : vector<8x128xf32>
    %164 = math.exp %163 : vector<8x128xf32>
    %cst_79 = arith.constant 1.000000e+00 : f32
    %165 = vector.broadcast %cst_79 : f32 to vector<8x128xf32>
    %166 = arith.addf %165, %164 : vector<8x128xf32>
    %167 = arith.divf %165, %166 : vector<8x128xf32>
    %168 = vector.extract_strided_slice %161 {offsets = [0, 128], sizes = [8, 128], strides = [1, 1]} : vector<8x512xf32> to vector<8x128xf32>
    %169 = arith.negf %168 : vector<8x128xf32>
    %170 = math.exp %169 : vector<8x128xf32>
    %cst_80 = arith.constant 1.000000e+00 : f32
    %171 = vector.broadcast %cst_80 : f32 to vector<8x128xf32>
    %172 = arith.addf %171, %170 : vector<8x128xf32>
    %173 = arith.divf %171, %172 : vector<8x128xf32>
    %174 = vector.extract_strided_slice %161 {offsets = [0, 256], sizes = [8, 128], strides = [1, 1]} : vector<8x512xf32> to vector<8x128xf32>
    %175 = math.tanh %174 : vector<8x128xf32>
    %176 = vector.extract_strided_slice %161 {offsets = [0, 384], sizes = [8, 128], strides = [1, 1]} : vector<8x512xf32> to vector<8x128xf32>
    %177 = arith.negf %176 : vector<8x128xf32>
    %178 = math.exp %177 : vector<8x128xf32>
    %cst_81 = arith.constant 1.000000e+00 : f32
    %179 = vector.broadcast %cst_81 : f32 to vector<8x128xf32>
    %180 = arith.addf %179, %178 : vector<8x128xf32>
    %181 = arith.divf %179, %180 : vector<8x128xf32>
    %c0_82 = arith.constant 0 : index
    %c0_83 = arith.constant 0 : index
    %182 = vector.load %arg12[%c0_82, %c0_83] : memref<8x128xf32, #tpu.memory_space<vmem>>, vector<8x128xf32>
    %183 = arith.mulf %173, %182 : vector<8x128xf32>
    %184 = arith.mulf %167, %175 : vector<8x128xf32>
    %185 = arith.addf %183, %184 : vector<8x128xf32>
    %186 = math.tanh %185 : vector<8x128xf32>
    %187 = arith.mulf %181, %186 : vector<8x128xf32>
    %c0_84 = arith.constant 0 : index
    %c0_85 = arith.constant 0 : index
    %188 = vector.load %arg12[%c0_84, %c0_85] : memref<8x128xf32, #tpu.memory_space<vmem>>, vector<8x128xf32>
    tpu.vector_store %arg12[%c0_84, %c0_85], %185 {strides = array<i32>} : memref<8x128xf32, #tpu.memory_space<vmem>>, vector<8x128xf32>,
    %c0_86 = arith.constant 0 : index
    %c0_87 = arith.constant 0 : index
    %189 = vector.load %arg11[%c0_86, %c0_87] : memref<8x128xf32, #tpu.memory_space<vmem>>, vector<8x128xf32>
    tpu.vector_store %arg11[%c0_86, %c0_87], %187 {strides = array<i32>} : memref<8x128xf32, #tpu.memory_space<vmem>>, vector<8x128xf32>,
    %190 = arith.index_cast %156 : i32 to index
    %c0_88 = arith.constant 0 : index
    %191 = vector.load %arg14[%190, %c0_88] : memref<64x128xf32, #tpu.memory_space<vmem>>, vector<8x128xf32>
    tpu.vector_store %arg14[%190, %c0_88], %187 {strides = array<i32>} : memref<64x128xf32, #tpu.memory_space<vmem>>, vector<8x128xf32>,
    %c5_i32 = arith.constant 5 : i32
    %c8_i32_89 = arith.constant 8 : i32
    %192 = arith.muli %c5_i32, %c8_i32_89 : i32
    %193 = arith.index_cast %192 : i32 to index
    %c0_90 = arith.constant 0 : index
    %194 = vector.load %arg10[%193, %c0_90] : memref<64x512xf32, #tpu.memory_space<vmem>>, vector<8x512xf32>
    %c0_91 = arith.constant 0 : index
    %c0_92 = arith.constant 0 : index
    %195 = vector.load %arg11[%c0_91, %c0_92] : memref<8x128xf32, #tpu.memory_space<vmem>>, vector<8x128xf32>
    %cst_93 = arith.constant dense<0.000000e+00> : vector<8x512xf32>
    %196 = tpu.matmul %195, %11, %cst_93 {dimension_numbers = #tpu.dot_dimension_numbers<[1], [0], [0], [1], [0, 0, 1, 1], [], []>} : vector<8x128xf32>, vector<128x512xf32>, vector<8x512xf32> -> vector<8x512xf32>
    %197 = arith.addf %194, %196 : vector<8x512xf32>
    %198 = vector.extract_strided_slice %197 {offsets = [0, 0], sizes = [8, 128], strides = [1, 1]} : vector<8x512xf32> to vector<8x128xf32>
    %199 = arith.negf %198 : vector<8x128xf32>
    %200 = math.exp %199 : vector<8x128xf32>
    %cst_94 = arith.constant 1.000000e+00 : f32
    %201 = vector.broadcast %cst_94 : f32 to vector<8x128xf32>
    %202 = arith.addf %201, %200 : vector<8x128xf32>
    %203 = arith.divf %201, %202 : vector<8x128xf32>
    %204 = vector.extract_strided_slice %197 {offsets = [0, 128], sizes = [8, 128], strides = [1, 1]} : vector<8x512xf32> to vector<8x128xf32>
    %205 = arith.negf %204 : vector<8x128xf32>
    %206 = math.exp %205 : vector<8x128xf32>
    %cst_95 = arith.constant 1.000000e+00 : f32
    %207 = vector.broadcast %cst_95 : f32 to vector<8x128xf32>
    %208 = arith.addf %207, %206 : vector<8x128xf32>
    %209 = arith.divf %207, %208 : vector<8x128xf32>
    %210 = vector.extract_strided_slice %197 {offsets = [0, 256], sizes = [8, 128], strides = [1, 1]} : vector<8x512xf32> to vector<8x128xf32>
    %211 = math.tanh %210 : vector<8x128xf32>
    %212 = vector.extract_strided_slice %197 {offsets = [0, 384], sizes = [8, 128], strides = [1, 1]} : vector<8x512xf32> to vector<8x128xf32>
    %213 = arith.negf %212 : vector<8x128xf32>
    %214 = math.exp %213 : vector<8x128xf32>
    %cst_96 = arith.constant 1.000000e+00 : f32
    %215 = vector.broadcast %cst_96 : f32 to vector<8x128xf32>
    %216 = arith.addf %215, %214 : vector<8x128xf32>
    %217 = arith.divf %215, %216 : vector<8x128xf32>
    %c0_97 = arith.constant 0 : index
    %c0_98 = arith.constant 0 : index
    %218 = vector.load %arg12[%c0_97, %c0_98] : memref<8x128xf32, #tpu.memory_space<vmem>>, vector<8x128xf32>
    %219 = arith.mulf %209, %218 : vector<8x128xf32>
    %220 = arith.mulf %203, %211 : vector<8x128xf32>
    %221 = arith.addf %219, %220 : vector<8x128xf32>
    %222 = math.tanh %221 : vector<8x128xf32>
    %223 = arith.mulf %217, %222 : vector<8x128xf32>
    %c0_99 = arith.constant 0 : index
    %c0_100 = arith.constant 0 : index
    %224 = vector.load %arg12[%c0_99, %c0_100] : memref<8x128xf32, #tpu.memory_space<vmem>>, vector<8x128xf32>
    tpu.vector_store %arg12[%c0_99, %c0_100], %221 {strides = array<i32>} : memref<8x128xf32, #tpu.memory_space<vmem>>, vector<8x128xf32>,
    %c0_101 = arith.constant 0 : index
    %c0_102 = arith.constant 0 : index
    %225 = vector.load %arg11[%c0_101, %c0_102] : memref<8x128xf32, #tpu.memory_space<vmem>>, vector<8x128xf32>
    tpu.vector_store %arg11[%c0_101, %c0_102], %223 {strides = array<i32>} : memref<8x128xf32, #tpu.memory_space<vmem>>, vector<8x128xf32>,
    %226 = arith.index_cast %192 : i32 to index
    %c0_103 = arith.constant 0 : index
    %227 = vector.load %arg14[%226, %c0_103] : memref<64x128xf32, #tpu.memory_space<vmem>>, vector<8x128xf32>
    tpu.vector_store %arg14[%226, %c0_103], %223 {strides = array<i32>} : memref<64x128xf32, #tpu.memory_space<vmem>>, vector<8x128xf32>,
    %c6_i32 = arith.constant 6 : i32
    %c8_i32_104 = arith.constant 8 : i32
    %228 = arith.muli %c6_i32, %c8_i32_104 : i32
    %229 = arith.index_cast %228 : i32 to index
    %c0_105 = arith.constant 0 : index
    %230 = vector.load %arg10[%229, %c0_105] : memref<64x512xf32, #tpu.memory_space<vmem>>, vector<8x512xf32>
    %c0_106 = arith.constant 0 : index
    %c0_107 = arith.constant 0 : index
    %231 = vector.load %arg11[%c0_106, %c0_107] : memref<8x128xf32, #tpu.memory_space<vmem>>, vector<8x128xf32>
    %cst_108 = arith.constant dense<0.000000e+00> : vector<8x512xf32>
    %232 = tpu.matmul %231, %11, %cst_108 {dimension_numbers = #tpu.dot_dimension_numbers<[1], [0], [0], [1], [0, 0, 1, 1], [], []>} : vector<8x128xf32>, vector<128x512xf32>, vector<8x512xf32> -> vector<8x512xf32>
    %233 = arith.addf %230, %232 : vector<8x512xf32>
    %234 = vector.extract_strided_slice %233 {offsets = [0, 0], sizes = [8, 128], strides = [1, 1]} : vector<8x512xf32> to vector<8x128xf32>
    %235 = arith.negf %234 : vector<8x128xf32>
    %236 = math.exp %235 : vector<8x128xf32>
    %cst_109 = arith.constant 1.000000e+00 : f32
    %237 = vector.broadcast %cst_109 : f32 to vector<8x128xf32>
    %238 = arith.addf %237, %236 : vector<8x128xf32>
    %239 = arith.divf %237, %238 : vector<8x128xf32>
    %240 = vector.extract_strided_slice %233 {offsets = [0, 128], sizes = [8, 128], strides = [1, 1]} : vector<8x512xf32> to vector<8x128xf32>
    %241 = arith.negf %240 : vector<8x128xf32>
    %242 = math.exp %241 : vector<8x128xf32>
    %cst_110 = arith.constant 1.000000e+00 : f32
    %243 = vector.broadcast %cst_110 : f32 to vector<8x128xf32>
    %244 = arith.addf %243, %242 : vector<8x128xf32>
    %245 = arith.divf %243, %244 : vector<8x128xf32>
    %246 = vector.extract_strided_slice %233 {offsets = [0, 256], sizes = [8, 128], strides = [1, 1]} : vector<8x512xf32> to vector<8x128xf32>
    %247 = math.tanh %246 : vector<8x128xf32>
    %248 = vector.extract_strided_slice %233 {offsets = [0, 384], sizes = [8, 128], strides = [1, 1]} : vector<8x512xf32> to vector<8x128xf32>
    %249 = arith.negf %248 : vector<8x128xf32>
    %250 = math.exp %249 : vector<8x128xf32>
    %cst_111 = arith.constant 1.000000e+00 : f32
    %251 = vector.broadcast %cst_111 : f32 to vector<8x128xf32>
    %252 = arith.addf %251, %250 : vector<8x128xf32>
    %253 = arith.divf %251, %252 : vector<8x128xf32>
    %c0_112 = arith.constant 0 : index
    %c0_113 = arith.constant 0 : index
    %254 = vector.load %arg12[%c0_112, %c0_113] : memref<8x128xf32, #tpu.memory_space<vmem>>, vector<8x128xf32>
    %255 = arith.mulf %245, %254 : vector<8x128xf32>
    %256 = arith.mulf %239, %247 : vector<8x128xf32>
    %257 = arith.addf %255, %256 : vector<8x128xf32>
    %258 = math.tanh %257 : vector<8x128xf32>
    %259 = arith.mulf %253, %258 : vector<8x128xf32>
    %c0_114 = arith.constant 0 : index
    %c0_115 = arith.constant 0 : index
    %260 = vector.load %arg12[%c0_114, %c0_115] : memref<8x128xf32, #tpu.memory_space<vmem>>, vector<8x128xf32>
    tpu.vector_store %arg12[%c0_114, %c0_115], %257 {strides = array<i32>} : memref<8x128xf32, #tpu.memory_space<vmem>>, vector<8x128xf32>,
    %c0_116 = arith.constant 0 : index
    %c0_117 = arith.constant 0 : index
    %261 = vector.load %arg11[%c0_116, %c0_117] : memref<8x128xf32, #tpu.memory_space<vmem>>, vector<8x128xf32>
    tpu.vector_store %arg11[%c0_116, %c0_117], %259 {strides = array<i32>} : memref<8x128xf32, #tpu.memory_space<vmem>>, vector<8x128xf32>,
    %262 = arith.index_cast %228 : i32 to index
    %c0_118 = arith.constant 0 : index
    %263 = vector.load %arg14[%262, %c0_118] : memref<64x128xf32, #tpu.memory_space<vmem>>, vector<8x128xf32>
    tpu.vector_store %arg14[%262, %c0_118], %259 {strides = array<i32>} : memref<64x128xf32, #tpu.memory_space<vmem>>, vector<8x128xf32>,
    %c7_i32 = arith.constant 7 : i32
    %c8_i32_119 = arith.constant 8 : i32
    %264 = arith.muli %c7_i32, %c8_i32_119 : i32
    %265 = arith.index_cast %264 : i32 to index
    %c0_120 = arith.constant 0 : index
    %266 = vector.load %arg10[%265, %c0_120] : memref<64x512xf32, #tpu.memory_space<vmem>>, vector<8x512xf32>
    %c0_121 = arith.constant 0 : index
    %c0_122 = arith.constant 0 : index
    %267 = vector.load %arg11[%c0_121, %c0_122] : memref<8x128xf32, #tpu.memory_space<vmem>>, vector<8x128xf32>
    %cst_123 = arith.constant dense<0.000000e+00> : vector<8x512xf32>
    %268 = tpu.matmul %267, %11, %cst_123 {dimension_numbers = #tpu.dot_dimension_numbers<[1], [0], [0], [1], [0, 0, 1, 1], [], []>} : vector<8x128xf32>, vector<128x512xf32>, vector<8x512xf32> -> vector<8x512xf32>
    %269 = arith.addf %266, %268 : vector<8x512xf32>
    %270 = vector.extract_strided_slice %269 {offsets = [0, 0], sizes = [8, 128], strides = [1, 1]} : vector<8x512xf32> to vector<8x128xf32>
    %271 = arith.negf %270 : vector<8x128xf32>
    %272 = math.exp %271 : vector<8x128xf32>
    %cst_124 = arith.constant 1.000000e+00 : f32
    %273 = vector.broadcast %cst_124 : f32 to vector<8x128xf32>
    %274 = arith.addf %273, %272 : vector<8x128xf32>
    %275 = arith.divf %273, %274 : vector<8x128xf32>
    %276 = vector.extract_strided_slice %269 {offsets = [0, 128], sizes = [8, 128], strides = [1, 1]} : vector<8x512xf32> to vector<8x128xf32>
    %277 = arith.negf %276 : vector<8x128xf32>
    %278 = math.exp %277 : vector<8x128xf32>
    %cst_125 = arith.constant 1.000000e+00 : f32
    %279 = vector.broadcast %cst_125 : f32 to vector<8x128xf32>
    %280 = arith.addf %279, %278 : vector<8x128xf32>
    %281 = arith.divf %279, %280 : vector<8x128xf32>
    %282 = vector.extract_strided_slice %269 {offsets = [0, 256], sizes = [8, 128], strides = [1, 1]} : vector<8x512xf32> to vector<8x128xf32>
    %283 = math.tanh %282 : vector<8x128xf32>
    %284 = vector.extract_strided_slice %269 {offsets = [0, 384], sizes = [8, 128], strides = [1, 1]} : vector<8x512xf32> to vector<8x128xf32>
    %285 = arith.negf %284 : vector<8x128xf32>
    %286 = math.exp %285 : vector<8x128xf32>
    %cst_126 = arith.constant 1.000000e+00 : f32
    %287 = vector.broadcast %cst_126 : f32 to vector<8x128xf32>
    %288 = arith.addf %287, %286 : vector<8x128xf32>
    %289 = arith.divf %287, %288 : vector<8x128xf32>
    %c0_127 = arith.constant 0 : index
    %c0_128 = arith.constant 0 : index
    %290 = vector.load %arg12[%c0_127, %c0_128] : memref<8x128xf32, #tpu.memory_space<vmem>>, vector<8x128xf32>
    %291 = arith.mulf %281, %290 : vector<8x128xf32>
    %292 = arith.mulf %275, %283 : vector<8x128xf32>
    %293 = arith.addf %291, %292 : vector<8x128xf32>
    %294 = math.tanh %293 : vector<8x128xf32>
    %295 = arith.mulf %289, %294 : vector<8x128xf32>
    %c0_129 = arith.constant 0 : index
    %c0_130 = arith.constant 0 : index
    %296 = vector.load %arg12[%c0_129, %c0_130] : memref<8x128xf32, #tpu.memory_space<vmem>>, vector<8x128xf32>
    tpu.vector_store %arg12[%c0_129, %c0_130], %293 {strides = array<i32>} : memref<8x128xf32, #tpu.memory_space<vmem>>, vector<8x128xf32>,
    %c0_131 = arith.constant 0 : index
    %c0_132 = arith.constant 0 : index
    %297 = vector.load %arg11[%c0_131, %c0_132] : memref<8x128xf32, #tpu.memory_space<vmem>>, vector<8x128xf32>
    tpu.vector_store %arg11[%c0_131, %c0_132], %295 {strides = array<i32>} : memref<8x128xf32, #tpu.memory_space<vmem>>, vector<8x128xf32>,
    %298 = arith.index_cast %264 : i32 to index
    %c0_133 = arith.constant 0 : index
    %299 = vector.load %arg14[%298, %c0_133] : memref<64x128xf32, #tpu.memory_space<vmem>>, vector<8x128xf32>
    tpu.vector_store %arg14[%298, %c0_133], %295 {strides = array<i32>} : memref<64x128xf32, #tpu.memory_space<vmem>>, vector<8x128xf32>,
    %c8_i32_134 = arith.constant 8 : i32
    %c0_135 = arith.constant 0 : index
    %c0_136 = arith.constant 0 : index
    %300 = vector.load %arg11[%c0_135, %c0_136] : memref<8x128xf32, #tpu.memory_space<vmem>>, vector<8x128xf32>
    %c0_137 = arith.constant 0 : index
    %c0_138 = arith.constant 0 : index
    %301 = vector.load %arg13[%c0_137, %c0_138] : memref<16x128xf32, #tpu.memory_space<vmem>>, vector<8x128xf32>
    tpu.vector_store %arg13[%c0_137, %c0_138], %300 {strides = array<i32>} : memref<16x128xf32, #tpu.memory_space<vmem>>, vector<8x128xf32>,
    %c0_139 = arith.constant 0 : index
    %c0_140 = arith.constant 0 : index
    %302 = vector.load %arg14[%c0_139, %c0_140] : memref<64x128xf32, #tpu.memory_space<vmem>>, vector<64x128xf32>
    %c0_141 = arith.constant 0 : index
    %c0_142 = arith.constant 0 : index
    %303 = vector.load %arg4[%c0_141, %c0_142] : memref<128x512xf32, #tpu.memory_space<vmem>>, vector<128x512xf32>
    %cst_143 = arith.constant dense<0.000000e+00> : vector<64x512xf32>
    %304 = tpu.matmul %302, %303, %cst_143 {dimension_numbers = #tpu.dot_dimension_numbers<[1], [0], [0], [1], [0, 0, 1, 1], [], []>} : vector<64x128xf32>, vector<128x512xf32>, vector<64x512xf32> -> vector<64x512xf32>
    %c0_144 = arith.constant 0 : index
    %c0_145 = arith.constant 0 : index
    %305 = vector.load %arg6[%c0_144, %c0_145] : memref<1x512xf32, #tpu.memory_space<vmem>>, vector<1x512xf32>
    %306 = vector.broadcast %305 : vector<1x512xf32> to vector<64x512xf32>
    %307 = arith.addf %304, %306 : vector<64x512xf32>
    %c0_146 = arith.constant 0 : index
    %c0_147 = arith.constant 0 : index
    %308 = vector.load %arg10[%c0_146, %c0_147] : memref<64x512xf32, #tpu.memory_space<vmem>>, vector<64x512xf32>
    tpu.vector_store %arg10[%c0_146, %c0_147], %307 {strides = array<i32>} : memref<64x512xf32, #tpu.memory_space<vmem>>, vector<64x512xf32>,
    %cst_148 = arith.constant 0.000000e+00 : f32
    %309 = vector.broadcast %cst_148 : f32 to vector<8x128xf32>
    %c0_149 = arith.constant 0 : index
    %c0_150 = arith.constant 0 : index
    %310 = vector.load %arg11[%c0_149, %c0_150] : memref<8x128xf32, #tpu.memory_space<vmem>>, vector<8x128xf32>
    tpu.vector_store %arg11[%c0_149, %c0_150], %309 {strides = array<i32>} : memref<8x128xf32, #tpu.memory_space<vmem>>, vector<8x128xf32>,
    %cst_151 = arith.constant 0.000000e+00 : f32
    %311 = vector.broadcast %cst_151 : f32 to vector<8x128xf32>
    %c0_152 = arith.constant 0 : index
    %c0_153 = arith.constant 0 : index
    %312 = vector.load %arg12[%c0_152, %c0_153] : memref<8x128xf32, #tpu.memory_space<vmem>>, vector<8x128xf32>
    tpu.vector_store %arg12[%c0_152, %c0_153], %311 {strides = array<i32>} : memref<8x128xf32, #tpu.memory_space<vmem>>, vector<8x128xf32>,
    %c0_154 = arith.constant 0 : index
    %c0_155 = arith.constant 0 : index
    %313 = vector.load %arg5[%c0_154, %c0_155] : memref<128x512xf32, #tpu.memory_space<vmem>>, vector<128x512xf32>
    %c0_i32_156 = arith.constant 0 : i32
    %c8_i32_157 = arith.constant 8 : i32
    %314 = arith.muli %c0_i32_156, %c8_i32_157 : i32
    %315 = arith.index_cast %314 : i32 to index
    %c0_158 = arith.constant 0 : index
    %316 = vector.load %arg10[%315, %c0_158] : memref<64x512xf32, #tpu.memory_space<vmem>>, vector<8x512xf32>
    %c0_159 = arith.constant 0 : index
    %c0_160 = arith.constant 0 : index
    %317 = vector.load %arg11[%c0_159, %c0_160] : memref<8x128xf32, #tpu.memory_space<vmem>>, vector<8x128xf32>
    %cst_161 = arith.constant dense<0.000000e+00> : vector<8x512xf32>
    %318 = tpu.matmul %317, %313, %cst_161 {dimension_numbers = #tpu.dot_dimension_numbers<[1], [0], [0], [1], [0, 0, 1, 1], [], []>} : vector<8x128xf32>, vector<128x512xf32>, vector<8x512xf32> -> vector<8x512xf32>
    %319 = arith.addf %316, %318 : vector<8x512xf32>
    %320 = vector.extract_strided_slice %319 {offsets = [0, 0], sizes = [8, 128], strides = [1, 1]} : vector<8x512xf32> to vector<8x128xf32>
    %321 = arith.negf %320 : vector<8x128xf32>
    %322 = math.exp %321 : vector<8x128xf32>
    %cst_162 = arith.constant 1.000000e+00 : f32
    %323 = vector.broadcast %cst_162 : f32 to vector<8x128xf32>
    %324 = arith.addf %323, %322 : vector<8x128xf32>
    %325 = arith.divf %323, %324 : vector<8x128xf32>
    %326 = vector.extract_strided_slice %319 {offsets = [0, 128], sizes = [8, 128], strides = [1, 1]} : vector<8x512xf32> to vector<8x128xf32>
    %327 = arith.negf %326 : vector<8x128xf32>
    %328 = math.exp %327 : vector<8x128xf32>
    %cst_163 = arith.constant 1.000000e+00 : f32
    %329 = vector.broadcast %cst_163 : f32 to vector<8x128xf32>
    %330 = arith.addf %329, %328 : vector<8x128xf32>
    %331 = arith.divf %329, %330 : vector<8x128xf32>
    %332 = vector.extract_strided_slice %319 {offsets = [0, 256], sizes = [8, 128], strides = [1, 1]} : vector<8x512xf32> to vector<8x128xf32>
    %333 = math.tanh %332 : vector<8x128xf32>
    %334 = vector.extract_strided_slice %319 {offsets = [0, 384], sizes = [8, 128], strides = [1, 1]} : vector<8x512xf32> to vector<8x128xf32>
    %335 = arith.negf %334 : vector<8x128xf32>
    %336 = math.exp %335 : vector<8x128xf32>
    %cst_164 = arith.constant 1.000000e+00 : f32
    %337 = vector.broadcast %cst_164 : f32 to vector<8x128xf32>
    %338 = arith.addf %337, %336 : vector<8x128xf32>
    %339 = arith.divf %337, %338 : vector<8x128xf32>
    %c0_165 = arith.constant 0 : index
    %c0_166 = arith.constant 0 : index
    %340 = vector.load %arg12[%c0_165, %c0_166] : memref<8x128xf32, #tpu.memory_space<vmem>>, vector<8x128xf32>
    %341 = arith.mulf %331, %340 : vector<8x128xf32>
    %342 = arith.mulf %325, %333 : vector<8x128xf32>
    %343 = arith.addf %341, %342 : vector<8x128xf32>
    %344 = math.tanh %343 : vector<8x128xf32>
    %345 = arith.mulf %339, %344 : vector<8x128xf32>
    %c0_167 = arith.constant 0 : index
    %c0_168 = arith.constant 0 : index
    %346 = vector.load %arg12[%c0_167, %c0_168] : memref<8x128xf32, #tpu.memory_space<vmem>>, vector<8x128xf32>
    tpu.vector_store %arg12[%c0_167, %c0_168], %343 {strides = array<i32>} : memref<8x128xf32, #tpu.memory_space<vmem>>, vector<8x128xf32>,
    %c0_169 = arith.constant 0 : index
    %c0_170 = arith.constant 0 : index
    %347 = vector.load %arg11[%c0_169, %c0_170] : memref<8x128xf32, #tpu.memory_space<vmem>>, vector<8x128xf32>
    tpu.vector_store %arg11[%c0_169, %c0_170], %345 {strides = array<i32>} : memref<8x128xf32, #tpu.memory_space<vmem>>, vector<8x128xf32>,
    %c1_i32_171 = arith.constant 1 : i32
    %c8_i32_172 = arith.constant 8 : i32
    %348 = arith.muli %c1_i32_171, %c8_i32_172 : i32
    %349 = arith.index_cast %348 : i32 to index
    %c0_173 = arith.constant 0 : index
    %350 = vector.load %arg10[%349, %c0_173] : memref<64x512xf32, #tpu.memory_space<vmem>>, vector<8x512xf32>
    %c0_174 = arith.constant 0 : index
    %c0_175 = arith.constant 0 : index
    %351 = vector.load %arg11[%c0_174, %c0_175] : memref<8x128xf32, #tpu.memory_space<vmem>>, vector<8x128xf32>
    %cst_176 = arith.constant dense<0.000000e+00> : vector<8x512xf32>
    %352 = tpu.matmul %351, %313, %cst_176 {dimension_numbers = #tpu.dot_dimension_numbers<[1], [0], [0], [1], [0, 0, 1, 1], [], []>} : vector<8x128xf32>, vector<128x512xf32>, vector<8x512xf32> -> vector<8x512xf32>
    %353 = arith.addf %350, %352 : vector<8x512xf32>
    %354 = vector.extract_strided_slice %353 {offsets = [0, 0], sizes = [8, 128], strides = [1, 1]} : vector<8x512xf32> to vector<8x128xf32>
    %355 = arith.negf %354 : vector<8x128xf32>
    %356 = math.exp %355 : vector<8x128xf32>
    %cst_177 = arith.constant 1.000000e+00 : f32
    %357 = vector.broadcast %cst_177 : f32 to vector<8x128xf32>
    %358 = arith.addf %357, %356 : vector<8x128xf32>
    %359 = arith.divf %357, %358 : vector<8x128xf32>
    %360 = vector.extract_strided_slice %353 {offsets = [0, 128], sizes = [8, 128], strides = [1, 1]} : vector<8x512xf32> to vector<8x128xf32>
    %361 = arith.negf %360 : vector<8x128xf32>
    %362 = math.exp %361 : vector<8x128xf32>
    %cst_178 = arith.constant 1.000000e+00 : f32
    %363 = vector.broadcast %cst_178 : f32 to vector<8x128xf32>
    %364 = arith.addf %363, %362 : vector<8x128xf32>
    %365 = arith.divf %363, %364 : vector<8x128xf32>
    %366 = vector.extract_strided_slice %353 {offsets = [0, 256], sizes = [8, 128], strides = [1, 1]} : vector<8x512xf32> to vector<8x128xf32>
    %367 = math.tanh %366 : vector<8x128xf32>
    %368 = vector.extract_strided_slice %353 {offsets = [0, 384], sizes = [8, 128], strides = [1, 1]} : vector<8x512xf32> to vector<8x128xf32>
    %369 = arith.negf %368 : vector<8x128xf32>
    %370 = math.exp %369 : vector<8x128xf32>
    %cst_179 = arith.constant 1.000000e+00 : f32
    %371 = vector.broadcast %cst_179 : f32 to vector<8x128xf32>
    %372 = arith.addf %371, %370 : vector<8x128xf32>
    %373 = arith.divf %371, %372 : vector<8x128xf32>
    %c0_180 = arith.constant 0 : index
    %c0_181 = arith.constant 0 : index
    %374 = vector.load %arg12[%c0_180, %c0_181] : memref<8x128xf32, #tpu.memory_space<vmem>>, vector<8x128xf32>
    %375 = arith.mulf %365, %374 : vector<8x128xf32>
    %376 = arith.mulf %359, %367 : vector<8x128xf32>
    %377 = arith.addf %375, %376 : vector<8x128xf32>
    %378 = math.tanh %377 : vector<8x128xf32>
    %379 = arith.mulf %373, %378 : vector<8x128xf32>
    %c0_182 = arith.constant 0 : index
    %c0_183 = arith.constant 0 : index
    %380 = vector.load %arg12[%c0_182, %c0_183] : memref<8x128xf32, #tpu.memory_space<vmem>>, vector<8x128xf32>
    tpu.vector_store %arg12[%c0_182, %c0_183], %377 {strides = array<i32>} : memref<8x128xf32, #tpu.memory_space<vmem>>, vector<8x128xf32>,
    %c0_184 = arith.constant 0 : index
    %c0_185 = arith.constant 0 : index
    %381 = vector.load %arg11[%c0_184, %c0_185] : memref<8x128xf32, #tpu.memory_space<vmem>>, vector<8x128xf32>
    tpu.vector_store %arg11[%c0_184, %c0_185], %379 {strides = array<i32>} : memref<8x128xf32, #tpu.memory_space<vmem>>, vector<8x128xf32>,
    %c2_i32_186 = arith.constant 2 : i32
    %c8_i32_187 = arith.constant 8 : i32
    %382 = arith.muli %c2_i32_186, %c8_i32_187 : i32
    %383 = arith.index_cast %382 : i32 to index
    %c0_188 = arith.constant 0 : index
    %384 = vector.load %arg10[%383, %c0_188] : memref<64x512xf32, #tpu.memory_space<vmem>>, vector<8x512xf32>
    %c0_189 = arith.constant 0 : index
    %c0_190 = arith.constant 0 : index
    %385 = vector.load %arg11[%c0_189, %c0_190] : memref<8x128xf32, #tpu.memory_space<vmem>>, vector<8x128xf32>
    %cst_191 = arith.constant dense<0.000000e+00> : vector<8x512xf32>
    %386 = tpu.matmul %385, %313, %cst_191 {dimension_numbers = #tpu.dot_dimension_numbers<[1], [0], [0], [1], [0, 0, 1, 1], [], []>} : vector<8x128xf32>, vector<128x512xf32>, vector<8x512xf32> -> vector<8x512xf32>
    %387 = arith.addf %384, %386 : vector<8x512xf32>
    %388 = vector.extract_strided_slice %387 {offsets = [0, 0], sizes = [8, 128], strides = [1, 1]} : vector<8x512xf32> to vector<8x128xf32>
    %389 = arith.negf %388 : vector<8x128xf32>
    %390 = math.exp %389 : vector<8x128xf32>
    %cst_192 = arith.constant 1.000000e+00 : f32
    %391 = vector.broadcast %cst_192 : f32 to vector<8x128xf32>
    %392 = arith.addf %391, %390 : vector<8x128xf32>
    %393 = arith.divf %391, %392 : vector<8x128xf32>
    %394 = vector.extract_strided_slice %387 {offsets = [0, 128], sizes = [8, 128], strides = [1, 1]} : vector<8x512xf32> to vector<8x128xf32>
    %395 = arith.negf %394 : vector<8x128xf32>
    %396 = math.exp %395 : vector<8x128xf32>
    %cst_193 = arith.constant 1.000000e+00 : f32
    %397 = vector.broadcast %cst_193 : f32 to vector<8x128xf32>
    %398 = arith.addf %397, %396 : vector<8x128xf32>
    %399 = arith.divf %397, %398 : vector<8x128xf32>
    %400 = vector.extract_strided_slice %387 {offsets = [0, 256], sizes = [8, 128], strides = [1, 1]} : vector<8x512xf32> to vector<8x128xf32>
    %401 = math.tanh %400 : vector<8x128xf32>
    %402 = vector.extract_strided_slice %387 {offsets = [0, 384], sizes = [8, 128], strides = [1, 1]} : vector<8x512xf32> to vector<8x128xf32>
    %403 = arith.negf %402 : vector<8x128xf32>
    %404 = math.exp %403 : vector<8x128xf32>
    %cst_194 = arith.constant 1.000000e+00 : f32
    %405 = vector.broadcast %cst_194 : f32 to vector<8x128xf32>
    %406 = arith.addf %405, %404 : vector<8x128xf32>
    %407 = arith.divf %405, %406 : vector<8x128xf32>
    %c0_195 = arith.constant 0 : index
    %c0_196 = arith.constant 0 : index
    %408 = vector.load %arg12[%c0_195, %c0_196] : memref<8x128xf32, #tpu.memory_space<vmem>>, vector<8x128xf32>
    %409 = arith.mulf %399, %408 : vector<8x128xf32>
    %410 = arith.mulf %393, %401 : vector<8x128xf32>
    %411 = arith.addf %409, %410 : vector<8x128xf32>
    %412 = math.tanh %411 : vector<8x128xf32>
    %413 = arith.mulf %407, %412 : vector<8x128xf32>
    %c0_197 = arith.constant 0 : index
    %c0_198 = arith.constant 0 : index
    %414 = vector.load %arg12[%c0_197, %c0_198] : memref<8x128xf32, #tpu.memory_space<vmem>>, vector<8x128xf32>
    tpu.vector_store %arg12[%c0_197, %c0_198], %411 {strides = array<i32>} : memref<8x128xf32, #tpu.memory_space<vmem>>, vector<8x128xf32>,
    %c0_199 = arith.constant 0 : index
    %c0_200 = arith.constant 0 : index
    %415 = vector.load %arg11[%c0_199, %c0_200] : memref<8x128xf32, #tpu.memory_space<vmem>>, vector<8x128xf32>
    tpu.vector_store %arg11[%c0_199, %c0_200], %413 {strides = array<i32>} : memref<8x128xf32, #tpu.memory_space<vmem>>, vector<8x128xf32>,
    %c3_i32_201 = arith.constant 3 : i32
    %c8_i32_202 = arith.constant 8 : i32
    %416 = arith.muli %c3_i32_201, %c8_i32_202 : i32
    %417 = arith.index_cast %416 : i32 to index
    %c0_203 = arith.constant 0 : index
    %418 = vector.load %arg10[%417, %c0_203] : memref<64x512xf32, #tpu.memory_space<vmem>>, vector<8x512xf32>
    %c0_204 = arith.constant 0 : index
    %c0_205 = arith.constant 0 : index
    %419 = vector.load %arg11[%c0_204, %c0_205] : memref<8x128xf32, #tpu.memory_space<vmem>>, vector<8x128xf32>
    %cst_206 = arith.constant dense<0.000000e+00> : vector<8x512xf32>
    %420 = tpu.matmul %419, %313, %cst_206 {dimension_numbers = #tpu.dot_dimension_numbers<[1], [0], [0], [1], [0, 0, 1, 1], [], []>} : vector<8x128xf32>, vector<128x512xf32>, vector<8x512xf32> -> vector<8x512xf32>
    %421 = arith.addf %418, %420 : vector<8x512xf32>
    %422 = vector.extract_strided_slice %421 {offsets = [0, 0], sizes = [8, 128], strides = [1, 1]} : vector<8x512xf32> to vector<8x128xf32>
    %423 = arith.negf %422 : vector<8x128xf32>
    %424 = math.exp %423 : vector<8x128xf32>
    %cst_207 = arith.constant 1.000000e+00 : f32
    %425 = vector.broadcast %cst_207 : f32 to vector<8x128xf32>
    %426 = arith.addf %425, %424 : vector<8x128xf32>
    %427 = arith.divf %425, %426 : vector<8x128xf32>
    %428 = vector.extract_strided_slice %421 {offsets = [0, 128], sizes = [8, 128], strides = [1, 1]} : vector<8x512xf32> to vector<8x128xf32>
    %429 = arith.negf %428 : vector<8x128xf32>
    %430 = math.exp %429 : vector<8x128xf32>
    %cst_208 = arith.constant 1.000000e+00 : f32
    %431 = vector.broadcast %cst_208 : f32 to vector<8x128xf32>
    %432 = arith.addf %431, %430 : vector<8x128xf32>
    %433 = arith.divf %431, %432 : vector<8x128xf32>
    %434 = vector.extract_strided_slice %421 {offsets = [0, 256], sizes = [8, 128], strides = [1, 1]} : vector<8x512xf32> to vector<8x128xf32>
    %435 = math.tanh %434 : vector<8x128xf32>
    %436 = vector.extract_strided_slice %421 {offsets = [0, 384], sizes = [8, 128], strides = [1, 1]} : vector<8x512xf32> to vector<8x128xf32>
    %437 = arith.negf %436 : vector<8x128xf32>
    %438 = math.exp %437 : vector<8x128xf32>
    %cst_209 = arith.constant 1.000000e+00 : f32
    %439 = vector.broadcast %cst_209 : f32 to vector<8x128xf32>
    %440 = arith.addf %439, %438 : vector<8x128xf32>
    %441 = arith.divf %439, %440 : vector<8x128xf32>
    %c0_210 = arith.constant 0 : index
    %c0_211 = arith.constant 0 : index
    %442 = vector.load %arg12[%c0_210, %c0_211] : memref<8x128xf32, #tpu.memory_space<vmem>>, vector<8x128xf32>
    %443 = arith.mulf %433, %442 : vector<8x128xf32>
    %444 = arith.mulf %427, %435 : vector<8x128xf32>
    %445 = arith.addf %443, %444 : vector<8x128xf32>
    %446 = math.tanh %445 : vector<8x128xf32>
    %447 = arith.mulf %441, %446 : vector<8x128xf32>
    %c0_212 = arith.constant 0 : index
    %c0_213 = arith.constant 0 : index
    %448 = vector.load %arg12[%c0_212, %c0_213] : memref<8x128xf32, #tpu.memory_space<vmem>>, vector<8x128xf32>
    tpu.vector_store %arg12[%c0_212, %c0_213], %445 {strides = array<i32>} : memref<8x128xf32, #tpu.memory_space<vmem>>, vector<8x128xf32>,
    %c0_214 = arith.constant 0 : index
    %c0_215 = arith.constant 0 : index
    %449 = vector.load %arg11[%c0_214, %c0_215] : memref<8x128xf32, #tpu.memory_space<vmem>>, vector<8x128xf32>
    tpu.vector_store %arg11[%c0_214, %c0_215], %447 {strides = array<i32>} : memref<8x128xf32, #tpu.memory_space<vmem>>, vector<8x128xf32>,
    %c4_i32_216 = arith.constant 4 : i32
    %c8_i32_217 = arith.constant 8 : i32
    %450 = arith.muli %c4_i32_216, %c8_i32_217 : i32
    %451 = arith.index_cast %450 : i32 to index
    %c0_218 = arith.constant 0 : index
    %452 = vector.load %arg10[%451, %c0_218] : memref<64x512xf32, #tpu.memory_space<vmem>>, vector<8x512xf32>
    %c0_219 = arith.constant 0 : index
    %c0_220 = arith.constant 0 : index
    %453 = vector.load %arg11[%c0_219, %c0_220] : memref<8x128xf32, #tpu.memory_space<vmem>>, vector<8x128xf32>
    %cst_221 = arith.constant dense<0.000000e+00> : vector<8x512xf32>
    %454 = tpu.matmul %453, %313, %cst_221 {dimension_numbers = #tpu.dot_dimension_numbers<[1], [0], [0], [1], [0, 0, 1, 1], [], []>} : vector<8x128xf32>, vector<128x512xf32>, vector<8x512xf32> -> vector<8x512xf32>
    %455 = arith.addf %452, %454 : vector<8x512xf32>
    %456 = vector.extract_strided_slice %455 {offsets = [0, 0], sizes = [8, 128], strides = [1, 1]} : vector<8x512xf32> to vector<8x128xf32>
    %457 = arith.negf %456 : vector<8x128xf32>
    %458 = math.exp %457 : vector<8x128xf32>
    %cst_222 = arith.constant 1.000000e+00 : f32
    %459 = vector.broadcast %cst_222 : f32 to vector<8x128xf32>
    %460 = arith.addf %459, %458 : vector<8x128xf32>
    %461 = arith.divf %459, %460 : vector<8x128xf32>
    %462 = vector.extract_strided_slice %455 {offsets = [0, 128], sizes = [8, 128], strides = [1, 1]} : vector<8x512xf32> to vector<8x128xf32>
    %463 = arith.negf %462 : vector<8x128xf32>
    %464 = math.exp %463 : vector<8x128xf32>
    %cst_223 = arith.constant 1.000000e+00 : f32
    %465 = vector.broadcast %cst_223 : f32 to vector<8x128xf32>
    %466 = arith.addf %465, %464 : vector<8x128xf32>
    %467 = arith.divf %465, %466 : vector<8x128xf32>
    %468 = vector.extract_strided_slice %455 {offsets = [0, 256], sizes = [8, 128], strides = [1, 1]} : vector<8x512xf32> to vector<8x128xf32>
    %469 = math.tanh %468 : vector<8x128xf32>
    %470 = vector.extract_strided_slice %455 {offsets = [0, 384], sizes = [8, 128], strides = [1, 1]} : vector<8x512xf32> to vector<8x128xf32>
    %471 = arith.negf %470 : vector<8x128xf32>
    %472 = math.exp %471 : vector<8x128xf32>
    %cst_224 = arith.constant 1.000000e+00 : f32
    %473 = vector.broadcast %cst_224 : f32 to vector<8x128xf32>
    %474 = arith.addf %473, %472 : vector<8x128xf32>
    %475 = arith.divf %473, %474 : vector<8x128xf32>
    %c0_225 = arith.constant 0 : index
    %c0_226 = arith.constant 0 : index
    %476 = vector.load %arg12[%c0_225, %c0_226] : memref<8x128xf32, #tpu.memory_space<vmem>>, vector<8x128xf32>
    %477 = arith.mulf %467, %476 : vector<8x128xf32>
    %478 = arith.mulf %461, %469 : vector<8x128xf32>
    %479 = arith.addf %477, %478 : vector<8x128xf32>
    %480 = math.tanh %479 : vector<8x128xf32>
    %481 = arith.mulf %475, %480 : vector<8x128xf32>
    %c0_227 = arith.constant 0 : index
    %c0_228 = arith.constant 0 : index
    %482 = vector.load %arg12[%c0_227, %c0_228] : memref<8x128xf32, #tpu.memory_space<vmem>>, vector<8x128xf32>
    tpu.vector_store %arg12[%c0_227, %c0_228], %479 {strides = array<i32>} : memref<8x128xf32, #tpu.memory_space<vmem>>, vector<8x128xf32>,
    %c0_229 = arith.constant 0 : index
    %c0_230 = arith.constant 0 : index
    %483 = vector.load %arg11[%c0_229, %c0_230] : memref<8x128xf32, #tpu.memory_space<vmem>>, vector<8x128xf32>
    tpu.vector_store %arg11[%c0_229, %c0_230], %481 {strides = array<i32>} : memref<8x128xf32, #tpu.memory_space<vmem>>, vector<8x128xf32>,
    %c5_i32_231 = arith.constant 5 : i32
    %c8_i32_232 = arith.constant 8 : i32
    %484 = arith.muli %c5_i32_231, %c8_i32_232 : i32
    %485 = arith.index_cast %484 : i32 to index
    %c0_233 = arith.constant 0 : index
    %486 = vector.load %arg10[%485, %c0_233] : memref<64x512xf32, #tpu.memory_space<vmem>>, vector<8x512xf32>
    %c0_234 = arith.constant 0 : index
    %c0_235 = arith.constant 0 : index
    %487 = vector.load %arg11[%c0_234, %c0_235] : memref<8x128xf32, #tpu.memory_space<vmem>>, vector<8x128xf32>
    %cst_236 = arith.constant dense<0.000000e+00> : vector<8x512xf32>
    %488 = tpu.matmul %487, %313, %cst_236 {dimension_numbers = #tpu.dot_dimension_numbers<[1], [0], [0], [1], [0, 0, 1, 1], [], []>} : vector<8x128xf32>, vector<128x512xf32>, vector<8x512xf32> -> vector<8x512xf32>
    %489 = arith.addf %486, %488 : vector<8x512xf32>
    %490 = vector.extract_strided_slice %489 {offsets = [0, 0], sizes = [8, 128], strides = [1, 1]} : vector<8x512xf32> to vector<8x128xf32>
    %491 = arith.negf %490 : vector<8x128xf32>
    %492 = math.exp %491 : vector<8x128xf32>
    %cst_237 = arith.constant 1.000000e+00 : f32
    %493 = vector.broadcast %cst_237 : f32 to vector<8x128xf32>
    %494 = arith.addf %493, %492 : vector<8x128xf32>
    %495 = arith.divf %493, %494 : vector<8x128xf32>
    %496 = vector.extract_strided_slice %489 {offsets = [0, 128], sizes = [8, 128], strides = [1, 1]} : vector<8x512xf32> to vector<8x128xf32>
    %497 = arith.negf %496 : vector<8x128xf32>
    %498 = math.exp %497 : vector<8x128xf32>
    %cst_238 = arith.constant 1.000000e+00 : f32
    %499 = vector.broadcast %cst_238 : f32 to vector<8x128xf32>
    %500 = arith.addf %499, %498 : vector<8x128xf32>
    %501 = arith.divf %499, %500 : vector<8x128xf32>
    %502 = vector.extract_strided_slice %489 {offsets = [0, 256], sizes = [8, 128], strides = [1, 1]} : vector<8x512xf32> to vector<8x128xf32>
    %503 = math.tanh %502 : vector<8x128xf32>
    %504 = vector.extract_strided_slice %489 {offsets = [0, 384], sizes = [8, 128], strides = [1, 1]} : vector<8x512xf32> to vector<8x128xf32>
    %505 = arith.negf %504 : vector<8x128xf32>
    %506 = math.exp %505 : vector<8x128xf32>
    %cst_239 = arith.constant 1.000000e+00 : f32
    %507 = vector.broadcast %cst_239 : f32 to vector<8x128xf32>
    %508 = arith.addf %507, %506 : vector<8x128xf32>
    %509 = arith.divf %507, %508 : vector<8x128xf32>
    %c0_240 = arith.constant 0 : index
    %c0_241 = arith.constant 0 : index
    %510 = vector.load %arg12[%c0_240, %c0_241] : memref<8x128xf32, #tpu.memory_space<vmem>>, vector<8x128xf32>
    %511 = arith.mulf %501, %510 : vector<8x128xf32>
    %512 = arith.mulf %495, %503 : vector<8x128xf32>
    %513 = arith.addf %511, %512 : vector<8x128xf32>
    %514 = math.tanh %513 : vector<8x128xf32>
    %515 = arith.mulf %509, %514 : vector<8x128xf32>
    %c0_242 = arith.constant 0 : index
    %c0_243 = arith.constant 0 : index
    %516 = vector.load %arg12[%c0_242, %c0_243] : memref<8x128xf32, #tpu.memory_space<vmem>>, vector<8x128xf32>
    tpu.vector_store %arg12[%c0_242, %c0_243], %513 {strides = array<i32>} : memref<8x128xf32, #tpu.memory_space<vmem>>, vector<8x128xf32>,
    %c0_244 = arith.constant 0 : index
    %c0_245 = arith.constant 0 : index
    %517 = vector.load %arg11[%c0_244, %c0_245] : memref<8x128xf32, #tpu.memory_space<vmem>>, vector<8x128xf32>
    tpu.vector_store %arg11[%c0_244, %c0_245], %515 {strides = array<i32>} : memref<8x128xf32, #tpu.memory_space<vmem>>, vector<8x128xf32>,
    %c6_i32_246 = arith.constant 6 : i32
    %c8_i32_247 = arith.constant 8 : i32
    %518 = arith.muli %c6_i32_246, %c8_i32_247 : i32
    %519 = arith.index_cast %518 : i32 to index
    %c0_248 = arith.constant 0 : index
    %520 = vector.load %arg10[%519, %c0_248] : memref<64x512xf32, #tpu.memory_space<vmem>>, vector<8x512xf32>
    %c0_249 = arith.constant 0 : index
    %c0_250 = arith.constant 0 : index
    %521 = vector.load %arg11[%c0_249, %c0_250] : memref<8x128xf32, #tpu.memory_space<vmem>>, vector<8x128xf32>
    %cst_251 = arith.constant dense<0.000000e+00> : vector<8x512xf32>
    %522 = tpu.matmul %521, %313, %cst_251 {dimension_numbers = #tpu.dot_dimension_numbers<[1], [0], [0], [1], [0, 0, 1, 1], [], []>} : vector<8x128xf32>, vector<128x512xf32>, vector<8x512xf32> -> vector<8x512xf32>
    %523 = arith.addf %520, %522 : vector<8x512xf32>
    %524 = vector.extract_strided_slice %523 {offsets = [0, 0], sizes = [8, 128], strides = [1, 1]} : vector<8x512xf32> to vector<8x128xf32>
    %525 = arith.negf %524 : vector<8x128xf32>
    %526 = math.exp %525 : vector<8x128xf32>
    %cst_252 = arith.constant 1.000000e+00 : f32
    %527 = vector.broadcast %cst_252 : f32 to vector<8x128xf32>
    %528 = arith.addf %527, %526 : vector<8x128xf32>
    %529 = arith.divf %527, %528 : vector<8x128xf32>
    %530 = vector.extract_strided_slice %523 {offsets = [0, 128], sizes = [8, 128], strides = [1, 1]} : vector<8x512xf32> to vector<8x128xf32>
    %531 = arith.negf %530 : vector<8x128xf32>
    %532 = math.exp %531 : vector<8x128xf32>
    %cst_253 = arith.constant 1.000000e+00 : f32
    %533 = vector.broadcast %cst_253 : f32 to vector<8x128xf32>
    %534 = arith.addf %533, %532 : vector<8x128xf32>
    %535 = arith.divf %533, %534 : vector<8x128xf32>
    %536 = vector.extract_strided_slice %523 {offsets = [0, 256], sizes = [8, 128], strides = [1, 1]} : vector<8x512xf32> to vector<8x128xf32>
    %537 = math.tanh %536 : vector<8x128xf32>
    %538 = vector.extract_strided_slice %523 {offsets = [0, 384], sizes = [8, 128], strides = [1, 1]} : vector<8x512xf32> to vector<8x128xf32>
    %539 = arith.negf %538 : vector<8x128xf32>
    %540 = math.exp %539 : vector<8x128xf32>
    %cst_254 = arith.constant 1.000000e+00 : f32
    %541 = vector.broadcast %cst_254 : f32 to vector<8x128xf32>
    %542 = arith.addf %541, %540 : vector<8x128xf32>
    %543 = arith.divf %541, %542 : vector<8x128xf32>
    %c0_255 = arith.constant 0 : index
    %c0_256 = arith.constant 0 : index
    %544 = vector.load %arg12[%c0_255, %c0_256] : memref<8x128xf32, #tpu.memory_space<vmem>>, vector<8x128xf32>
    %545 = arith.mulf %535, %544 : vector<8x128xf32>
    %546 = arith.mulf %529, %537 : vector<8x128xf32>
    %547 = arith.addf %545, %546 : vector<8x128xf32>
    %548 = math.tanh %547 : vector<8x128xf32>
    %549 = arith.mulf %543, %548 : vector<8x128xf32>
    %c0_257 = arith.constant 0 : index
    %c0_258 = arith.constant 0 : index
    %550 = vector.load %arg12[%c0_257, %c0_258] : memref<8x128xf32, #tpu.memory_space<vmem>>, vector<8x128xf32>
    tpu.vector_store %arg12[%c0_257, %c0_258], %547 {strides = array<i32>} : memref<8x128xf32, #tpu.memory_space<vmem>>, vector<8x128xf32>,
    %c0_259 = arith.constant 0 : index
    %c0_260 = arith.constant 0 : index
    %551 = vector.load %arg11[%c0_259, %c0_260] : memref<8x128xf32, #tpu.memory_space<vmem>>, vector<8x128xf32>
    tpu.vector_store %arg11[%c0_259, %c0_260], %549 {strides = array<i32>} : memref<8x128xf32, #tpu.memory_space<vmem>>, vector<8x128xf32>,
    %c7_i32_261 = arith.constant 7 : i32
    %c8_i32_262 = arith.constant 8 : i32
    %552 = arith.muli %c7_i32_261, %c8_i32_262 : i32
    %553 = arith.index_cast %552 : i32 to index
    %c0_263 = arith.constant 0 : index
    %554 = vector.load %arg10[%553, %c0_263] : memref<64x512xf32, #tpu.memory_space<vmem>>, vector<8x512xf32>
    %c0_264 = arith.constant 0 : index
    %c0_265 = arith.constant 0 : index
    %555 = vector.load %arg11[%c0_264, %c0_265] : memref<8x128xf32, #tpu.memory_space<vmem>>, vector<8x128xf32>
    %cst_266 = arith.constant dense<0.000000e+00> : vector<8x512xf32>
    %556 = tpu.matmul %555, %313, %cst_266 {dimension_numbers = #tpu.dot_dimension_numbers<[1], [0], [0], [1], [0, 0, 1, 1], [], []>} : vector<8x128xf32>, vector<128x512xf32>, vector<8x512xf32> -> vector<8x512xf32>
    %557 = arith.addf %554, %556 : vector<8x512xf32>
    %558 = vector.extract_strided_slice %557 {offsets = [0, 0], sizes = [8, 128], strides = [1, 1]} : vector<8x512xf32> to vector<8x128xf32>
    %559 = arith.negf %558 : vector<8x128xf32>
    %560 = math.exp %559 : vector<8x128xf32>
    %cst_267 = arith.constant 1.000000e+00 : f32
    %561 = vector.broadcast %cst_267 : f32 to vector<8x128xf32>
    %562 = arith.addf %561, %560 : vector<8x128xf32>
    %563 = arith.divf %561, %562 : vector<8x128xf32>
    %564 = vector.extract_strided_slice %557 {offsets = [0, 128], sizes = [8, 128], strides = [1, 1]} : vector<8x512xf32> to vector<8x128xf32>
    %565 = arith.negf %564 : vector<8x128xf32>
    %566 = math.exp %565 : vector<8x128xf32>
    %cst_268 = arith.constant 1.000000e+00 : f32
    %567 = vector.broadcast %cst_268 : f32 to vector<8x128xf32>
    %568 = arith.addf %567, %566 : vector<8x128xf32>
    %569 = arith.divf %567, %568 : vector<8x128xf32>
    %570 = vector.extract_strided_slice %557 {offsets = [0, 256], sizes = [8, 128], strides = [1, 1]} : vector<8x512xf32> to vector<8x128xf32>
    %571 = math.tanh %570 : vector<8x128xf32>
    %572 = vector.extract_strided_slice %557 {offsets = [0, 384], sizes = [8, 128], strides = [1, 1]} : vector<8x512xf32> to vector<8x128xf32>
    %573 = arith.negf %572 : vector<8x128xf32>
    %574 = math.exp %573 : vector<8x128xf32>
    %cst_269 = arith.constant 1.000000e+00 : f32
    %575 = vector.broadcast %cst_269 : f32 to vector<8x128xf32>
    %576 = arith.addf %575, %574 : vector<8x128xf32>
    %577 = arith.divf %575, %576 : vector<8x128xf32>
    %c0_270 = arith.constant 0 : index
    %c0_271 = arith.constant 0 : index
    %578 = vector.load %arg12[%c0_270, %c0_271] : memref<8x128xf32, #tpu.memory_space<vmem>>, vector<8x128xf32>
    %579 = arith.mulf %569, %578 : vector<8x128xf32>
    %580 = arith.mulf %563, %571 : vector<8x128xf32>
    %581 = arith.addf %579, %580 : vector<8x128xf32>
    %582 = math.tanh %581 : vector<8x128xf32>
    %583 = arith.mulf %577, %582 : vector<8x128xf32>
    %c0_272 = arith.constant 0 : index
    %c0_273 = arith.constant 0 : index
    %584 = vector.load %arg12[%c0_272, %c0_273] : memref<8x128xf32, #tpu.memory_space<vmem>>, vector<8x128xf32>
    tpu.vector_store %arg12[%c0_272, %c0_273], %581 {strides = array<i32>} : memref<8x128xf32, #tpu.memory_space<vmem>>, vector<8x128xf32>,
    %c0_274 = arith.constant 0 : index
    %c0_275 = arith.constant 0 : index
    %585 = vector.load %arg11[%c0_274, %c0_275] : memref<8x128xf32, #tpu.memory_space<vmem>>, vector<8x128xf32>
    tpu.vector_store %arg11[%c0_274, %c0_275], %583 {strides = array<i32>} : memref<8x128xf32, #tpu.memory_space<vmem>>, vector<8x128xf32>,
    %c8_i32_276 = arith.constant 8 : i32
    %c0_277 = arith.constant 0 : index
    %c0_278 = arith.constant 0 : index
    %586 = vector.load %arg11[%c0_277, %c0_278] : memref<8x128xf32, #tpu.memory_space<vmem>>, vector<8x128xf32>
    %c8 = arith.constant 8 : index
    %c0_279 = arith.constant 0 : index
    %587 = vector.load %arg13[%c8, %c0_279] : memref<16x128xf32, #tpu.memory_space<vmem>>, vector<8x128xf32>
    tpu.vector_store %arg13[%c8, %c0_279], %586 {strides = array<i32>} : memref<16x128xf32, #tpu.memory_space<vmem>>, vector<8x128xf32>,
    %c0_280 = arith.constant 0 : index
    %c0_281 = arith.constant 0 : index
    %588 = vector.load %arg13[%c0_280, %c0_281] : memref<16x128xf32, #tpu.memory_space<vmem>>, vector<16x128xf32>
    %c0_282 = arith.constant 0 : index
    %c0_283 = arith.constant 0 : index
    %589 = vector.load %arg7[%c0_282, %c0_283] : memref<128x128xf32, #tpu.memory_space<vmem>>, vector<128x128xf32>
    %cst_284 = arith.constant dense<0.000000e+00> : vector<16x128xf32>
    %590 = tpu.matmul %588, %589, %cst_284 {dimension_numbers = #tpu.dot_dimension_numbers<[1], [0], [0], [1], [0, 0, 1, 1], [], []>} : vector<16x128xf32>, vector<128x128xf32>, vector<16x128xf32> -> vector<16x128xf32>
    %c0_285 = arith.constant 0 : index
    %c0_286 = arith.constant 0 : index
    %591 = vector.load %arg8[%c0_285, %c0_286] : memref<1x128xf32, #tpu.memory_space<vmem>>, vector<1x128xf32>
    %592 = vector.broadcast %591 : vector<1x128xf32> to vector<16x128xf32>
    %593 = arith.addf %590, %592 : vector<16x128xf32>
    %c0_287 = arith.constant 0 : index
    %c0_288 = arith.constant 0 : index
    %594 = vector.load %arg9[%c0_287, %c0_288] : memref<16x128xf32, #tpu.memory_space<vmem>>, vector<16x128xf32>
    tpu.vector_store %arg9[%c0_287, %c0_288], %593 {strides = array<i32>} : memref<16x128xf32, #tpu.memory_space<vmem>>, vector<16x128xf32>,
    return
  }
}

</mosaic_0001>

<llo_original>
// kernel: tpu_custom_call.1
$region0: #{tpu_custom_call.1}
  #allocation0 [shape = 'u32[]', space=smem, size = 0x4, offset = 0x4, fixed_abs, tag = 'smem constant byte address 0x4 - core index']
  #allocation1 [shape = 'u32[144,128]{1,0:T(1,128)}', space=vmem, size = 0x12000, scoped, tag = 'internal scratch']
  #allocation2 [shape = 'f32[64,512]{1,0:T(8,128)}', space=vmem, size = 0x20000, scoped, tag = 'scratch operand']
  #allocation3 [shape = 'f32[8,128]{1,0:T(8,128)}', space=vmem, size = 0x1000, scoped, tag = 'scratch operand']
  #allocation4 [shape = 'f32[8,128]{1,0:T(8,128)}', space=vmem, size = 0x1000, scoped, tag = 'scratch operand']
  #allocation5 [shape = 'f32[16,128]{1,0:T(8,128)}', space=vmem, size = 0x2000, scoped, tag = 'scratch operand']
  #allocation6 [shape = 'f32[64,128]{1,0:T(8,128)}', space=vmem, size = 0x8000, scoped, tag = 'scratch operand']
  %s0 = inlined_call_operand.vmem [shape: f32[64,16], index: 0, kind: input, shape index: {}]
  %s1 = inlined_call_operand.vmem [shape: f32[16,512], index: 1, kind: input, shape index: {}]
  %s2 = inlined_call_operand.hbm [shape: f32[128,512], index: 2, kind: input, shape index: {}]
  %s3 = inlined_call_operand.vmem [shape: f32[1,512], index: 3, kind: input, shape index: {}]
  %s4 = inlined_call_operand.hbm [shape: f32[128,512], index: 4, kind: input, shape index: {}]
  %s5 = inlined_call_operand.hbm [shape: f32[128,512], index: 5, kind: input, shape index: {}]
  %s6 = inlined_call_operand.vmem [shape: f32[1,512], index: 6, kind: input, shape index: {}]
  %s7 = inlined_call_operand.hbm [shape: f32[128,128], index: 7, kind: input, shape index: {}]
  %s8 = inlined_call_operand.vmem [shape: f32[1,128], index: 8, kind: input, shape index: {}]
  %s9 = inlined_call_operand.hbm [shape: f32[16,128], index: 9, kind: output, shape index: {}]
  %s10 = sld [smem:[#allocation0]]
  $region62: #{tpu_custom_call.1} parent=0
    _
  %s12 = ssub.s32 1, %s10
  %s13 = scalar_select 0, %s12, %s10
  $region1: #{tpu_custom_call.1} parent=0
    #allocation7 [shape = 'u8[262144]{0}', space=vmem, size = 0x40000, scoped, tag = 'input window, operand 2, single buffered']
    #allocation8 [shape = 's32[1]{0}', space=sflag, size = 0x4, scoped, tag = 'scoped memory for tpu_custom_call.1']
    #allocation9 [shape = 's32[1]{0}', space=sflag, size = 0x4, scoped, tag = 'scoped memory for tpu_custom_call.1']
    #allocation10 [shape = 'u8[262144]{0}', space=vmem, size = 0x40000, scoped, tag = 'input window, operand 4, single buffered']
    #allocation11 [shape = 's32[1]{0}', space=sflag, size = 0x4, scoped, tag = 'scoped memory for tpu_custom_call.1']
    #allocation12 [shape = 'u8[262144]{0}', space=vmem, size = 0x40000, scoped, tag = 'input window, operand 5, single buffered']
    #allocation13 [shape = 'u8[65536]{0}', space=vmem, size = 0x10000, scoped, tag = 'input window, operand 7, single buffered']
    #allocation14 [shape = 's32[1]{0}', space=sflag, size = 0x4, scoped, tag = 'scoped memory for tpu_custom_call.1']
    #allocation15 [shape = 'u8[8192]{0}', space=vmem, size = 0x2000, scoped, tag = 'output window, operand 0, single buffered']
    %14 = vsyncpa [#allocation8], 0
    %15 = vsyncpa [#allocation11], 0
    %16 = vsyncpa [#allocation14], 0
    %17 = vsyncpa [#allocation9], 0
    // Predicated region
    $region2: #{tpu_custom_call.1} parent=1 // pred_check
      _
    $region3: #{tpu_custom_call.1} parent=1 // pred_check_branch
      %19 = sbr.rel (0) target = $region5
    $region4: #{tpu_custom_call.1} parent=1 // pred_region
      _
    $region5: #{tpu_custom_call.1} parent=1 // pred_fallthru
      _
    // Predicated region
    $region6: #{tpu_custom_call.1} parent=1 // pred_check
      _
    $region7: #{tpu_custom_call.1} parent=1 // pred_check_branch
      %21 = sbr.rel (0) target = $region9
    $region8: #{tpu_custom_call.1} parent=1 // pred_region
      _
    $region9: #{tpu_custom_call.1} parent=1 // pred_fallthru
      _
    // Predicated region
    $region10: #{tpu_custom_call.1} parent=1 // pred_check
      _
    $region11: #{tpu_custom_call.1} parent=1 // pred_check_branch
      %23 = sbr.rel (0) target = $region13
    $region12: #{tpu_custom_call.1} parent=1 // pred_region
      %s25 = ssub.s32 8192, 8192
      %26 = vsyncadd [#allocation8], %s25
      %s27 = sshll.u32 [#allocation7], 4
      %s28 = int_to_ptr.vmem [resolvable:$true] %s27
      %33 = dma.hbm_to_vmem [thread:$0]  %s2, 8192, %s28, [#allocation8], 512, 512, 32
    $region13: #{tpu_custom_call.1} parent=1 // pred_fallthru
      _
    // Predicated region
    $region14: #{tpu_custom_call.1} parent=1 // pred_check
      _
    $region15: #{tpu_custom_call.1} parent=1 // pred_check_branch
      %35 = sbr.rel (0) target = $region17
    $region16: #{tpu_custom_call.1} parent=1 // pred_region
      _
    $region17: #{tpu_custom_call.1} parent=1 // pred_fallthru
      _
    // Predicated region
    $region18: #{tpu_custom_call.1} parent=1 // pred_check
      _
    $region19: #{tpu_custom_call.1} parent=1 // pred_check_branch
      %37 = sbr.rel (0) target = $region21
    $region20: #{tpu_custom_call.1} parent=1 // pred_region
      %s39 = ssub.s32 8192, 8192
      %40 = vsyncadd [#allocation11], %s39
      %s41 = sshll.u32 [#allocation10], 4
      %s42 = int_to_ptr.vmem [resolvable:$true] %s41
      %47 = dma.hbm_to_vmem [thread:$0]  %s4, 8192, %s42, [#allocation11], 512, 512, 32
    $region21: #{tpu_custom_call.1} parent=1 // pred_fallthru
      _
    // Predicated region
    $region22: #{tpu_custom_call.1} parent=1 // pred_check
      _
    $region23: #{tpu_custom_call.1} parent=1 // pred_check_branch
      %49 = sbr.rel (0) target = $region25
    $region24: #{tpu_custom_call.1} parent=1 // pred_region
      %s51 = ssub.s32 8192, 8192
      %52 = vsyncadd [#allocation11], %s51
      %s53 = sshll.u32 [#allocation12], 4
      %s54 = int_to_ptr.vmem [resolvable:$true] %s53
      %59 = dma.hbm_to_vmem [thread:$0]  %s5, 8192, %s54, [#allocation11], 512, 512, 32
    $region25: #{tpu_custom_call.1} parent=1 // pred_fallthru
      _
    // Predicated region
    $region26: #{tpu_custom_call.1} parent=1 // pred_check
      _
    $region27: #{tpu_custom_call.1} parent=1 // pred_check_branch
      %61 = sbr.rel (0) target = $region29
    $region28: #{tpu_custom_call.1} parent=1 // pred_region
      _
    $region29: #{tpu_custom_call.1} parent=1 // pred_fallthru
      _
    // Predicated region
    $region30: #{tpu_custom_call.1} parent=1 // pred_check
      _
    $region31: #{tpu_custom_call.1} parent=1 // pred_check_branch
      %63 = sbr.rel (0) target = $region33
    $region32: #{tpu_custom_call.1} parent=1 // pred_region
      %s65 = ssub.s32 2048, 2048
      %66 = vsyncadd [#allocation14], %s65
      %s67 = sshll.u32 [#allocation13], 4
      %s68 = int_to_ptr.vmem [resolvable:$true] %s67
      %73 = dma.hbm_to_vmem [thread:$0]  %s7, 2048, %s68, [#allocation14], 128, 128, 8
    $region33: #{tpu_custom_call.1} parent=1 // pred_fallthru
      _
    // Predicated region
    $region34: #{tpu_custom_call.1} parent=1 // pred_check
      _
    $region35: #{tpu_custom_call.1} parent=1 // pred_check_branch
      %75 = sbr.rel (0) target = $region37
    $region36: #{tpu_custom_call.1} parent=1 // pred_region
      _
    $region37: #{tpu_custom_call.1} parent=1 // pred_fallthru
      _
    // Predicated region
    $region38: #{tpu_custom_call.1} parent=1 // pred_check
      _
    $region39: #{tpu_custom_call.1} parent=1 // pred_check_branch
      %77 = sbr.rel (0) target = $region41
    $region40: #{tpu_custom_call.1} parent=1 // pred_region
      %78 = dma.done [#allocation8], 8192
    $region41: #{tpu_custom_call.1} parent=1 // pred_fallthru
      _
    // Predicated region
    $region42: #{tpu_custom_call.1} parent=1 // pred_check
      _
    $region43: #{tpu_custom_call.1} parent=1 // pred_check_branch
      %80 = sbr.rel (0) target = $region45
    $region44: #{tpu_custom_call.1} parent=1 // pred_region
      %81 = dma.done [#allocation11], 8192
    $region45: #{tpu_custom_call.1} parent=1 // pred_fallthru
      _
    // Predicated region
    $region46: #{tpu_custom_call.1} parent=1 // pred_check
      _
    $region47: #{tpu_custom_call.1} parent=1 // pred_check_branch
      %83 = sbr.rel (0) target = $region49
    $region48: #{tpu_custom_call.1} parent=1 // pred_region
      %84 = dma.done [#allocation11], 8192
    $region49: #{tpu_custom_call.1} parent=1 // pred_fallthru
      _
    // Predicated region
    $region50: #{tpu_custom_call.1} parent=1 // pred_check
      _
    $region51: #{tpu_custom_call.1} parent=1 // pred_check_branch
      %86 = sbr.rel (0) target = $region53
    $region52: #{tpu_custom_call.1} parent=1 // pred_region
      %87 = dma.done [#allocation14], 2048
    $region53: #{tpu_custom_call.1} parent=1 // pred_fallthru
      _
    %v88 = vld [vmem:[%s0] sm:$0xff]
    %v89 = vld [vmem:[%s0 + $0x8] sm:$0xff]
    %v90 = vld [vmem:[%s0 + $0x10] sm:$0xff]
    %v91 = vld [vmem:[%s0 + $0x18] sm:$0xff]
    %v92 = vld [vmem:[%s0 + $0x20] sm:$0xff]
    %v93 = vld [vmem:[%s0 + $0x28] sm:$0xff]
    %v94 = vld [vmem:[%s0 + $0x30] sm:$0xff]
    %v95 = vld [vmem:[%s0 + $0x38] sm:$0xff]
    %v96 = vld [vmem:[%s1] sm:$0xff]
    %v97 = vld [vmem:[%s1 + $0x8] sm:$0xff]
    %v98 = vld [vmem:[%s1 + $0x10] sm:$0xff]
    %v99 = vld [vmem:[%s1 + $0x18] sm:$0xff]
    %v100 = vld [vmem:[%s1 + $0x20] sm:$0xff]
    %v101 = vld [vmem:[%s1 + $0x28] sm:$0xff]
    %v102 = vld [vmem:[%s1 + $0x30] sm:$0xff]
    %v103 = vld [vmem:[%s1 + $0x38] sm:$0xff]
    %v104 = vld [vmem:[%s3] sm:$0xf]
    %v106 = vlaneseq
    %v107 = vshrl.u32 %v106, 7
    %v108 = vsub.s32 0, %v107
    %v109 = vrot.slane %v104, %v108
    %v110 = vlaneseq
    %v111 = vshrl.u32 %v110, 7
    %v112 = vsub.s32 1, %v111
    %v113 = vrot.slane %v104, %v112
    %v114 = vlaneseq
    %v115 = vshrl.u32 %v114, 7
    %v116 = vsub.s32 2, %v115
    %v117 = vrot.slane %v104, %v116
    %v118 = vlaneseq
    %v119 = vshrl.u32 %v118, 7
    %v120 = vsub.s32 3, %v119
    %v121 = vrot.slane %v104, %v120
    %vm126 = vcmask 130048
    %v128 = vsel %vm126, %v88, 0
    %v131 = vsel %vm126, %v89, 0
    %v134 = vsel %vm126, %v90, 0
    %v137 = vsel %vm126, %v91, 0
    %v140 = vsel %vm126, %v92, 0
    %v143 = vsel %vm126, %v93, 0
    %v146 = vsel %vm126, %v94, 0
    %v149 = vsel %vm126, %v95, 0
    %151 = vmatprep.subr.mxu0 %v97
    %152 = vmatpush1.msra.mxu0 %v96
    %153 = vmatprep.subr.mxu0 %v101
    %154 = vmatpush1.msra.mxu0 %v100
    %155 = vmatprep.subr.mxu0 0.0
    %156 = vmatpush1.msra.mxu0 0.0
    %157 = vmatprep.subr.mxu0 0.0
    %158 = vmatpush1.msra.mxu0 0.0
    %159 = vmatprep.subr.mxu0 0.0
    %160 = vmatpush1.msra.mxu0 0.0
    %161 = vmatprep.subr.mxu0 0.0
    %162 = vmatpush1.msra.mxu0 0.0
    %163 = vmatprep.subr.mxu0 0.0
    %164 = vmatpush1.msra.mxu0 0.0
    %165 = vmatprep.subr.mxu0 0.0
    %166 = vmatpush1.msra.mxu0 0.0
    %167 = vmatprep.subr.mxu0 0.0
    %168 = vmatpush1.msra.mxu0 0.0
    %169 = vmatprep.subr.mxu0 0.0
    %170 = vmatpush1.msra.mxu0 0.0
    %171 = vmatprep.subr.mxu0 0.0
    %172 = vmatpush1.msra.mxu0 0.0
    %173 = vmatprep.subr.mxu0 0.0
    %174 = vmatpush1.msra.mxu0 0.0
    %175 = vmatprep.subr.mxu0 0.0
    %176 = vmatpush1.msra.mxu0 0.0
    %177 = vmatprep.subr.mxu0 0.0
    %178 = vmatpush1.msra.mxu0 0.0
    %179 = vmatprep.subr.mxu0 0.0
    %180 = vmatpush1.msra.mxu0 0.0
    %181 = vmatprep.subr.mxu0 0.0
    %182 = vmatpush1.msra.mxu0 0.0
    %183 = vmatprep.subr.mxu0 0.0
    %184 = vmatpush1.msra.mxu0 0.0
    %185 = vmatprep.subr.mxu0 0.0
    %186 = vmatpush1.msra.mxu0 0.0
    %187 = vmatprep.subr.mxu0 0.0
    %188 = vmatpush1.msra.mxu0 0.0
    %189 = vmatprep.subr.mxu0 0.0
    %190 = vmatpush1.msra.mxu0 0.0
    %191 = vmatprep.subr.mxu0 0.0
    %192 = vmatpush1.msra.mxu0 0.0
    %193 = vmatprep.subr.mxu0 0.0
    %194 = vmatpush1.msra.mxu0 0.0
    %195 = vmatprep.subr.mxu0 0.0
    %196 = vmatpush1.msra.mxu0 0.0
    %197 = vmatprep.subr.mxu0 0.0
    %198 = vmatpush1.msra.mxu0 0.0
    %199 = vmatprep.subr.mxu0 0.0
    %200 = vmatpush1.msra.mxu0 0.0
    %201 = vmatprep.subr.mxu0 0.0
    %202 = vmatpush1.msra.mxu0 0.0
    %203 = vmatprep.subr.mxu0 0.0
    %204 = vmatpush1.msra.mxu0 0.0
    %205 = vmatprep.subr.mxu0 0.0
    %206 = vmatpush1.msra.mxu0 0.0
    %207 = vmatprep.subr.mxu0 0.0
    %208 = vmatpush1.msra.mxu0 0.0
    %209 = vmatprep.subr.mxu0 0.0
    %210 = vmatpush1.msra.mxu0 0.0
    %211 = vmatprep.subr.mxu0 0.0
    %212 = vmatpush1.msra.mxu0 0.0
    %213 = vmatprep.subr.mxu0 0.0
    %214 = vmatpush1.msra.mxu0 0.0
    %215 = vmatprep.mubr.f32.mxu0 0.0
    %216 = vmatmul.mubr.f32.gmra.mrb[0].mxu0 %v128
    %v217 = vpop.f32.mrb[0].mxu0
    %v218 = vadd.f32 %v109, %v217
    %v219 = vpop.f32.mrb[0].mxu0
    %v220 = vadd.f32 %v113, %v219
    %221 = vmatprep.mubr.f32.mxu0 0.0
    %222 = vmatmul.mubr.f32.gmra.mrb[0].mxu0 %v131
    %v223 = vpop.f32.mrb[0].mxu0
    %v224 = vadd.f32 %v109, %v223
    %v225 = vpop.f32.mrb[0].mxu0
    %v226 = vadd.f32 %v113, %v225
    %227 = vmatprep.mubr.f32.mxu0 0.0
    %228 = vmatmul.mubr.f32.gmra.mrb[0].mxu0 %v134
    %v229 = vpop.f32.mrb[0].mxu0
    %v230 = vadd.f32 %v109, %v229
    %v231 = vpop.f32.mrb[0].mxu0
    %v232 = vadd.f32 %v113, %v231
    %233 = vmatprep.mubr.f32.mxu0 0.0
    %234 = vmatmul.mubr.f32.gmra.mrb[0].mxu0 %v137
    %v235 = vpop.f32.mrb[0].mxu0
    %v236 = vadd.f32 %v109, %v235
    %v237 = vpop.f32.mrb[0].mxu0
    %v238 = vadd.f32 %v113, %v237
    %239 = vmatprep.mubr.f32.mxu0 0.0
    %240 = vmatmul.mubr.f32.gmra.mrb[0].mxu0 %v140
    %v241 = vpop.f32.mrb[0].mxu0
    %v242 = vadd.f32 %v109, %v241
    %v243 = vpop.f32.mrb[0].mxu0
    %v244 = vadd.f32 %v113, %v243
    %245 = vmatprep.mubr.f32.mxu0 0.0
    %246 = vmatmul.mubr.f32.gmra.mrb[0].mxu0 %v143
    %v247 = vpop.f32.mrb[0].mxu0
    %v248 = vadd.f32 %v109, %v247
    %v249 = vpop.f32.mrb[0].mxu0
    %v250 = vadd.f32 %v113, %v249
    %251 = vmatprep.mubr.f32.mxu0 0.0
    %252 = vmatmul.mubr.f32.gmra.mrb[0].mxu0 %v146
    %v253 = vpop.f32.mrb[0].mxu0
    %v254 = vadd.f32 %v109, %v253
    %v255 = vpop.f32.mrb[0].mxu0
    %v256 = vadd.f32 %v113, %v255
    %257 = vmatprep.mubr.f32.mxu0 0.0
    %258 = vmatmul.mubr.f32.gmra.mrb[0].mxu0 %v149
    %v259 = vpop.f32.mrb[0].mxu0
    %v260 = vadd.f32 %v109, %v259
    %v261 = vpop.f32.mrb[0].mxu0
    %v262 = vadd.f32 %v113, %v261
    %263 = vdwg.mxu0
    %264 = vmatprep.subr.mxu0 %v99
    %265 = vmatpush1.msra.mxu0 %v98
    %266 = vmatprep.subr.mxu0 %v103
    %267 = vmatpush1.msra.mxu0 %v102
    %268 = vmatprep.subr.mxu0 0.0
    %269 = vmatpush1.msra.mxu0 0.0
    %270 = vmatprep.subr.mxu0 0.0
    %271 = vmatpush1.msra.mxu0 0.0
    %272 = vmatprep.subr.mxu0 0.0
    %273 = vmatpush1.msra.mxu0 0.0
    %274 = vmatprep.subr.mxu0 0.0
    %275 = vmatpush1.msra.mxu0 0.0
    %276 = vmatprep.subr.mxu0 0.0
    %277 = vmatpush1.msra.mxu0 0.0
    %278 = vmatprep.subr.mxu0 0.0
    %279 = vmatpush1.msra.mxu0 0.0
    %280 = vmatprep.subr.mxu0 0.0
    %281 = vmatpush1.msra.mxu0 0.0
    %282 = vmatprep.subr.mxu0 0.0
    %283 = vmatpush1.msra.mxu0 0.0
    %284 = vmatprep.subr.mxu0 0.0
    %285 = vmatpush1.msra.mxu0 0.0
    %286 = vmatprep.subr.mxu0 0.0
    %287 = vmatpush1.msra.mxu0 0.0
    %288 = vmatprep.subr.mxu0 0.0
    %289 = vmatpush1.msra.mxu0 0.0
    %290 = vmatprep.subr.mxu0 0.0
    %291 = vmatpush1.msra.mxu0 0.0
    %292 = vmatprep.subr.mxu0 0.0
    %293 = vmatpush1.msra.mxu0 0.0
    %294 = vmatprep.subr.mxu0 0.0
    %295 = vmatpush1.msra.mxu0 0.0
    %296 = vmatprep.subr.mxu0 0.0
    %297 = vmatpush1.msra.mxu0 0.0
    %298 = vmatprep.subr.mxu0 0.0
    %299 = vmatpush1.msra.mxu0 0.0
    %300 = vmatprep.subr.mxu0 0.0
    %301 = vmatpush1.msra.mxu0 0.0
    %302 = vmatprep.subr.mxu0 0.0
    %303 = vmatpush1.msra.mxu0 0.0
    %304 = vmatprep.subr.mxu0 0.0
    %305 = vmatpush1.msra.mxu0 0.0
    %306 = vmatprep.subr.mxu0 0.0
    %307 = vmatpush1.msra.mxu0 0.0
    %308 = vmatprep.subr.mxu0 0.0
    %309 = vmatpush1.msra.mxu0 0.0
    %310 = vmatprep.subr.mxu0 0.0
    %311 = vmatpush1.msra.mxu0 0.0
    %312 = vmatprep.subr.mxu0 0.0
    %313 = vmatpush1.msra.mxu0 0.0
    %314 = vmatprep.subr.mxu0 0.0
    %315 = vmatpush1.msra.mxu0 0.0
    %316 = vmatprep.subr.mxu0 0.0
    %317 = vmatpush1.msra.mxu0 0.0
    %318 = vmatprep.subr.mxu0 0.0
    %319 = vmatpush1.msra.mxu0 0.0
    %320 = vmatprep.subr.mxu0 0.0
    %321 = vmatpush1.msra.mxu0 0.0
    %322 = vmatprep.subr.mxu0 0.0
    %323 = vmatpush1.msra.mxu0 0.0
    %324 = vmatprep.subr.mxu0 0.0
    %325 = vmatpush1.msra.mxu0 0.0
    %326 = vmatprep.subr.mxu0 0.0
    %327 = vmatpush1.msra.mxu0 0.0
    %328 = vmatprep.mubr.f32.mxu0 0.0
    %329 = vmatmul.mubr.f32.gmra.mrb[0].mxu0 %v128
    %v330 = vpop.f32.mrb[0].mxu0
    %v331 = vadd.f32 %v117, %v330
    %v332 = vpop.f32.mrb[0].mxu0
    %v333 = vadd.f32 %v121, %v332
    %334 = vmatprep.mubr.f32.mxu0 0.0
    %335 = vmatmul.mubr.f32.gmra.mrb[0].mxu0 %v131
    %v336 = vpop.f32.mrb[0].mxu0
    %v337 = vadd.f32 %v117, %v336
    %v338 = vpop.f32.mrb[0].mxu0
    %v339 = vadd.f32 %v121, %v338
    %340 = vmatprep.mubr.f32.mxu0 0.0
    %341 = vmatmul.mubr.f32.gmra.mrb[0].mxu0 %v134
    %v342 = vpop.f32.mrb[0].mxu0
    %v343 = vadd.f32 %v117, %v342
    %v344 = vpop.f32.mrb[0].mxu0
    %v345 = vadd.f32 %v121, %v344
    %346 = vmatprep.mubr.f32.mxu0 0.0
    %347 = vmatmul.mubr.f32.gmra.mrb[0].mxu0 %v137
    %v348 = vpop.f32.mrb[0].mxu0
    %v349 = vadd.f32 %v117, %v348
    %v350 = vpop.f32.mrb[0].mxu0
    %v351 = vadd.f32 %v121, %v350
    %352 = vmatprep.mubr.f32.mxu0 0.0
    %353 = vmatmul.mubr.f32.gmra.mrb[0].mxu0 %v140
    %v354 = vpop.f32.mrb[0].mxu0
    %v355 = vadd.f32 %v117, %v354
    %v356 = vpop.f32.mrb[0].mxu0
    %v357 = vadd.f32 %v121, %v356
    %358 = vmatprep.mubr.f32.mxu0 0.0
    %359 = vmatmul.mubr.f32.gmra.mrb[0].mxu0 %v143
    %v360 = vpop.f32.mrb[0].mxu0
    %v361 = vadd.f32 %v117, %v360
    %v362 = vpop.f32.mrb[0].mxu0
    %v363 = vadd.f32 %v121, %v362
    %364 = vmatprep.mubr.f32.mxu0 0.0
    %365 = vmatmul.mubr.f32.gmra.mrb[0].mxu0 %v146
    %v366 = vpop.f32.mrb[0].mxu0
    %v367 = vadd.f32 %v117, %v366
    %v368 = vpop.f32.mrb[0].mxu0
    %v369 = vadd.f32 %v121, %v368
    %370 = vmatprep.mubr.f32.mxu0 0.0
    %371 = vmatmul.mubr.f32.gmra.mrb[0].mxu0 %v149
    %v372 = vpop.f32.mrb[0].mxu0
    %v373 = vadd.f32 %v117, %v372
    %v374 = vpop.f32.mrb[0].mxu0
    %v375 = vadd.f32 %v121, %v374
    %376 = vdwg.mxu0
    %377 = vst [vmem:[#allocation2] sm:$0xff] %v218
    %378 = vst [vmem:[#allocation2 + $0x8] sm:$0xff] %v220
    %379 = vst [vmem:[#allocation2 + $0x10] sm:$0xff] %v331
    %380 = vst [vmem:[#allocation2 + $0x18] sm:$0xff] %v333
    %381 = vst [vmem:[#allocation2 + $0x20] sm:$0xff] %v224
    %382 = vst [vmem:[#allocation2 + $0x28] sm:$0xff] %v226
    %383 = vst [vmem:[#allocation2 + $0x30] sm:$0xff] %v337
    %384 = vst [vmem:[#allocation2 + $0x38] sm:$0xff] %v339
    %385 = vst [vmem:[#allocation2 + $0x40] sm:$0xff] %v230
    %386 = vst [vmem:[#allocation2 + $0x48] sm:$0xff] %v232
    %387 = vst [vmem:[#allocation2 + $0x50] sm:$0xff] %v343
    %388 = vst [vmem:[#allocation2 + $0x58] sm:$0xff] %v345
    %389 = vst [vmem:[#allocation2 + $0x60] sm:$0xff] %v236
    %390 = vst [vmem:[#allocation2 + $0x68] sm:$0xff] %v238
    %391 = vst [vmem:[#allocation2 + $0x70] sm:$0xff] %v349
    %392 = vst [vmem:[#allocation2 + $0x78] sm:$0xff] %v351
    %393 = vst [vmem:[#allocation2 + $0x80] sm:$0xff] %v242
    %394 = vst [vmem:[#allocation2 + $0x88] sm:$0xff] %v244
    %395 = vst [vmem:[#allocation2 + $0x90] sm:$0xff] %v355
    %396 = vst [vmem:[#allocation2 + $0x98] sm:$0xff] %v357
    %397 = vst [vmem:[#allocation2 + $0xa0] sm:$0xff] %v248
    %398 = vst [vmem:[#allocation2 + $0xa8] sm:$0xff] %v250
    %399 = vst [vmem:[#allocation2 + $0xb0] sm:$0xff] %v361
    %400 = vst [vmem:[#allocation2 + $0xb8] sm:$0xff] %v363
    %401 = vst [vmem:[#allocation2 + $0xc0] sm:$0xff] %v254
    %402 = vst [vmem:[#allocation2 + $0xc8] sm:$0xff] %v256
    %403 = vst [vmem:[#allocation2 + $0xd0] sm:$0xff] %v367
    %404 = vst [vmem:[#allocation2 + $0xd8] sm:$0xff] %v369
    %405 = vst [vmem:[#allocation2 + $0xe0] sm:$0xff] %v260
    %406 = vst [vmem:[#allocation2 + $0xe8] sm:$0xff] %v262
    %407 = vst [vmem:[#allocation2 + $0xf0] sm:$0xff] %v373
    %408 = vst [vmem:[#allocation2 + $0xf8] sm:$0xff] %v375
    %409 = vst [vmem:[#allocation3] sm:$0xff] 0.0
    %410 = vst [vmem:[#allocation4] sm:$0xff] 0.0
    %v411 = vld [vmem:[#allocation7] sm:$0xff]
    %v412 = vld [vmem:[#allocation7 + $0x8] sm:$0xff]
    %v413 = vld [vmem:[#allocation7 + $0x10] sm:$0xff]
    %v414 = vld [vmem:[#allocation7 + $0x18] sm:$0xff]
    %v415 = vld [vmem:[#allocation7 + $0x20] sm:$0xff]
    %v416 = vld [vmem:[#allocation7 + $0x28] sm:$0xff]
    %v417 = vld [vmem:[#allocation7 + $0x30] sm:$0xff]
    %v418 = vld [vmem:[#allocation7 + $0x38] sm:$0xff]
    %v419 = vld [vmem:[#allocation7 + $0x40] sm:$0xff]
    %v420 = vld [vmem:[#allocation7 + $0x48] sm:$0xff]
    %v421 = vld [vmem:[#allocation7 + $0x50] sm:$0xff]
    %v422 = vld [vmem:[#allocation7 + $0x58] sm:$0xff]
    %v423 = vld [vmem:[#allocation7 + $0x60] sm:$0xff]
    %v424 = vld [vmem:[#allocation7 + $0x68] sm:$0xff]
    %v425 = vld [vmem:[#allocation7 + $0x70] sm:$0xff]
    %v426 = vld [vmem:[#allocation7 + $0x78] sm:$0xff]
    %v427 = vld [vmem:[#allocation7 + $0x80] sm:$0xff]
    %v428 = vld [vmem:[#allocation7 + $0x88] sm:$0xff]
    %v429 = vld [vmem:[#allocation7 + $0x90] sm:$0xff]
    %v430 = vld [vmem:[#allocation7 + $0x98] sm:$0xff]
    %v431 = vld [vmem:[#allocation7 + $0xa0] sm:$0xff]
    %v432 = vld [vmem:[#allocation7 + $0xa8] sm:$0xff]
    %v433 = vld [vmem:[#allocation7 + $0xb0] sm:$0xff]
    %v434 = vld [vmem:[#allocation7 + $0xb8] sm:$0xff]
    %v435 = vld [vmem:[#allocation7 + $0xc0] sm:$0xff]
    %v436 = vld [vmem:[#allocation7 + $0xc8] sm:$0xff]
    %v437 = vld [vmem:[#allocation7 + $0xd0] sm:$0xff]
    %v438 = vld [vmem:[#allocation7 + $0xd8] sm:$0xff]
    %v439 = vld [vmem:[#allocation7 + $0xe0] sm:$0xff]
    %v440 = vld [vmem:[#allocation7 + $0xe8] sm:$0xff]
    %v441 = vld [vmem:[#allocation7 + $0xf0] sm:$0xff]
    %v442 = vld [vmem:[#allocation7 + $0xf8] sm:$0xff]
    %v443 = vld [vmem:[#allocation7 + $0x100] sm:$0xff]
    %v444 = vld [vmem:[#allocation7 + $0x108] sm:$0xff]
    %v445 = vld [vmem:[#allocation7 + $0x110] sm:$0xff]
    %v446 = vld [vmem:[#allocation7 + $0x118] sm:$0xff]
    %v447 = vld [vmem:[#allocation7 + $0x120] sm:$0xff]
    %v448 = vld [vmem:[#allocation7 + $0x128] sm:$0xff]
    %v449 = vld [vmem:[#allocation7 + $0x130] sm:$0xff]
    %v450 = vld [vmem:[#allocation7 + $0x138] sm:$0xff]
    %v451 = vld [vmem:[#allocation7 + $0x140] sm:$0xff]
    %v452 = vld [vmem:[#allocation7 + $0x148] sm:$0xff]
    %v453 = vld [vmem:[#allocation7 + $0x150] sm:$0xff]
    %v454 = vld [vmem:[#allocation7 + $0x158] sm:$0xff]
    %v455 = vld [vmem:[#allocation7 + $0x160] sm:$0xff]
    %v456 = vld [vmem:[#allocation7 + $0x168] sm:$0xff]
    %v457 = vld [vmem:[#allocation7 + $0x170] sm:$0xff]
    %v458 = vld [vmem:[#allocation7 + $0x178] sm:$0xff]
    %v459 = vld [vmem:[#allocation7 + $0x180] sm:$0xff]
    %v460 = vld [vmem:[#allocation7 + $0x188] sm:$0xff]
    %v461 = vld [vmem:[#allocation7 + $0x190] sm:$0xff]
    %v462 = vld [vmem:[#allocation7 + $0x198] sm:$0xff]
    %v463 = vld [vmem:[#allocation7 + $0x1a0] sm:$0xff]
    %v464 = vld [vmem:[#allocation7 + $0x1a8] sm:$0xff]
    %v465 = vld [vmem:[#allocation7 + $0x1b0] sm:$0xff]
    %v466 = vld [vmem:[#allocation7 + $0x1b8] sm:$0xff]
    %v467 = vld [vmem:[#allocation7 + $0x1c0] sm:$0xff]
    %v468 = vld [vmem:[#allocation7 + $0x1c8] sm:$0xff]
    %v469 = vld [vmem:[#allocation7 + $0x1d0] sm:$0xff]
    %v470 = vld [vmem:[#allocation7 + $0x1d8] sm:$0xff]
    %v471 = vld [vmem:[#allocation7 + $0x1e0] sm:$0xff]
    %v472 = vld [vmem:[#allocation7 + $0x1e8] sm:$0xff]
    %v473 = vld [vmem:[#allocation7 + $0x1f0] sm:$0xff]
    %v474 = vld [vmem:[#allocation7 + $0x1f8] sm:$0xff]
    %v475 = vld [vmem:[#allocation2] sm:$0xff]
    %v476 = vld [vmem:[#allocation2 + $0x8] sm:$0xff]
    %v477 = vld [vmem:[#allocation2 + $0x10] sm:$0xff]
    %v478 = vld [vmem:[#allocation2 + $0x18] sm:$0xff]
    %v479 = vld [vmem:[#allocation3] sm:$0xff]
    %480 = vmatprep.subr.mxu0 %v412
    %481 = vmatpush1.msra.mxu0 %v411
    %482 = vmatprep.subr.mxu0 %v416
    %483 = vmatpush1.msra.mxu0 %v415
    %484 = vmatprep.subr.mxu0 %v420
    %485 = vmatpush1.msra.mxu0 %v419
    %486 = vmatprep.subr.mxu0 %v424
    %487 = vmatpush1.msra.mxu0 %v423
    %488 = vmatprep.subr.mxu0 %v428
    %489 = vmatpush1.msra.mxu0 %v427
    %490 = vmatprep.subr.mxu0 %v432
    %491 = vmatpush1.msra.mxu0 %v431
    %492 = vmatprep.subr.mxu0 %v436
    %493 = vmatpush1.msra.mxu0 %v435
    %494 = vmatprep.subr.mxu0 %v440
    %495 = vmatpush1.msra.mxu0 %v439
    %496 = vmatprep.subr.mxu0 %v444
    %497 = vmatpush1.msra.mxu0 %v443
    %498 = vmatprep.subr.mxu0 %v448
    %499 = vmatpush1.msra.mxu0 %v447
    %500 = vmatprep.subr.mxu0 %v452
    %501 = vmatpush1.msra.mxu0 %v451
    %502 = vmatprep.subr.mxu0 %v456
    %503 = vmatpush1.msra.mxu0 %v455
    %504 = vmatprep.subr.mxu0 %v460
    %505 = vmatpush1.msra.mxu0 %v459
    %506 = vmatprep.subr.mxu0 %v464
    %507 = vmatpush1.msra.mxu0 %v463
    %508 = vmatprep.subr.mxu0 %v468
    %509 = vmatpush1.msra.mxu0 %v467
    %510 = vmatprep.subr.mxu0 %v472
    %511 = vmatpush1.msra.mxu0 %v471
    %512 = vmatprep.subr.mxu0 0.0
    %513 = vmatpush1.msra.mxu0 0.0
    %514 = vmatprep.subr.mxu0 0.0
    %515 = vmatpush1.msra.mxu0 0.0
    %516 = vmatprep.subr.mxu0 0.0
    %517 = vmatpush1.msra.mxu0 0.0
    %518 = vmatprep.subr.mxu0 0.0
    %519 = vmatpush1.msra.mxu0 0.0
    %520 = vmatprep.subr.mxu0 0.0
    %521 = vmatpush1.msra.mxu0 0.0
    %522 = vmatprep.subr.mxu0 0.0
    %523 = vmatpush1.msra.mxu0 0.0
    %524 = vmatprep.subr.mxu0 0.0
    %525 = vmatpush1.msra.mxu0 0.0
    %526 = vmatprep.subr.mxu0 0.0
    %527 = vmatpush1.msra.mxu0 0.0
    %528 = vmatprep.subr.mxu0 0.0
    %529 = vmatpush1.msra.mxu0 0.0
    %530 = vmatprep.subr.mxu0 0.0
    %531 = vmatpush1.msra.mxu0 0.0
    %532 = vmatprep.subr.mxu0 0.0
    %533 = vmatpush1.msra.mxu0 0.0
    %534 = vmatprep.subr.mxu0 0.0
    %535 = vmatpush1.msra.mxu0 0.0
    %536 = vmatprep.subr.mxu0 0.0
    %537 = vmatpush1.msra.mxu0 0.0
    %538 = vmatprep.subr.mxu0 0.0
    %539 = vmatpush1.msra.mxu0 0.0
    %540 = vmatprep.subr.mxu0 0.0
    %541 = vmatpush1.msra.mxu0 0.0
    %542 = vmatprep.subr.mxu0 0.0
    %543 = vmatpush1.msra.mxu0 0.0
    %544 = vmatprep.mubr.f32.mxu0 0.0
    %545 = vmatmul.mubr.f32.gmra.mrb[0].mxu0 %v479
    %v546 = vpop.f32.mrb[0].mxu0
    %v547 = vadd.f32 0.0, %v546
    %v548 = vpop.f32.mrb[0].mxu0
    %v549 = vadd.f32 0.0, %v548
    %550 = vdwg.mxu0
    %551 = vmatprep.subr.mxu0 %v414
    %552 = vmatpush1.msra.mxu0 %v413
    %553 = vmatprep.subr.mxu0 %v418
    %554 = vmatpush1.msra.mxu0 %v417
    %555 = vmatprep.subr.mxu0 %v422
    %556 = vmatpush1.msra.mxu0 %v421
    %557 = vmatprep.subr.mxu0 %v426
    %558 = vmatpush1.msra.mxu0 %v425
    %559 = vmatprep.subr.mxu0 %v430
    %560 = vmatpush1.msra.mxu0 %v429
    %561 = vmatprep.subr.mxu0 %v434
    %562 = vmatpush1.msra.mxu0 %v433
    %563 = vmatprep.subr.mxu0 %v438
    %564 = vmatpush1.msra.mxu0 %v437
    %565 = vmatprep.subr.mxu0 %v442
    %566 = vmatpush1.msra.mxu0 %v441
    %567 = vmatprep.subr.mxu0 %v446
    %568 = vmatpush1.msra.mxu0 %v445
    %569 = vmatprep.subr.mxu0 %v450
    %570 = vmatpush1.msra.mxu0 %v449
    %571 = vmatprep.subr.mxu0 %v454
    %572 = vmatpush1.msra.mxu0 %v453
    %573 = vmatprep.subr.mxu0 %v458
    %574 = vmatpush1.msra.mxu0 %v457
    %575 = vmatprep.subr.mxu0 %v462
    %576 = vmatpush1.msra.mxu0 %v461
    %577 = vmatprep.subr.mxu0 %v466
    %578 = vmatpush1.msra.mxu0 %v465
    %579 = vmatprep.subr.mxu0 %v470
    %580 = vmatpush1.msra.mxu0 %v469
    %581 = vmatprep.subr.mxu0 %v474
    %582 = vmatpush1.msra.mxu0 %v473
    %583 = vmatprep.subr.mxu0 0.0
    %584 = vmatpush1.msra.mxu0 0.0
    %585 = vmatprep.subr.mxu0 0.0
    %586 = vmatpush1.msra.mxu0 0.0
    %587 = vmatprep.subr.mxu0 0.0
    %588 = vmatpush1.msra.mxu0 0.0
    %589 = vmatprep.subr.mxu0 0.0
    %590 = vmatpush1.msra.mxu0 0.0
    %591 = vmatprep.subr.mxu0 0.0
    %592 = vmatpush1.msra.mxu0 0.0
    %593 = vmatprep.subr.mxu0 0.0
    %594 = vmatpush1.msra.mxu0 0.0
    %595 = vmatprep.subr.mxu0 0.0
    %596 = vmatpush1.msra.mxu0 0.0
    %597 = vmatprep.subr.mxu0 0.0
    %598 = vmatpush1.msra.mxu0 0.0
    %599 = vmatprep.subr.mxu0 0.0
    %600 = vmatpush1.msra.mxu0 0.0
    %601 = vmatprep.subr.mxu0 0.0
    %602 = vmatpush1.msra.mxu0 0.0
    %603 = vmatprep.subr.mxu0 0.0
    %604 = vmatpush1.msra.mxu0 0.0
    %605 = vmatprep.subr.mxu0 0.0
    %606 = vmatpush1.msra.mxu0 0.0
    %607 = vmatprep.subr.mxu0 0.0
    %608 = vmatpush1.msra.mxu0 0.0
    %609 = vmatprep.subr.mxu0 0.0
    %610 = vmatpush1.msra.mxu0 0.0
    %611 = vmatprep.subr.mxu0 0.0
    %612 = vmatpush1.msra.mxu0 0.0
    %613 = vmatprep.subr.mxu0 0.0
    %614 = vmatpush1.msra.mxu0 0.0
    %615 = vmatprep.mubr.f32.mxu0 0.0
    %616 = vmatmul.mubr.f32.gmra.mrb[0].mxu0 %v479
    %v617 = vpop.f32.mrb[0].mxu0
    %v618 = vadd.f32 0.0, %v617
    %v619 = vpop.f32.mrb[0].mxu0
    %v620 = vadd.f32 0.0, %v619
    %621 = vdwg.mxu0
    %v622 = vadd.f32 %v475, %v547
    %v623 = vadd.f32 %v476, %v549
    %v624 = vadd.f32 %v477, %v618
    %v625 = vadd.f32 %v478, %v620
    %v626 = vxor.u32 %v622, 2147483648
    %v627 = vmul.f32 %v626, 1.442695
    %v628 = vpow.pop %v627
    %v629 = vadd.f32 %v628, 1.0
    %v630 = vrcp.pop %v629
    %v631 = vmul.f32 1.0, %v630
    %v632 = vxor.u32 %v623, 2147483648
    %v633 = vmul.f32 %v632, 1.442695
    %v634 = vpow.pop %v633
    %v635 = vadd.f32 %v634, 1.0
    %v636 = vrcp.pop %v635
    %v637 = vmul.f32 1.0, %v636
    %v638 = vtanh.pop %v624
    %v639 = vxor.u32 %v625, 2147483648
    %v640 = vmul.f32 %v639, 1.442695
    %v641 = vpow.pop %v640
    %v642 = vadd.f32 %v641, 1.0
    %v643 = vrcp.pop %v642
    %v644 = vmul.f32 1.0, %v643
    %v645 = vld [vmem:[#allocation4] sm:$0xff]
    %v646 = vmul.f32 %v637, %v645
    %v647 = vmul.f32 %v631, %v638
    %v648 = vadd.f32 %v646, %v647
    %v649 = vtanh.pop %v648
    %v650 = vmul.f32 %v644, %v649
    %651 = vst [vmem:[#allocation4] sm:$0xff] %v648
    %652 = vst [vmem:[#allocation3] sm:$0xff] %v650
    %653 = vst [vmem:[#allocation6] sm:$0xff] %v650
    %v654 = vld [vmem:[#allocation2 + $0x20] sm:$0xff]
    %v655 = vld [vmem:[#allocation2 + $0x28] sm:$0xff]
    %v656 = vld [vmem:[#allocation2 + $0x30] sm:$0xff]
    %v657 = vld [vmem:[#allocation2 + $0x38] sm:$0xff]
    %v658 = vld [vmem:[#allocation3] sm:$0xff]
    %659 = vmatprep.subr.mxu0 %v412
    %660 = vmatpush1.msra.mxu0 %v411
    %661 = vmatprep.subr.mxu0 %v416
    %662 = vmatpush1.msra.mxu0 %v415
    %663 = vmatprep.subr.mxu0 %v420
    %664 = vmatpush1.msra.mxu0 %v419
    %665 = vmatprep.subr.mxu0 %v424
    %666 = vmatpush1.msra.mxu0 %v423
    %667 = vmatprep.subr.mxu0 %v428
    %668 = vmatpush1.msra.mxu0 %v427
    %669 = vmatprep.subr.mxu0 %v432
    %670 = vmatpush1.msra.mxu0 %v431
    %671 = vmatprep.subr.mxu0 %v436
    %672 = vmatpush1.msra.mxu0 %v435
    %673 = vmatprep.subr.mxu0 %v440
    %674 = vmatpush1.msra.mxu0 %v439
    %675 = vmatprep.subr.mxu0 %v444
    %676 = vmatpush1.msra.mxu0 %v443
    %677 = vmatprep.subr.mxu0 %v448
    %678 = vmatpush1.msra.mxu0 %v447
    %679 = vmatprep.subr.mxu0 %v452
    %680 = vmatpush1.msra.mxu0 %v451
    %681 = vmatprep.subr.mxu0 %v456
    %682 = vmatpush1.msra.mxu0 %v455
    %683 = vmatprep.subr.mxu0 %v460
    %684 = vmatpush1.msra.mxu0 %v459
    %685 = vmatprep.subr.mxu0 %v464
    %686 = vmatpush1.msra.mxu0 %v463
    %687 = vmatprep.subr.mxu0 %v468
    %688 = vmatpush1.msra.mxu0 %v467
    %689 = vmatprep.subr.mxu0 %v472
    %690 = vmatpush1.msra.mxu0 %v471
    %691 = vmatprep.subr.mxu0 0.0
    %692 = vmatpush1.msra.mxu0 0.0
    %693 = vmatprep.subr.mxu0 0.0
    %694 = vmatpush1.msra.mxu0 0.0
    %695 = vmatprep.subr.mxu0 0.0
    %696 = vmatpush1.msra.mxu0 0.0
    %697 = vmatprep.subr.mxu0 0.0
    %698 = vmatpush1.msra.mxu0 0.0
    %699 = vmatprep.subr.mxu0 0.0
    %700 = vmatpush1.msra.mxu0 0.0
    %701 = vmatprep.subr.mxu0 0.0
    %702 = vmatpush1.msra.mxu0 0.0
    %703 = vmatprep.subr.mxu0 0.0
    %704 = vmatpush1.msra.mxu0 0.0
    %705 = vmatprep.subr.mxu0 0.0
    %706 = vmatpush1.msra.mxu0 0.0
    %707 = vmatprep.subr.mxu0 0.0
    %708 = vmatpush1.msra.mxu0 0.0
    %709 = vmatprep.subr.mxu0 0.0
    %710 = vmatpush1.msra.mxu0 0.0
    %711 = vmatprep.subr.mxu0 0.0
    %712 = vmatpush1.msra.mxu0 0.0
    %713 = vmatprep.subr.mxu0 0.0
    %714 = vmatpush1.msra.mxu0 0.0
    %715 = vmatprep.subr.mxu0 0.0
    %716 = vmatpush1.msra.mxu0 0.0
    %717 = vmatprep.subr.mxu0 0.0
    %718 = vmatpush1.msra.mxu0 0.0
    %719 = vmatprep.subr.mxu0 0.0
    %720 = vmatpush1.msra.mxu0 0.0
    %721 = vmatprep.subr.mxu0 0.0
    %722 = vmatpush1.msra.mxu0 0.0
    %723 = vmatprep.mubr.f32.mxu0 0.0
    %724 = vmatmul.mubr.f32.gmra.mrb[0].mxu0 %v658
    %v725 = vpop.f32.mrb[0].mxu0
    %v726 = vadd.f32 0.0, %v725
    %v727 = vpop.f32.mrb[0].mxu0
    %v728 = vadd.f32 0.0, %v727
    %729 = vdwg.mxu0
    %730 = vmatprep.subr.mxu0 %v414
    %731 = vmatpush1.msra.mxu0 %v413
    %732 = vmatprep.subr.mxu0 %v418
    %733 = vmatpush1.msra.mxu0 %v417
    %734 = vmatprep.subr.mxu0 %v422
    %735 = vmatpush1.msra.mxu0 %v421
    %736 = vmatprep.subr.mxu0 %v426
    %737 = vmatpush1.msra.mxu0 %v425
    %738 = vmatprep.subr.mxu0 %v430
    %739 = vmatpush1.msra.mxu0 %v429
    %740 = vmatprep.subr.mxu0 %v434
    %741 = vmatpush1.msra.mxu0 %v433
    %742 = vmatprep.subr.mxu0 %v438
    %743 = vmatpush1.msra.mxu0 %v437
    %744 = vmatprep.subr.mxu0 %v442
    %745 = vmatpush1.msra.mxu0 %v441
    %746 = vmatprep.subr.mxu0 %v446
    %747 = vmatpush1.msra.mxu0 %v445
    %748 = vmatprep.subr.mxu0 %v450
    %749 = vmatpush1.msra.mxu0 %v449
    %750 = vmatprep.subr.mxu0 %v454
    %751 = vmatpush1.msra.mxu0 %v453
    %752 = vmatprep.subr.mxu0 %v458
    %753 = vmatpush1.msra.mxu0 %v457
    %754 = vmatprep.subr.mxu0 %v462
    %755 = vmatpush1.msra.mxu0 %v461
    %756 = vmatprep.subr.mxu0 %v466
    %757 = vmatpush1.msra.mxu0 %v465
    %758 = vmatprep.subr.mxu0 %v470
    %759 = vmatpush1.msra.mxu0 %v469
    %760 = vmatprep.subr.mxu0 %v474
    %761 = vmatpush1.msra.mxu0 %v473
    %762 = vmatprep.subr.mxu0 0.0
    %763 = vmatpush1.msra.mxu0 0.0
    %764 = vmatprep.subr.mxu0 0.0
    %765 = vmatpush1.msra.mxu0 0.0
    %766 = vmatprep.subr.mxu0 0.0
    %767 = vmatpush1.msra.mxu0 0.0
    %768 = vmatprep.subr.mxu0 0.0
    %769 = vmatpush1.msra.mxu0 0.0
    %770 = vmatprep.subr.mxu0 0.0
    %771 = vmatpush1.msra.mxu0 0.0
    %772 = vmatprep.subr.mxu0 0.0
    %773 = vmatpush1.msra.mxu0 0.0
    %774 = vmatprep.subr.mxu0 0.0
    %775 = vmatpush1.msra.mxu0 0.0
    %776 = vmatprep.subr.mxu0 0.0
    %777 = vmatpush1.msra.mxu0 0.0
    %778 = vmatprep.subr.mxu0 0.0
    %779 = vmatpush1.msra.mxu0 0.0
    %780 = vmatprep.subr.mxu0 0.0
    %781 = vmatpush1.msra.mxu0 0.0
    %782 = vmatprep.subr.mxu0 0.0
    %783 = vmatpush1.msra.mxu0 0.0
    %784 = vmatprep.subr.mxu0 0.0
    %785 = vmatpush1.msra.mxu0 0.0
    %786 = vmatprep.subr.mxu0 0.0
    %787 = vmatpush1.msra.mxu0 0.0
    %788 = vmatprep.subr.mxu0 0.0
    %789 = vmatpush1.msra.mxu0 0.0
    %790 = vmatprep.subr.mxu0 0.0
    %791 = vmatpush1.msra.mxu0 0.0
    %792 = vmatprep.subr.mxu0 0.0
    %793 = vmatpush1.msra.mxu0 0.0
    %794 = vmatprep.mubr.f32.mxu0 0.0
    %795 = vmatmul.mubr.f32.gmra.mrb[0].mxu0 %v658
    %v796 = vpop.f32.mrb[0].mxu0
    %v797 = vadd.f32 0.0, %v796
    %v798 = vpop.f32.mrb[0].mxu0
    %v799 = vadd.f32 0.0, %v798
    %800 = vdwg.mxu0
    %v801 = vadd.f32 %v654, %v726
    %v802 = vadd.f32 %v655, %v728
    %v803 = vadd.f32 %v656, %v797
    %v804 = vadd.f32 %v657, %v799
    %v805 = vxor.u32 %v801, 2147483648
    %v806 = vmul.f32 %v805, 1.442695
    %v807 = vpow.pop %v806
    %v808 = vadd.f32 %v807, 1.0
    %v809 = vrcp.pop %v808
    %v810 = vmul.f32 1.0, %v809
    %v811 = vxor.u32 %v802, 2147483648
    %v812 = vmul.f32 %v811, 1.442695
    %v813 = vpow.pop %v812
    %v814 = vadd.f32 %v813, 1.0
    %v815 = vrcp.pop %v814
    %v816 = vmul.f32 1.0, %v815
    %v817 = vtanh.pop %v803
    %v818 = vxor.u32 %v804, 2147483648
    %v819 = vmul.f32 %v818, 1.442695
    %v820 = vpow.pop %v819
    %v821 = vadd.f32 %v820, 1.0
    %v822 = vrcp.pop %v821
    %v823 = vmul.f32 1.0, %v822
    %v824 = vld [vmem:[#allocation4] sm:$0xff]
    %v825 = vmul.f32 %v816, %v824
    %v826 = vmul.f32 %v810, %v817
    %v827 = vadd.f32 %v825, %v826
    %v828 = vtanh.pop %v827
    %v829 = vmul.f32 %v823, %v828
    %830 = vst [vmem:[#allocation4] sm:$0xff] %v827
    %831 = vst [vmem:[#allocation3] sm:$0xff] %v829
    %832 = vst [vmem:[#allocation6 + $0x8] sm:$0xff] %v829
    %v833 = vld [vmem:[#allocation2 + $0x40] sm:$0xff]
    %v834 = vld [vmem:[#allocation2 + $0x48] sm:$0xff]
    %v835 = vld [vmem:[#allocation2 + $0x50] sm:$0xff]
    %v836 = vld [vmem:[#allocation2 + $0x58] sm:$0xff]
    %v837 = vld [vmem:[#allocation3] sm:$0xff]
    %838 = vmatprep.subr.mxu0 %v412
    %839 = vmatpush1.msra.mxu0 %v411
    %840 = vmatprep.subr.mxu0 %v416
    %841 = vmatpush1.msra.mxu0 %v415
    %842 = vmatprep.subr.mxu0 %v420
    %843 = vmatpush1.msra.mxu0 %v419
    %844 = vmatprep.subr.mxu0 %v424
    %845 = vmatpush1.msra.mxu0 %v423
    %846 = vmatprep.subr.mxu0 %v428
    %847 = vmatpush1.msra.mxu0 %v427
    %848 = vmatprep.subr.mxu0 %v432
    %849 = vmatpush1.msra.mxu0 %v431
    %850 = vmatprep.subr.mxu0 %v436
    %851 = vmatpush1.msra.mxu0 %v435
    %852 = vmatprep.subr.mxu0 %v440
    %853 = vmatpush1.msra.mxu0 %v439
    %854 = vmatprep.subr.mxu0 %v444
    %855 = vmatpush1.msra.mxu0 %v443
    %856 = vmatprep.subr.mxu0 %v448
    %857 = vmatpush1.msra.mxu0 %v447
    %858 = vmatprep.subr.mxu0 %v452
    %859 = vmatpush1.msra.mxu0 %v451
    %860 = vmatprep.subr.mxu0 %v456
    %861 = vmatpush1.msra.mxu0 %v455
    %862 = vmatprep.subr.mxu0 %v460
    %863 = vmatpush1.msra.mxu0 %v459
    %864 = vmatprep.subr.mxu0 %v464
    %865 = vmatpush1.msra.mxu0 %v463
    %866 = vmatprep.subr.mxu0 %v468
    %867 = vmatpush1.msra.mxu0 %v467
    %868 = vmatprep.subr.mxu0 %v472
    %869 = vmatpush1.msra.mxu0 %v471
    %870 = vmatprep.subr.mxu0 0.0
    %871 = vmatpush1.msra.mxu0 0.0
    %872 = vmatprep.subr.mxu0 0.0
    %873 = vmatpush1.msra.mxu0 0.0
    %874 = vmatprep.subr.mxu0 0.0
    %875 = vmatpush1.msra.mxu0 0.0
    %876 = vmatprep.subr.mxu0 0.0
    %877 = vmatpush1.msra.mxu0 0.0
    %878 = vmatprep.subr.mxu0 0.0
    %879 = vmatpush1.msra.mxu0 0.0
    %880 = vmatprep.subr.mxu0 0.0
    %881 = vmatpush1.msra.mxu0 0.0
    %882 = vmatprep.subr.mxu0 0.0
    %883 = vmatpush1.msra.mxu0 0.0
    %884 = vmatprep.subr.mxu0 0.0
    %885 = vmatpush1.msra.mxu0 0.0
    %886 = vmatprep.subr.mxu0 0.0
    %887 = vmatpush1.msra.mxu0 0.0
    %888 = vmatprep.subr.mxu0 0.0
    %889 = vmatpush1.msra.mxu0 0.0
    %890 = vmatprep.subr.mxu0 0.0
    %891 = vmatpush1.msra.mxu0 0.0
    %892 = vmatprep.subr.mxu0 0.0
    %893 = vmatpush1.msra.mxu0 0.0
    %894 = vmatprep.subr.mxu0 0.0
    %895 = vmatpush1.msra.mxu0 0.0
    %896 = vmatprep.subr.mxu0 0.0
    %897 = vmatpush1.msra.mxu0 0.0
    %898 = vmatprep.subr.mxu0 0.0
    %899 = vmatpush1.msra.mxu0 0.0
    %900 = vmatprep.subr.mxu0 0.0
    %901 = vmatpush1.msra.mxu0 0.0
    %902 = vmatprep.mubr.f32.mxu0 0.0
    %903 = vmatmul.mubr.f32.gmra.mrb[0].mxu0 %v837
    %v904 = vpop.f32.mrb[0].mxu0
    %v905 = vadd.f32 0.0, %v904
    %v906 = vpop.f32.mrb[0].mxu0
    %v907 = vadd.f32 0.0, %v906
    %908 = vdwg.mxu0
    %909 = vmatprep.subr.mxu0 %v414
    %910 = vmatpush1.msra.mxu0 %v413
    %911 = vmatprep.subr.mxu0 %v418
    %912 = vmatpush1.msra.mxu0 %v417
    %913 = vmatprep.subr.mxu0 %v422
    %914 = vmatpush1.msra.mxu0 %v421
    %915 = vmatprep.subr.mxu0 %v426
    %916 = vmatpush1.msra.mxu0 %v425
    %917 = vmatprep.subr.mxu0 %v430
    %918 = vmatpush1.msra.mxu0 %v429
    %919 = vmatprep.subr.mxu0 %v434
    %920 = vmatpush1.msra.mxu0 %v433
    %921 = vmatprep.subr.mxu0 %v438
    %922 = vmatpush1.msra.mxu0 %v437
    %923 = vmatprep.subr.mxu0 %v442
    %924 = vmatpush1.msra.mxu0 %v441
    %925 = vmatprep.subr.mxu0 %v446
    %926 = vmatpush1.msra.mxu0 %v445
    %927 = vmatprep.subr.mxu0 %v450
    %928 = vmatpush1.msra.mxu0 %v449
    %929 = vmatprep.subr.mxu0 %v454
    %930 = vmatpush1.msra.mxu0 %v453
    %931 = vmatprep.subr.mxu0 %v458
    %932 = vmatpush1.msra.mxu0 %v457
    %933 = vmatprep.subr.mxu0 %v462
    %934 = vmatpush1.msra.mxu0 %v461
    %935 = vmatprep.subr.mxu0 %v466
    %936 = vmatpush1.msra.mxu0 %v465
    %937 = vmatprep.subr.mxu0 %v470
    %938 = vmatpush1.msra.mxu0 %v469
    %939 = vmatprep.subr.mxu0 %v474
    %940 = vmatpush1.msra.mxu0 %v473
    %941 = vmatprep.subr.mxu0 0.0
    %942 = vmatpush1.msra.mxu0 0.0
    %943 = vmatprep.subr.mxu0 0.0
    %944 = vmatpush1.msra.mxu0 0.0
    %945 = vmatprep.subr.mxu0 0.0
    %946 = vmatpush1.msra.mxu0 0.0
    %947 = vmatprep.subr.mxu0 0.0
    %948 = vmatpush1.msra.mxu0 0.0
    %949 = vmatprep.subr.mxu0 0.0
    %950 = vmatpush1.msra.mxu0 0.0
    %951 = vmatprep.subr.mxu0 0.0
    %952 = vmatpush1.msra.mxu0 0.0
    %953 = vmatprep.subr.mxu0 0.0
    %954 = vmatpush1.msra.mxu0 0.0
    %955 = vmatprep.subr.mxu0 0.0
    %956 = vmatpush1.msra.mxu0 0.0
    %957 = vmatprep.subr.mxu0 0.0
    %958 = vmatpush1.msra.mxu0 0.0
    %959 = vmatprep.subr.mxu0 0.0
    %960 = vmatpush1.msra.mxu0 0.0
    %961 = vmatprep.subr.mxu0 0.0
    %962 = vmatpush1.msra.mxu0 0.0
    %963 = vmatprep.subr.mxu0 0.0
    %964 = vmatpush1.msra.mxu0 0.0
    %965 = vmatprep.subr.mxu0 0.0
    %966 = vmatpush1.msra.mxu0 0.0
    %967 = vmatprep.subr.mxu0 0.0
    %968 = vmatpush1.msra.mxu0 0.0
    %969 = vmatprep.subr.mxu0 0.0
    %970 = vmatpush1.msra.mxu0 0.0
    %971 = vmatprep.subr.mxu0 0.0
    %972 = vmatpush1.msra.mxu0 0.0
    %973 = vmatprep.mubr.f32.mxu0 0.0
    %974 = vmatmul.mubr.f32.gmra.mrb[0].mxu0 %v837
    %v975 = vpop.f32.mrb[0].mxu0
    %v976 = vadd.f32 0.0, %v975
    %v977 = vpop.f32.mrb[0].mxu0
    %v978 = vadd.f32 0.0, %v977
    %979 = vdwg.mxu0
    %v980 = vadd.f32 %v833, %v905
    %v981 = vadd.f32 %v834, %v907
    %v982 = vadd.f32 %v835, %v976
    %v983 = vadd.f32 %v836, %v978
    %v984 = vxor.u32 %v980, 2147483648
    %v985 = vmul.f32 %v984, 1.442695
    %v986 = vpow.pop %v985
    %v987 = vadd.f32 %v986, 1.0
    %v988 = vrcp.pop %v987
    %v989 = vmul.f32 1.0, %v988
    %v990 = vxor.u32 %v981, 2147483648
    %v991 = vmul.f32 %v990, 1.442695
    %v992 = vpow.pop %v991
    %v993 = vadd.f32 %v992, 1.0
    %v994 = vrcp.pop %v993
    %v995 = vmul.f32 1.0, %v994
    %v996 = vtanh.pop %v982
    %v997 = vxor.u32 %v983, 2147483648
    %v998 = vmul.f32 %v997, 1.442695
    %v999 = vpow.pop %v998
    %v1000 = vadd.f32 %v999, 1.0
    %v1001 = vrcp.pop %v1000
    %v1002 = vmul.f32 1.0, %v1001
    %v1003 = vld [vmem:[#allocation4] sm:$0xff]
    %v1004 = vmul.f32 %v995, %v1003
    %v1005 = vmul.f32 %v989, %v996
    %v1006 = vadd.f32 %v1004, %v1005
    %v1007 = vtanh.pop %v1006
    %v1008 = vmul.f32 %v1002, %v1007
    %1009 = vst [vmem:[#allocation4] sm:$0xff] %v1006
    %1010 = vst [vmem:[#allocation3] sm:$0xff] %v1008
    %1011 = vst [vmem:[#allocation6 + $0x10] sm:$0xff] %v1008
    %v1012 = vld [vmem:[#allocation2 + $0x60] sm:$0xff]
    %v1013 = vld [vmem:[#allocation2 + $0x68] sm:$0xff]
    %v1014 = vld [vmem:[#allocation2 + $0x70] sm:$0xff]
    %v1015 = vld [vmem:[#allocation2 + $0x78] sm:$0xff]
    %v1016 = vld [vmem:[#allocation3] sm:$0xff]
    %1017 = vmatprep.subr.mxu0 %v412
    %1018 = vmatpush1.msra.mxu0 %v411
    %1019 = vmatprep.subr.mxu0 %v416
    %1020 = vmatpush1.msra.mxu0 %v415
    %1021 = vmatprep.subr.mxu0 %v420
    %1022 = vmatpush1.msra.mxu0 %v419
    %1023 = vmatprep.subr.mxu0 %v424
    %1024 = vmatpush1.msra.mxu0 %v423
    %1025 = vmatprep.subr.mxu0 %v428
    %1026 = vmatpush1.msra.mxu0 %v427
    %1027 = vmatprep.subr.mxu0 %v432
    %1028 = vmatpush1.msra.mxu0 %v431
    %1029 = vmatprep.subr.mxu0 %v436
    %1030 = vmatpush1.msra.mxu0 %v435
    %1031 = vmatprep.subr.mxu0 %v440
    %1032 = vmatpush1.msra.mxu0 %v439
    %1033 = vmatprep.subr.mxu0 %v444
    %1034 = vmatpush1.msra.mxu0 %v443
    %1035 = vmatprep.subr.mxu0 %v448
    %1036 = vmatpush1.msra.mxu0 %v447
    %1037 = vmatprep.subr.mxu0 %v452
    %1038 = vmatpush1.msra.mxu0 %v451
    %1039 = vmatprep.subr.mxu0 %v456
    %1040 = vmatpush1.msra.mxu0 %v455
    %1041 = vmatprep.subr.mxu0 %v460
    %1042 = vmatpush1.msra.mxu0 %v459
    %1043 = vmatprep.subr.mxu0 %v464
    %1044 = vmatpush1.msra.mxu0 %v463
    %1045 = vmatprep.subr.mxu0 %v468
    %1046 = vmatpush1.msra.mxu0 %v467
    %1047 = vmatprep.subr.mxu0 %v472
    %1048 = vmatpush1.msra.mxu0 %v471
    %1049 = vmatprep.subr.mxu0 0.0
    %1050 = vmatpush1.msra.mxu0 0.0
    %1051 = vmatprep.subr.mxu0 0.0
    %1052 = vmatpush1.msra.mxu0 0.0
    %1053 = vmatprep.subr.mxu0 0.0
    %1054 = vmatpush1.msra.mxu0 0.0
    %1055 = vmatprep.subr.mxu0 0.0
    %1056 = vmatpush1.msra.mxu0 0.0
    %1057 = vmatprep.subr.mxu0 0.0
    %1058 = vmatpush1.msra.mxu0 0.0
    %1059 = vmatprep.subr.mxu0 0.0
    %1060 = vmatpush1.msra.mxu0 0.0
    %1061 = vmatprep.subr.mxu0 0.0
    %1062 = vmatpush1.msra.mxu0 0.0
    %1063 = vmatprep.subr.mxu0 0.0
    %1064 = vmatpush1.msra.mxu0 0.0
    %1065 = vmatprep.subr.mxu0 0.0
    %1066 = vmatpush1.msra.mxu0 0.0
    %1067 = vmatprep.subr.mxu0 0.0
    %1068 = vmatpush1.msra.mxu0 0.0
    %1069 = vmatprep.subr.mxu0 0.0
    %1070 = vmatpush1.msra.mxu0 0.0
    %1071 = vmatprep.subr.mxu0 0.0
    %1072 = vmatpush1.msra.mxu0 0.0
    %1073 = vmatprep.subr.mxu0 0.0
    %1074 = vmatpush1.msra.mxu0 0.0
    %1075 = vmatprep.subr.mxu0 0.0
    %1076 = vmatpush1.msra.mxu0 0.0
    %1077 = vmatprep.subr.mxu0 0.0
    %1078 = vmatpush1.msra.mxu0 0.0
    %1079 = vmatprep.subr.mxu0 0.0
    %1080 = vmatpush1.msra.mxu0 0.0
    %1081 = vmatprep.mubr.f32.mxu0 0.0
    %1082 = vmatmul.mubr.f32.gmra.mrb[0].mxu0 %v1016
    %v1083 = vpop.f32.mrb[0].mxu0
    %v1084 = vadd.f32 0.0, %v1083
    %v1085 = vpop.f32.mrb[0].mxu0
    %v1086 = vadd.f32 0.0, %v1085
    %1087 = vdwg.mxu0
    %1088 = vmatprep.subr.mxu0 %v414
    %1089 = vmatpush1.msra.mxu0 %v413
    %1090 = vmatprep.subr.mxu0 %v418
    %1091 = vmatpush1.msra.mxu0 %v417
    %1092 = vmatprep.subr.mxu0 %v422
    %1093 = vmatpush1.msra.mxu0 %v421
    %1094 = vmatprep.subr.mxu0 %v426
    %1095 = vmatpush1.msra.mxu0 %v425
    %1096 = vmatprep.subr.mxu0 %v430
    %1097 = vmatpush1.msra.mxu0 %v429
    %1098 = vmatprep.subr.mxu0 %v434
    %1099 = vmatpush1.msra.mxu0 %v433
    %1100 = vmatprep.subr.mxu0 %v438
    %1101 = vmatpush1.msra.mxu0 %v437
    %1102 = vmatprep.subr.mxu0 %v442
    %1103 = vmatpush1.msra.mxu0 %v441
    %1104 = vmatprep.subr.mxu0 %v446
    %1105 = vmatpush1.msra.mxu0 %v445
    %1106 = vmatprep.subr.mxu0 %v450
    %1107 = vmatpush1.msra.mxu0 %v449
    %1108 = vmatprep.subr.mxu0 %v454
    %1109 = vmatpush1.msra.mxu0 %v453
    %1110 = vmatprep.subr.mxu0 %v458
    %1111 = vmatpush1.msra.mxu0 %v457
    %1112 = vmatprep.subr.mxu0 %v462
    %1113 = vmatpush1.msra.mxu0 %v461
    %1114 = vmatprep.subr.mxu0 %v466
    %1115 = vmatpush1.msra.mxu0 %v465
    %1116 = vmatprep.subr.mxu0 %v470
    %1117 = vmatpush1.msra.mxu0 %v469
    %1118 = vmatprep.subr.mxu0 %v474
    %1119 = vmatpush1.msra.mxu0 %v473
    %1120 = vmatprep.subr.mxu0 0.0
    %1121 = vmatpush1.msra.mxu0 0.0
    %1122 = vmatprep.subr.mxu0 0.0
    %1123 = vmatpush1.msra.mxu0 0.0
    %1124 = vmatprep.subr.mxu0 0.0
    %1125 = vmatpush1.msra.mxu0 0.0
    %1126 = vmatprep.subr.mxu0 0.0
    %1127 = vmatpush1.msra.mxu0 0.0
    %1128 = vmatprep.subr.mxu0 0.0
    %1129 = vmatpush1.msra.mxu0 0.0
    %1130 = vmatprep.subr.mxu0 0.0
    %1131 = vmatpush1.msra.mxu0 0.0
    %1132 = vmatprep.subr.mxu0 0.0
    %1133 = vmatpush1.msra.mxu0 0.0
    %1134 = vmatprep.subr.mxu0 0.0
    %1135 = vmatpush1.msra.mxu0 0.0
    %1136 = vmatprep.subr.mxu0 0.0
    %1137 = vmatpush1.msra.mxu0 0.0
    %1138 = vmatprep.subr.mxu0 0.0
    %1139 = vmatpush1.msra.mxu0 0.0
    %1140 = vmatprep.subr.mxu0 0.0
    %1141 = vmatpush1.msra.mxu0 0.0
    %1142 = vmatprep.subr.mxu0 0.0
    %1143 = vmatpush1.msra.mxu0 0.0
    %1144 = vmatprep.subr.mxu0 0.0
    %1145 = vmatpush1.msra.mxu0 0.0
    %1146 = vmatprep.subr.mxu0 0.0
    %1147 = vmatpush1.msra.mxu0 0.0
    %1148 = vmatprep.subr.mxu0 0.0
    %1149 = vmatpush1.msra.mxu0 0.0
    %1150 = vmatprep.subr.mxu0 0.0
    %1151 = vmatpush1.msra.mxu0 0.0
    %1152 = vmatprep.mubr.f32.mxu0 0.0
    %1153 = vmatmul.mubr.f32.gmra.mrb[0].mxu0 %v1016
    %v1154 = vpop.f32.mrb[0].mxu0
    %v1155 = vadd.f32 0.0, %v1154
    %v1156 = vpop.f32.mrb[0].mxu0
    %v1157 = vadd.f32 0.0, %v1156
    %1158 = vdwg.mxu0
    %v1159 = vadd.f32 %v1012, %v1084
    %v1160 = vadd.f32 %v1013, %v1086
    %v1161 = vadd.f32 %v1014, %v1155
    %v1162 = vadd.f32 %v1015, %v1157
    %v1163 = vxor.u32 %v1159, 2147483648
    %v1164 = vmul.f32 %v1163, 1.442695
    %v1165 = vpow.pop %v1164
    %v1166 = vadd.f32 %v1165, 1.0
    %v1167 = vrcp.pop %v1166
    %v1168 = vmul.f32 1.0, %v1167
    %v1169 = vxor.u32 %v1160, 2147483648
    %v1170 = vmul.f32 %v1169, 1.442695
    %v1171 = vpow.pop %v1170
    %v1172 = vadd.f32 %v1171, 1.0
    %v1173 = vrcp.pop %v1172
    %v1174 = vmul.f32 1.0, %v1173
    %v1175 = vtanh.pop %v1161
    %v1176 = vxor.u32 %v1162, 2147483648
    %v1177 = vmul.f32 %v1176, 1.442695
    %v1178 = vpow.pop %v1177
    %v1179 = vadd.f32 %v1178, 1.0
    %v1180 = vrcp.pop %v1179
    %v1181 = vmul.f32 1.0, %v1180
    %v1182 = vld [vmem:[#allocation4] sm:$0xff]
    %v1183 = vmul.f32 %v1174, %v1182
    %v1184 = vmul.f32 %v1168, %v1175
    %v1185 = vadd.f32 %v1183, %v1184
    %v1186 = vtanh.pop %v1185
    %v1187 = vmul.f32 %v1181, %v1186
    %1188 = vst [vmem:[#allocation4] sm:$0xff] %v1185
    %1189 = vst [vmem:[#allocation3] sm:$0xff] %v1187
    %1190 = vst [vmem:[#allocation6 + $0x18] sm:$0xff] %v1187
    %v1191 = vld [vmem:[#allocation2 + $0x80] sm:$0xff]
    %v1192 = vld [vmem:[#allocation2 + $0x88] sm:$0xff]
    %v1193 = vld [vmem:[#allocation2 + $0x90] sm:$0xff]
    %v1194 = vld [vmem:[#allocation2 + $0x98] sm:$0xff]
    %v1195 = vld [vmem:[#allocation3] sm:$0xff]
    %1196 = vmatprep.subr.mxu0 %v412
    %1197 = vmatpush1.msra.mxu0 %v411
    %1198 = vmatprep.subr.mxu0 %v416
    %1199 = vmatpush1.msra.mxu0 %v415
    %1200 = vmatprep.subr.mxu0 %v420
    %1201 = vmatpush1.msra.mxu0 %v419
    %1202 = vmatprep.subr.mxu0 %v424
    %1203 = vmatpush1.msra.mxu0 %v423
    %1204 = vmatprep.subr.mxu0 %v428
    %1205 = vmatpush1.msra.mxu0 %v427
    %1206 = vmatprep.subr.mxu0 %v432
    %1207 = vmatpush1.msra.mxu0 %v431
    %1208 = vmatprep.subr.mxu0 %v436
    %1209 = vmatpush1.msra.mxu0 %v435
    %1210 = vmatprep.subr.mxu0 %v440
    %1211 = vmatpush1.msra.mxu0 %v439
    %1212 = vmatprep.subr.mxu0 %v444
    %1213 = vmatpush1.msra.mxu0 %v443
    %1214 = vmatprep.subr.mxu0 %v448
    %1215 = vmatpush1.msra.mxu0 %v447
    %1216 = vmatprep.subr.mxu0 %v452
    %1217 = vmatpush1.msra.mxu0 %v451
    %1218 = vmatprep.subr.mxu0 %v456
    %1219 = vmatpush1.msra.mxu0 %v455
    %1220 = vmatprep.subr.mxu0 %v460
    %1221 = vmatpush1.msra.mxu0 %v459
    %1222 = vmatprep.subr.mxu0 %v464
    %1223 = vmatpush1.msra.mxu0 %v463
    %1224 = vmatprep.subr.mxu0 %v468
    %1225 = vmatpush1.msra.mxu0 %v467
    %1226 = vmatprep.subr.mxu0 %v472
    %1227 = vmatpush1.msra.mxu0 %v471
    %1228 = vmatprep.subr.mxu0 0.0
    %1229 = vmatpush1.msra.mxu0 0.0
    %1230 = vmatprep.subr.mxu0 0.0
    %1231 = vmatpush1.msra.mxu0 0.0
    %1232 = vmatprep.subr.mxu0 0.0
    %1233 = vmatpush1.msra.mxu0 0.0
    %1234 = vmatprep.subr.mxu0 0.0
    %1235 = vmatpush1.msra.mxu0 0.0
    %1236 = vmatprep.subr.mxu0 0.0
    %1237 = vmatpush1.msra.mxu0 0.0
    %1238 = vmatprep.subr.mxu0 0.0
    %1239 = vmatpush1.msra.mxu0 0.0
    %1240 = vmatprep.subr.mxu0 0.0
    %1241 = vmatpush1.msra.mxu0 0.0
    %1242 = vmatprep.subr.mxu0 0.0
    %1243 = vmatpush1.msra.mxu0 0.0
    %1244 = vmatprep.subr.mxu0 0.0
    %1245 = vmatpush1.msra.mxu0 0.0
    %1246 = vmatprep.subr.mxu0 0.0
    %1247 = vmatpush1.msra.mxu0 0.0
    %1248 = vmatprep.subr.mxu0 0.0
    %1249 = vmatpush1.msra.mxu0 0.0
    %1250 = vmatprep.subr.mxu0 0.0
    %1251 = vmatpush1.msra.mxu0 0.0
    %1252 = vmatprep.subr.mxu0 0.0
    %1253 = vmatpush1.msra.mxu0 0.0
    %1254 = vmatprep.subr.mxu0 0.0
    %1255 = vmatpush1.msra.mxu0 0.0
    %1256 = vmatprep.subr.mxu0 0.0
    %1257 = vmatpush1.msra.mxu0 0.0
    %1258 = vmatprep.subr.mxu0 0.0
    %1259 = vmatpush1.msra.mxu0 0.0
    %1260 = vmatprep.mubr.f32.mxu0 0.0
    %1261 = vmatmul.mubr.f32.gmra.mrb[0].mxu0 %v1195
    %v1262 = vpop.f32.mrb[0].mxu0
    %v1263 = vadd.f32 0.0, %v1262
    %v1264 = vpop.f32.mrb[0].mxu0
    %v1265 = vadd.f32 0.0, %v1264
    %1266 = vdwg.mxu0
    %1267 = vmatprep.subr.mxu0 %v414
    %1268 = vmatpush1.msra.mxu0 %v413
    %1269 = vmatprep.subr.mxu0 %v418
    %1270 = vmatpush1.msra.mxu0 %v417
    %1271 = vmatprep.subr.mxu0 %v422
    %1272 = vmatpush1.msra.mxu0 %v421
    %1273 = vmatprep.subr.mxu0 %v426
    %1274 = vmatpush1.msra.mxu0 %v425
    %1275 = vmatprep.subr.mxu0 %v430
    %1276 = vmatpush1.msra.mxu0 %v429
    %1277 = vmatprep.subr.mxu0 %v434
    %1278 = vmatpush1.msra.mxu0 %v433
    %1279 = vmatprep.subr.mxu0 %v438
    %1280 = vmatpush1.msra.mxu0 %v437
    %1281 = vmatprep.subr.mxu0 %v442
    %1282 = vmatpush1.msra.mxu0 %v441
    %1283 = vmatprep.subr.mxu0 %v446
    %1284 = vmatpush1.msra.mxu0 %v445
    %1285 = vmatprep.subr.mxu0 %v450
    %1286 = vmatpush1.msra.mxu0 %v449
    %1287 = vmatprep.subr.mxu0 %v454
    %1288 = vmatpush1.msra.mxu0 %v453
    %1289 = vmatprep.subr.mxu0 %v458
    %1290 = vmatpush1.msra.mxu0 %v457
    %1291 = vmatprep.subr.mxu0 %v462
    %1292 = vmatpush1.msra.mxu0 %v461
    %1293 = vmatprep.subr.mxu0 %v466
    %1294 = vmatpush1.msra.mxu0 %v465
    %1295 = vmatprep.subr.mxu0 %v470
    %1296 = vmatpush1.msra.mxu0 %v469
    %1297 = vmatprep.subr.mxu0 %v474
    %1298 = vmatpush1.msra.mxu0 %v473
    %1299 = vmatprep.subr.mxu0 0.0
    %1300 = vmatpush1.msra.mxu0 0.0
    %1301 = vmatprep.subr.mxu0 0.0
    %1302 = vmatpush1.msra.mxu0 0.0
    %1303 = vmatprep.subr.mxu0 0.0
    %1304 = vmatpush1.msra.mxu0 0.0
    %1305 = vmatprep.subr.mxu0 0.0
    %1306 = vmatpush1.msra.mxu0 0.0
    %1307 = vmatprep.subr.mxu0 0.0
    %1308 = vmatpush1.msra.mxu0 0.0
    %1309 = vmatprep.subr.mxu0 0.0
    %1310 = vmatpush1.msra.mxu0 0.0
    %1311 = vmatprep.subr.mxu0 0.0
    %1312 = vmatpush1.msra.mxu0 0.0
    %1313 = vmatprep.subr.mxu0 0.0
    %1314 = vmatpush1.msra.mxu0 0.0
    %1315 = vmatprep.subr.mxu0 0.0
    %1316 = vmatpush1.msra.mxu0 0.0
    %1317 = vmatprep.subr.mxu0 0.0
    %1318 = vmatpush1.msra.mxu0 0.0
    %1319 = vmatprep.subr.mxu0 0.0
    %1320 = vmatpush1.msra.mxu0 0.0
    %1321 = vmatprep.subr.mxu0 0.0
    %1322 = vmatpush1.msra.mxu0 0.0
    %1323 = vmatprep.subr.mxu0 0.0
    %1324 = vmatpush1.msra.mxu0 0.0
    %1325 = vmatprep.subr.mxu0 0.0
    %1326 = vmatpush1.msra.mxu0 0.0
    %1327 = vmatprep.subr.mxu0 0.0
    %1328 = vmatpush1.msra.mxu0 0.0
    %1329 = vmatprep.subr.mxu0 0.0
    %1330 = vmatpush1.msra.mxu0 0.0
    %1331 = vmatprep.mubr.f32.mxu0 0.0
    %1332 = vmatmul.mubr.f32.gmra.mrb[0].mxu0 %v1195
    %v1333 = vpop.f32.mrb[0].mxu0
    %v1334 = vadd.f32 0.0, %v1333
    %v1335 = vpop.f32.mrb[0].mxu0
    %v1336 = vadd.f32 0.0, %v1335
    %1337 = vdwg.mxu0
    %v1338 = vadd.f32 %v1191, %v1263
    %v1339 = vadd.f32 %v1192, %v1265
    %v1340 = vadd.f32 %v1193, %v1334
    %v1341 = vadd.f32 %v1194, %v1336
    %v1342 = vxor.u32 %v1338, 2147483648
    %v1343 = vmul.f32 %v1342, 1.442695
    %v1344 = vpow.pop %v1343
    %v1345 = vadd.f32 %v1344, 1.0
    %v1346 = vrcp.pop %v1345
    %v1347 = vmul.f32 1.0, %v1346
    %v1348 = vxor.u32 %v1339, 2147483648
    %v1349 = vmul.f32 %v1348, 1.442695
    %v1350 = vpow.pop %v1349
    %v1351 = vadd.f32 %v1350, 1.0
    %v1352 = vrcp.pop %v1351
    %v1353 = vmul.f32 1.0, %v1352
    %v1354 = vtanh.pop %v1340
    %v1355 = vxor.u32 %v1341, 2147483648
    %v1356 = vmul.f32 %v1355, 1.442695
    %v1357 = vpow.pop %v1356
    %v1358 = vadd.f32 %v1357, 1.0
    %v1359 = vrcp.pop %v1358
    %v1360 = vmul.f32 1.0, %v1359
    %v1361 = vld [vmem:[#allocation4] sm:$0xff]
    %v1362 = vmul.f32 %v1353, %v1361
    %v1363 = vmul.f32 %v1347, %v1354
    %v1364 = vadd.f32 %v1362, %v1363
    %v1365 = vtanh.pop %v1364
    %v1366 = vmul.f32 %v1360, %v1365
    %1367 = vst [vmem:[#allocation4] sm:$0xff] %v1364
    %1368 = vst [vmem:[#allocation3] sm:$0xff] %v1366
    %1369 = vst [vmem:[#allocation6 + $0x20] sm:$0xff] %v1366
    %v1370 = vld [vmem:[#allocation2 + $0xa0] sm:$0xff]
    %v1371 = vld [vmem:[#allocation2 + $0xa8] sm:$0xff]
    %v1372 = vld [vmem:[#allocation2 + $0xb0] sm:$0xff]
    %v1373 = vld [vmem:[#allocation2 + $0xb8] sm:$0xff]
    %v1374 = vld [vmem:[#allocation3] sm:$0xff]
    %1375 = vmatprep.subr.mxu0 %v412
    %1376 = vmatpush1.msra.mxu0 %v411
    %1377 = vmatprep.subr.mxu0 %v416
    %1378 = vmatpush1.msra.mxu0 %v415
    %1379 = vmatprep.subr.mxu0 %v420
    %1380 = vmatpush1.msra.mxu0 %v419
    %1381 = vmatprep.subr.mxu0 %v424
    %1382 = vmatpush1.msra.mxu0 %v423
    %1383 = vmatprep.subr.mxu0 %v428
    %1384 = vmatpush1.msra.mxu0 %v427
    %1385 = vmatprep.subr.mxu0 %v432
    %1386 = vmatpush1.msra.mxu0 %v431
    %1387 = vmatprep.subr.mxu0 %v436
    %1388 = vmatpush1.msra.mxu0 %v435
    %1389 = vmatprep.subr.mxu0 %v440
    %1390 = vmatpush1.msra.mxu0 %v439
    %1391 = vmatprep.subr.mxu0 %v444
    %1392 = vmatpush1.msra.mxu0 %v443
    %1393 = vmatprep.subr.mxu0 %v448
    %1394 = vmatpush1.msra.mxu0 %v447
    %1395 = vmatprep.subr.mxu0 %v452
    %1396 = vmatpush1.msra.mxu0 %v451
    %1397 = vmatprep.subr.mxu0 %v456
    %1398 = vmatpush1.msra.mxu0 %v455
    %1399 = vmatprep.subr.mxu0 %v460
    %1400 = vmatpush1.msra.mxu0 %v459
    %1401 = vmatprep.subr.mxu0 %v464
    %1402 = vmatpush1.msra.mxu0 %v463
    %1403 = vmatprep.subr.mxu0 %v468
    %1404 = vmatpush1.msra.mxu0 %v467
    %1405 = vmatprep.subr.mxu0 %v472
    %1406 = vmatpush1.msra.mxu0 %v471
    %1407 = vmatprep.subr.mxu0 0.0
    %1408 = vmatpush1.msra.mxu0 0.0
    %1409 = vmatprep.subr.mxu0 0.0
    %1410 = vmatpush1.msra.mxu0 0.0
    %1411 = vmatprep.subr.mxu0 0.0
    %1412 = vmatpush1.msra.mxu0 0.0
    %1413 = vmatprep.subr.mxu0 0.0
    %1414 = vmatpush1.msra.mxu0 0.0
    %1415 = vmatprep.subr.mxu0 0.0
    %1416 = vmatpush1.msra.mxu0 0.0
    %1417 = vmatprep.subr.mxu0 0.0
    %1418 = vmatpush1.msra.mxu0 0.0
    %1419 = vmatprep.subr.mxu0 0.0
    %1420 = vmatpush1.msra.mxu0 0.0
    %1421 = vmatprep.subr.mxu0 0.0
    %1422 = vmatpush1.msra.mxu0 0.0
    %1423 = vmatprep.subr.mxu0 0.0
    %1424 = vmatpush1.msra.mxu0 0.0
    %1425 = vmatprep.subr.mxu0 0.0
    %1426 = vmatpush1.msra.mxu0 0.0
    %1427 = vmatprep.subr.mxu0 0.0
    %1428 = vmatpush1.msra.mxu0 0.0
    %1429 = vmatprep.subr.mxu0 0.0
    %1430 = vmatpush1.msra.mxu0 0.0
    %1431 = vmatprep.subr.mxu0 0.0
    %1432 = vmatpush1.msra.mxu0 0.0
    %1433 = vmatprep.subr.mxu0 0.0
    %1434 = vmatpush1.msra.mxu0 0.0
    %1435 = vmatprep.subr.mxu0 0.0
    %1436 = vmatpush1.msra.mxu0 0.0
    %1437 = vmatprep.subr.mxu0 0.0
    %1438 = vmatpush1.msra.mxu0 0.0
    %1439 = vmatprep.mubr.f32.mxu0 0.0
    %1440 = vmatmul.mubr.f32.gmra.mrb[0].mxu0 %v1374
    %v1441 = vpop.f32.mrb[0].mxu0
    %v1442 = vadd.f32 0.0, %v1441
    %v1443 = vpop.f32.mrb[0].mxu0
    %v1444 = vadd.f32 0.0, %v1443
    %1445 = vdwg.mxu0
    %1446 = vmatprep.subr.mxu0 %v414
    %1447 = vmatpush1.msra.mxu0 %v413
    %1448 = vmatprep.subr.mxu0 %v418
    %1449 = vmatpush1.msra.mxu0 %v417
    %1450 = vmatprep.subr.mxu0 %v422
    %1451 = vmatpush1.msra.mxu0 %v421
    %1452 = vmatprep.subr.mxu0 %v426
    %1453 = vmatpush1.msra.mxu0 %v425
    %1454 = vmatprep.subr.mxu0 %v430
    %1455 = vmatpush1.msra.mxu0 %v429
    %1456 = vmatprep.subr.mxu0 %v434
    %1457 = vmatpush1.msra.mxu0 %v433
    %1458 = vmatprep.subr.mxu0 %v438
    %1459 = vmatpush1.msra.mxu0 %v437
    %1460 = vmatprep.subr.mxu0 %v442
    %1461 = vmatpush1.msra.mxu0 %v441
    %1462 = vmatprep.subr.mxu0 %v446
    %1463 = vmatpush1.msra.mxu0 %v445
    %1464 = vmatprep.subr.mxu0 %v450
    %1465 = vmatpush1.msra.mxu0 %v449
    %1466 = vmatprep.subr.mxu0 %v454
    %1467 = vmatpush1.msra.mxu0 %v453
    %1468 = vmatprep.subr.mxu0 %v458
    %1469 = vmatpush1.msra.mxu0 %v457
    %1470 = vmatprep.subr.mxu0 %v462
    %1471 = vmatpush1.msra.mxu0 %v461
    %1472 = vmatprep.subr.mxu0 %v466
    %1473 = vmatpush1.msra.mxu0 %v465
    %1474 = vmatprep.subr.mxu0 %v470
    %1475 = vmatpush1.msra.mxu0 %v469
    %1476 = vmatprep.subr.mxu0 %v474
    %1477 = vmatpush1.msra.mxu0 %v473
    %1478 = vmatprep.subr.mxu0 0.0
    %1479 = vmatpush1.msra.mxu0 0.0
    %1480 = vmatprep.subr.mxu0 0.0
    %1481 = vmatpush1.msra.mxu0 0.0
    %1482 = vmatprep.subr.mxu0 0.0
    %1483 = vmatpush1.msra.mxu0 0.0
    %1484 = vmatprep.subr.mxu0 0.0
    %1485 = vmatpush1.msra.mxu0 0.0
    %1486 = vmatprep.subr.mxu0 0.0
    %1487 = vmatpush1.msra.mxu0 0.0
    %1488 = vmatprep.subr.mxu0 0.0
    %1489 = vmatpush1.msra.mxu0 0.0
    %1490 = vmatprep.subr.mxu0 0.0
    %1491 = vmatpush1.msra.mxu0 0.0
    %1492 = vmatprep.subr.mxu0 0.0
    %1493 = vmatpush1.msra.mxu0 0.0
    %1494 = vmatprep.subr.mxu0 0.0
    %1495 = vmatpush1.msra.mxu0 0.0
    %1496 = vmatprep.subr.mxu0 0.0
    %1497 = vmatpush1.msra.mxu0 0.0
    %1498 = vmatprep.subr.mxu0 0.0
    %1499 = vmatpush1.msra.mxu0 0.0
    %1500 = vmatprep.subr.mxu0 0.0
    %1501 = vmatpush1.msra.mxu0 0.0
    %1502 = vmatprep.subr.mxu0 0.0
    %1503 = vmatpush1.msra.mxu0 0.0
    %1504 = vmatprep.subr.mxu0 0.0
    %1505 = vmatpush1.msra.mxu0 0.0
    %1506 = vmatprep.subr.mxu0 0.0
    %1507 = vmatpush1.msra.mxu0 0.0
    %1508 = vmatprep.subr.mxu0 0.0
    %1509 = vmatpush1.msra.mxu0 0.0
    %1510 = vmatprep.mubr.f32.mxu0 0.0
    %1511 = vmatmul.mubr.f32.gmra.mrb[0].mxu0 %v1374
    %v1512 = vpop.f32.mrb[0].mxu0
    %v1513 = vadd.f32 0.0, %v1512
    %v1514 = vpop.f32.mrb[0].mxu0
    %v1515 = vadd.f32 0.0, %v1514
    %1516 = vdwg.mxu0
    %v1517 = vadd.f32 %v1370, %v1442
    %v1518 = vadd.f32 %v1371, %v1444
    %v1519 = vadd.f32 %v1372, %v1513
    %v1520 = vadd.f32 %v1373, %v1515
    %v1521 = vxor.u32 %v1517, 2147483648
    %v1522 = vmul.f32 %v1521, 1.442695
    %v1523 = vpow.pop %v1522
    %v1524 = vadd.f32 %v1523, 1.0
    %v1525 = vrcp.pop %v1524
    %v1526 = vmul.f32 1.0, %v1525
    %v1527 = vxor.u32 %v1518, 2147483648
    %v1528 = vmul.f32 %v1527, 1.442695
    %v1529 = vpow.pop %v1528
    %v1530 = vadd.f32 %v1529, 1.0
    %v1531 = vrcp.pop %v1530
    %v1532 = vmul.f32 1.0, %v1531
    %v1533 = vtanh.pop %v1519
    %v1534 = vxor.u32 %v1520, 2147483648
    %v1535 = vmul.f32 %v1534, 1.442695
    %v1536 = vpow.pop %v1535
    %v1537 = vadd.f32 %v1536, 1.0
    %v1538 = vrcp.pop %v1537
    %v1539 = vmul.f32 1.0, %v1538
    %v1540 = vld [vmem:[#allocation4] sm:$0xff]
    %v1541 = vmul.f32 %v1532, %v1540
    %v1542 = vmul.f32 %v1526, %v1533
    %v1543 = vadd.f32 %v1541, %v1542
    %v1544 = vtanh.pop %v1543
    %v1545 = vmul.f32 %v1539, %v1544
    %1546 = vst [vmem:[#allocation4] sm:$0xff] %v1543
    %1547 = vst [vmem:[#allocation3] sm:$0xff] %v1545
    %1548 = vst [vmem:[#allocation6 + $0x28] sm:$0xff] %v1545
    %v1549 = vld [vmem:[#allocation2 + $0xc0] sm:$0xff]
    %v1550 = vld [vmem:[#allocation2 + $0xc8] sm:$0xff]
    %v1551 = vld [vmem:[#allocation2 + $0xd0] sm:$0xff]
    %v1552 = vld [vmem:[#allocation2 + $0xd8] sm:$0xff]
    %v1553 = vld [vmem:[#allocation3] sm:$0xff]
    %1554 = vmatprep.subr.mxu0 %v412
    %1555 = vmatpush1.msra.mxu0 %v411
    %1556 = vmatprep.subr.mxu0 %v416
    %1557 = vmatpush1.msra.mxu0 %v415
    %1558 = vmatprep.subr.mxu0 %v420
    %1559 = vmatpush1.msra.mxu0 %v419
    %1560 = vmatprep.subr.mxu0 %v424
    %1561 = vmatpush1.msra.mxu0 %v423
    %1562 = vmatprep.subr.mxu0 %v428
    %1563 = vmatpush1.msra.mxu0 %v427
    %1564 = vmatprep.subr.mxu0 %v432
    %1565 = vmatpush1.msra.mxu0 %v431
    %1566 = vmatprep.subr.mxu0 %v436
    %1567 = vmatpush1.msra.mxu0 %v435
    %1568 = vmatprep.subr.mxu0 %v440
    %1569 = vmatpush1.msra.mxu0 %v439
    %1570 = vmatprep.subr.mxu0 %v444
    %1571 = vmatpush1.msra.mxu0 %v443
    %1572 = vmatprep.subr.mxu0 %v448
    %1573 = vmatpush1.msra.mxu0 %v447
    %1574 = vmatprep.subr.mxu0 %v452
    %1575 = vmatpush1.msra.mxu0 %v451
    %1576 = vmatprep.subr.mxu0 %v456
    %1577 = vmatpush1.msra.mxu0 %v455
    %1578 = vmatprep.subr.mxu0 %v460
    %1579 = vmatpush1.msra.mxu0 %v459
    %1580 = vmatprep.subr.mxu0 %v464
    %1581 = vmatpush1.msra.mxu0 %v463
    %1582 = vmatprep.subr.mxu0 %v468
    %1583 = vmatpush1.msra.mxu0 %v467
    %1584 = vmatprep.subr.mxu0 %v472
    %1585 = vmatpush1.msra.mxu0 %v471
    %1586 = vmatprep.subr.mxu0 0.0
    %1587 = vmatpush1.msra.mxu0 0.0
    %1588 = vmatprep.subr.mxu0 0.0
    %1589 = vmatpush1.msra.mxu0 0.0
    %1590 = vmatprep.subr.mxu0 0.0
    %1591 = vmatpush1.msra.mxu0 0.0
    %1592 = vmatprep.subr.mxu0 0.0
    %1593 = vmatpush1.msra.mxu0 0.0
    %1594 = vmatprep.subr.mxu0 0.0
    %1595 = vmatpush1.msra.mxu0 0.0
    %1596 = vmatprep.subr.mxu0 0.0
    %1597 = vmatpush1.msra.mxu0 0.0
    %1598 = vmatprep.subr.mxu0 0.0
    %1599 = vmatpush1.msra.mxu0 0.0
    %1600 = vmatprep.subr.mxu0 0.0
    %1601 = vmatpush1.msra.mxu0 0.0
    %1602 = vmatprep.subr.mxu0 0.0
    %1603 = vmatpush1.msra.mxu0 0.0
    %1604 = vmatprep.subr.mxu0 0.0
    %1605 = vmatpush1.msra.mxu0 0.0
    %1606 = vmatprep.subr.mxu0 0.0
    %1607 = vmatpush1.msra.mxu0 0.0
    %1608 = vmatprep.subr.mxu0 0.0
    %1609 = vmatpush1.msra.mxu0 0.0
    %1610 = vmatprep.subr.mxu0 0.0
    %1611 = vmatpush1.msra.mxu0 0.0
    %1612 = vmatprep.subr.mxu0 0.0
    %1613 = vmatpush1.msra.mxu0 0.0
    %1614 = vmatprep.subr.mxu0 0.0
    %1615 = vmatpush1.msra.mxu0 0.0
    %1616 = vmatprep.subr.mxu0 0.0
    %1617 = vmatpush1.msra.mxu0 0.0
    %1618 = vmatprep.mubr.f32.mxu0 0.0
    %1619 = vmatmul.mubr.f32.gmra.mrb[0].mxu0 %v1553
    %v1620 = vpop.f32.mrb[0].mxu0
    %v1621 = vadd.f32 0.0, %v1620
    %v1622 = vpop.f32.mrb[0].mxu0
    %v1623 = vadd.f32 0.0, %v1622
    %1624 = vdwg.mxu0
    %1625 = vmatprep.subr.mxu0 %v414
    %1626 = vmatpush1.msra.mxu0 %v413
    %1627 = vmatprep.subr.mxu0 %v418
    %1628 = vmatpush1.msra.mxu0 %v417
    %1629 = vmatprep.subr.mxu0 %v422
    %1630 = vmatpush1.msra.mxu0 %v421
    %1631 = vmatprep.subr.mxu0 %v426
    %1632 = vmatpush1.msra.mxu0 %v425
    %1633 = vmatprep.subr.mxu0 %v430
    %1634 = vmatpush1.msra.mxu0 %v429
    %1635 = vmatprep.subr.mxu0 %v434
    %1636 = vmatpush1.msra.mxu0 %v433
    %1637 = vmatprep.subr.mxu0 %v438
    %1638 = vmatpush1.msra.mxu0 %v437
    %1639 = vmatprep.subr.mxu0 %v442
    %1640 = vmatpush1.msra.mxu0 %v441
    %1641 = vmatprep.subr.mxu0 %v446
    %1642 = vmatpush1.msra.mxu0 %v445
    %1643 = vmatprep.subr.mxu0 %v450
    %1644 = vmatpush1.msra.mxu0 %v449
    %1645 = vmatprep.subr.mxu0 %v454
    %1646 = vmatpush1.msra.mxu0 %v453
    %1647 = vmatprep.subr.mxu0 %v458
    %1648 = vmatpush1.msra.mxu0 %v457
    %1649 = vmatprep.subr.mxu0 %v462
    %1650 = vmatpush1.msra.mxu0 %v461
    %1651 = vmatprep.subr.mxu0 %v466
    %1652 = vmatpush1.msra.mxu0 %v465
    %1653 = vmatprep.subr.mxu0 %v470
    %1654 = vmatpush1.msra.mxu0 %v469
    %1655 = vmatprep.subr.mxu0 %v474
    %1656 = vmatpush1.msra.mxu0 %v473
    %1657 = vmatprep.subr.mxu0 0.0
    %1658 = vmatpush1.msra.mxu0 0.0
    %1659 = vmatprep.subr.mxu0 0.0
    %1660 = vmatpush1.msra.mxu0 0.0
    %1661 = vmatprep.subr.mxu0 0.0
    %1662 = vmatpush1.msra.mxu0 0.0
    %1663 = vmatprep.subr.mxu0 0.0
    %1664 = vmatpush1.msra.mxu0 0.0
    %1665 = vmatprep.subr.mxu0 0.0
    %1666 = vmatpush1.msra.mxu0 0.0
    %1667 = vmatprep.subr.mxu0 0.0
    %1668 = vmatpush1.msra.mxu0 0.0
    %1669 = vmatprep.subr.mxu0 0.0
    %1670 = vmatpush1.msra.mxu0 0.0
    %1671 = vmatprep.subr.mxu0 0.0
    %1672 = vmatpush1.msra.mxu0 0.0
    %1673 = vmatprep.subr.mxu0 0.0
    %1674 = vmatpush1.msra.mxu0 0.0
    %1675 = vmatprep.subr.mxu0 0.0
    %1676 = vmatpush1.msra.mxu0 0.0
    %1677 = vmatprep.subr.mxu0 0.0
    %1678 = vmatpush1.msra.mxu0 0.0
    %1679 = vmatprep.subr.mxu0 0.0
    %1680 = vmatpush1.msra.mxu0 0.0
    %1681 = vmatprep.subr.mxu0 0.0
    %1682 = vmatpush1.msra.mxu0 0.0
    %1683 = vmatprep.subr.mxu0 0.0
    %1684 = vmatpush1.msra.mxu0 0.0
    %1685 = vmatprep.subr.mxu0 0.0
    %1686 = vmatpush1.msra.mxu0 0.0
    %1687 = vmatprep.subr.mxu0 0.0
    %1688 = vmatpush1.msra.mxu0 0.0
    %1689 = vmatprep.mubr.f32.mxu0 0.0
    %1690 = vmatmul.mubr.f32.gmra.mrb[0].mxu0 %v1553
    %v1691 = vpop.f32.mrb[0].mxu0
    %v1692 = vadd.f32 0.0, %v1691
    %v1693 = vpop.f32.mrb[0].mxu0
    %v1694 = vadd.f32 0.0, %v1693
    %1695 = vdwg.mxu0
    %v1696 = vadd.f32 %v1549, %v1621
    %v1697 = vadd.f32 %v1550, %v1623
    %v1698 = vadd.f32 %v1551, %v1692
    %v1699 = vadd.f32 %v1552, %v1694
    %v1700 = vxor.u32 %v1696, 2147483648
    %v1701 = vmul.f32 %v1700, 1.442695
    %v1702 = vpow.pop %v1701
    %v1703 = vadd.f32 %v1702, 1.0
    %v1704 = vrcp.pop %v1703
    %v1705 = vmul.f32 1.0, %v1704
    %v1706 = vxor.u32 %v1697, 2147483648
    %v1707 = vmul.f32 %v1706, 1.442695
    %v1708 = vpow.pop %v1707
    %v1709 = vadd.f32 %v1708, 1.0
    %v1710 = vrcp.pop %v1709
    %v1711 = vmul.f32 1.0, %v1710
    %v1712 = vtanh.pop %v1698
    %v1713 = vxor.u32 %v1699, 2147483648
    %v1714 = vmul.f32 %v1713, 1.442695
    %v1715 = vpow.pop %v1714
    %v1716 = vadd.f32 %v1715, 1.0
    %v1717 = vrcp.pop %v1716
    %v1718 = vmul.f32 1.0, %v1717
    %v1719 = vld [vmem:[#allocation4] sm:$0xff]
    %v1720 = vmul.f32 %v1711, %v1719
    %v1721 = vmul.f32 %v1705, %v1712
    %v1722 = vadd.f32 %v1720, %v1721
    %v1723 = vtanh.pop %v1722
    %v1724 = vmul.f32 %v1718, %v1723
    %1725 = vst [vmem:[#allocation4] sm:$0xff] %v1722
    %1726 = vst [vmem:[#allocation3] sm:$0xff] %v1724
    %1727 = vst [vmem:[#allocation6 + $0x30] sm:$0xff] %v1724
    %v1728 = vld [vmem:[#allocation2 + $0xe0] sm:$0xff]
    %v1729 = vld [vmem:[#allocation2 + $0xe8] sm:$0xff]
    %v1730 = vld [vmem:[#allocation2 + $0xf0] sm:$0xff]
    %v1731 = vld [vmem:[#allocation2 + $0xf8] sm:$0xff]
    %v1732 = vld [vmem:[#allocation3] sm:$0xff]
    %1733 = vmatprep.subr.mxu0 %v412
    %1734 = vmatpush1.msra.mxu0 %v411
    %1735 = vmatprep.subr.mxu0 %v416
    %1736 = vmatpush1.msra.mxu0 %v415
    %1737 = vmatprep.subr.mxu0 %v420
    %1738 = vmatpush1.msra.mxu0 %v419
    %1739 = vmatprep.subr.mxu0 %v424
    %1740 = vmatpush1.msra.mxu0 %v423
    %1741 = vmatprep.subr.mxu0 %v428
    %1742 = vmatpush1.msra.mxu0 %v427
    %1743 = vmatprep.subr.mxu0 %v432
    %1744 = vmatpush1.msra.mxu0 %v431
    %1745 = vmatprep.subr.mxu0 %v436
    %1746 = vmatpush1.msra.mxu0 %v435
    %1747 = vmatprep.subr.mxu0 %v440
    %1748 = vmatpush1.msra.mxu0 %v439
    %1749 = vmatprep.subr.mxu0 %v444
    %1750 = vmatpush1.msra.mxu0 %v443
    %1751 = vmatprep.subr.mxu0 %v448
    %1752 = vmatpush1.msra.mxu0 %v447
    %1753 = vmatprep.subr.mxu0 %v452
    %1754 = vmatpush1.msra.mxu0 %v451
    %1755 = vmatprep.subr.mxu0 %v456
    %1756 = vmatpush1.msra.mxu0 %v455
    %1757 = vmatprep.subr.mxu0 %v460
    %1758 = vmatpush1.msra.mxu0 %v459
    %1759 = vmatprep.subr.mxu0 %v464
    %1760 = vmatpush1.msra.mxu0 %v463
    %1761 = vmatprep.subr.mxu0 %v468
    %1762 = vmatpush1.msra.mxu0 %v467
    %1763 = vmatprep.subr.mxu0 %v472
    %1764 = vmatpush1.msra.mxu0 %v471
    %1765 = vmatprep.subr.mxu0 0.0
    %1766 = vmatpush1.msra.mxu0 0.0
    %1767 = vmatprep.subr.mxu0 0.0
    %1768 = vmatpush1.msra.mxu0 0.0
    %1769 = vmatprep.subr.mxu0 0.0
    %1770 = vmatpush1.msra.mxu0 0.0
    %1771 = vmatprep.subr.mxu0 0.0
    %1772 = vmatpush1.msra.mxu0 0.0
    %1773 = vmatprep.subr.mxu0 0.0
    %1774 = vmatpush1.msra.mxu0 0.0
    %1775 = vmatprep.subr.mxu0 0.0
    %1776 = vmatpush1.msra.mxu0 0.0
    %1777 = vmatprep.subr.mxu0 0.0
    %1778 = vmatpush1.msra.mxu0 0.0
    %1779 = vmatprep.subr.mxu0 0.0
    %1780 = vmatpush1.msra.mxu0 0.0
    %1781 = vmatprep.subr.mxu0 0.0
    %1782 = vmatpush1.msra.mxu0 0.0
    %1783 = vmatprep.subr.mxu0 0.0
    %1784 = vmatpush1.msra.mxu0 0.0
    %1785 = vmatprep.subr.mxu0 0.0
    %1786 = vmatpush1.msra.mxu0 0.0
    %1787 = vmatprep.subr.mxu0 0.0
    %1788 = vmatpush1.msra.mxu0 0.0
    %1789 = vmatprep.subr.mxu0 0.0
    %1790 = vmatpush1.msra.mxu0 0.0
    %1791 = vmatprep.subr.mxu0 0.0
    %1792 = vmatpush1.msra.mxu0 0.0
    %1793 = vmatprep.subr.mxu0 0.0
    %1794 = vmatpush1.msra.mxu0 0.0
    %1795 = vmatprep.subr.mxu0 0.0
    %1796 = vmatpush1.msra.mxu0 0.0
    %1797 = vmatprep.mubr.f32.mxu0 0.0
    %1798 = vmatmul.mubr.f32.gmra.mrb[0].mxu0 %v1732
    %v1799 = vpop.f32.mrb[0].mxu0
    %v1800 = vadd.f32 0.0, %v1799
    %v1801 = vpop.f32.mrb[0].mxu0
    %v1802 = vadd.f32 0.0, %v1801
    %1803 = vdwg.mxu0
    %1804 = vmatprep.subr.mxu0 %v414
    %1805 = vmatpush1.msra.mxu0 %v413
    %1806 = vmatprep.subr.mxu0 %v418
    %1807 = vmatpush1.msra.mxu0 %v417
    %1808 = vmatprep.subr.mxu0 %v422
    %1809 = vmatpush1.msra.mxu0 %v421
    %1810 = vmatprep.subr.mxu0 %v426
    %1811 = vmatpush1.msra.mxu0 %v425
    %1812 = vmatprep.subr.mxu0 %v430
    %1813 = vmatpush1.msra.mxu0 %v429
    %1814 = vmatprep.subr.mxu0 %v434
    %1815 = vmatpush1.msra.mxu0 %v433
    %1816 = vmatprep.subr.mxu0 %v438
    %1817 = vmatpush1.msra.mxu0 %v437
    %1818 = vmatprep.subr.mxu0 %v442
    %1819 = vmatpush1.msra.mxu0 %v441
    %1820 = vmatprep.subr.mxu0 %v446
    %1821 = vmatpush1.msra.mxu0 %v445
    %1822 = vmatprep.subr.mxu0 %v450
    %1823 = vmatpush1.msra.mxu0 %v449
    %1824 = vmatprep.subr.mxu0 %v454
    %1825 = vmatpush1.msra.mxu0 %v453
    %1826 = vmatprep.subr.mxu0 %v458
    %1827 = vmatpush1.msra.mxu0 %v457
    %1828 = vmatprep.subr.mxu0 %v462
    %1829 = vmatpush1.msra.mxu0 %v461
    %1830 = vmatprep.subr.mxu0 %v466
    %1831 = vmatpush1.msra.mxu0 %v465
    %1832 = vmatprep.subr.mxu0 %v470
    %1833 = vmatpush1.msra.mxu0 %v469
    %1834 = vmatprep.subr.mxu0 %v474
    %1835 = vmatpush1.msra.mxu0 %v473
    %1836 = vmatprep.subr.mxu0 0.0
    %1837 = vmatpush1.msra.mxu0 0.0
    %1838 = vmatprep.subr.mxu0 0.0
    %1839 = vmatpush1.msra.mxu0 0.0
    %1840 = vmatprep.subr.mxu0 0.0
    %1841 = vmatpush1.msra.mxu0 0.0
    %1842 = vmatprep.subr.mxu0 0.0
    %1843 = vmatpush1.msra.mxu0 0.0
    %1844 = vmatprep.subr.mxu0 0.0
    %1845 = vmatpush1.msra.mxu0 0.0
    %1846 = vmatprep.subr.mxu0 0.0
    %1847 = vmatpush1.msra.mxu0 0.0
    %1848 = vmatprep.subr.mxu0 0.0
    %1849 = vmatpush1.msra.mxu0 0.0
    %1850 = vmatprep.subr.mxu0 0.0
    %1851 = vmatpush1.msra.mxu0 0.0
    %1852 = vmatprep.subr.mxu0 0.0
    %1853 = vmatpush1.msra.mxu0 0.0
    %1854 = vmatprep.subr.mxu0 0.0
    %1855 = vmatpush1.msra.mxu0 0.0
    %1856 = vmatprep.subr.mxu0 0.0
    %1857 = vmatpush1.msra.mxu0 0.0
    %1858 = vmatprep.subr.mxu0 0.0
    %1859 = vmatpush1.msra.mxu0 0.0
    %1860 = vmatprep.subr.mxu0 0.0
    %1861 = vmatpush1.msra.mxu0 0.0
    %1862 = vmatprep.subr.mxu0 0.0
    %1863 = vmatpush1.msra.mxu0 0.0
    %1864 = vmatprep.subr.mxu0 0.0
    %1865 = vmatpush1.msra.mxu0 0.0
    %1866 = vmatprep.subr.mxu0 0.0
    %1867 = vmatpush1.msra.mxu0 0.0
    %1868 = vmatprep.mubr.f32.mxu0 0.0
    %1869 = vmatmul.mubr.f32.gmra.mrb[0].mxu0 %v1732
    %v1870 = vpop.f32.mrb[0].mxu0
    %v1871 = vadd.f32 0.0, %v1870
    %v1872 = vpop.f32.mrb[0].mxu0
    %v1873 = vadd.f32 0.0, %v1872
    %1874 = vdwg.mxu0
    %v1875 = vadd.f32 %v1728, %v1800
    %v1876 = vadd.f32 %v1729, %v1802
    %v1877 = vadd.f32 %v1730, %v1871
    %v1878 = vadd.f32 %v1731, %v1873
    %v1879 = vxor.u32 %v1875, 2147483648
    %v1880 = vmul.f32 %v1879, 1.442695
    %v1881 = vpow.pop %v1880
    %v1882 = vadd.f32 %v1881, 1.0
    %v1883 = vrcp.pop %v1882
    %v1884 = vmul.f32 1.0, %v1883
    %v1885 = vxor.u32 %v1876, 2147483648
    %v1886 = vmul.f32 %v1885, 1.442695
    %v1887 = vpow.pop %v1886
    %v1888 = vadd.f32 %v1887, 1.0
    %v1889 = vrcp.pop %v1888
    %v1890 = vmul.f32 1.0, %v1889
    %v1891 = vtanh.pop %v1877
    %v1892 = vxor.u32 %v1878, 2147483648
    %v1893 = vmul.f32 %v1892, 1.442695
    %v1894 = vpow.pop %v1893
    %v1895 = vadd.f32 %v1894, 1.0
    %v1896 = vrcp.pop %v1895
    %v1897 = vmul.f32 1.0, %v1896
    %v1898 = vld [vmem:[#allocation4] sm:$0xff]
    %v1899 = vmul.f32 %v1890, %v1898
    %v1900 = vmul.f32 %v1884, %v1891
    %v1901 = vadd.f32 %v1899, %v1900
    %v1902 = vtanh.pop %v1901
    %v1903 = vmul.f32 %v1897, %v1902
    %1904 = vst [vmem:[#allocation4] sm:$0xff] %v1901
    %1905 = vst [vmem:[#allocation3] sm:$0xff] %v1903
    %1906 = vst [vmem:[#allocation6 + $0x38] sm:$0xff] %v1903
    %v1907 = vld [vmem:[#allocation3] sm:$0xff]
    %1908 = vst [vmem:[#allocation5] sm:$0xff] %v1907
    %v1909 = vld [vmem:[#allocation6] sm:$0xff]
    %v1910 = vld [vmem:[#allocation6 + $0x8] sm:$0xff]
    %v1911 = vld [vmem:[#allocation6 + $0x10] sm:$0xff]
    %v1912 = vld [vmem:[#allocation6 + $0x18] sm:$0xff]
    %v1913 = vld [vmem:[#allocation6 + $0x20] sm:$0xff]
    %v1914 = vld [vmem:[#allocation6 + $0x28] sm:$0xff]
    %v1915 = vld [vmem:[#allocation6 + $0x30] sm:$0xff]
    %v1916 = vld [vmem:[#allocation6 + $0x38] sm:$0xff]
    %v1917 = vld [vmem:[#allocation10] sm:$0xff]
    %v1918 = vld [vmem:[#allocation10 + $0x8] sm:$0xff]
    %v1919 = vld [vmem:[#allocation10 + $0x10] sm:$0xff]
    %v1920 = vld [vmem:[#allocation10 + $0x18] sm:$0xff]
    %v1921 = vld [vmem:[#allocation10 + $0x20] sm:$0xff]
    %v1922 = vld [vmem:[#allocation10 + $0x28] sm:$0xff]
    %v1923 = vld [vmem:[#allocation10 + $0x30] sm:$0xff]
    %v1924 = vld [vmem:[#allocation10 + $0x38] sm:$0xff]
    %v1925 = vld [vmem:[#allocation10 + $0x40] sm:$0xff]
    %v1926 = vld [vmem:[#allocation10 + $0x48] sm:$0xff]
    %v1927 = vld [vmem:[#allocation10 + $0x50] sm:$0xff]
    %v1928 = vld [vmem:[#allocation10 + $0x58] sm:$0xff]
    %v1929 = vld [vmem:[#allocation10 + $0x60] sm:$0xff]
    %v1930 = vld [vmem:[#allocation10 + $0x68] sm:$0xff]
    %v1931 = vld [vmem:[#allocation10 + $0x70] sm:$0xff]
    %v1932 = vld [vmem:[#allocation10 + $0x78] sm:$0xff]
    %v1933 = vld [vmem:[#allocation10 + $0x80] sm:$0xff]
    %v1934 = vld [vmem:[#allocation10 + $0x88] sm:$0xff]
    %v1935 = vld [vmem:[#allocation10 + $0x90] sm:$0xff]
    %v1936 = vld [vmem:[#allocation10 + $0x98] sm:$0xff]
    %v1937 = vld [vmem:[#allocation10 + $0xa0] sm:$0xff]
    %v1938 = vld [vmem:[#allocation10 + $0xa8] sm:$0xff]
    %v1939 = vld [vmem:[#allocation10 + $0xb0] sm:$0xff]
    %v1940 = vld [vmem:[#allocation10 + $0xb8] sm:$0xff]
    %v1941 = vld [vmem:[#allocation10 + $0xc0] sm:$0xff]
    %v1942 = vld [vmem:[#allocation10 + $0xc8] sm:$0xff]
    %v1943 = vld [vmem:[#allocation10 + $0xd0] sm:$0xff]
    %v1944 = vld [vmem:[#allocation10 + $0xd8] sm:$0xff]
    %v1945 = vld [vmem:[#allocation10 + $0xe0] sm:$0xff]
    %v1946 = vld [vmem:[#allocation10 + $0xe8] sm:$0xff]
    %v1947 = vld [vmem:[#allocation10 + $0xf0] sm:$0xff]
    %v1948 = vld [vmem:[#allocation10 + $0xf8] sm:$0xff]
    %v1949 = vld [vmem:[#allocation10 + $0x100] sm:$0xff]
    %v1950 = vld [vmem:[#allocation10 + $0x108] sm:$0xff]
    %v1951 = vld [vmem:[#allocation10 + $0x110] sm:$0xff]
    %v1952 = vld [vmem:[#allocation10 + $0x118] sm:$0xff]
    %v1953 = vld [vmem:[#allocation10 + $0x120] sm:$0xff]
    %v1954 = vld [vmem:[#allocation10 + $0x128] sm:$0xff]
    %v1955 = vld [vmem:[#allocation10 + $0x130] sm:$0xff]
    %v1956 = vld [vmem:[#allocation10 + $0x138] sm:$0xff]
    %v1957 = vld [vmem:[#allocation10 + $0x140] sm:$0xff]
    %v1958 = vld [vmem:[#allocation10 + $0x148] sm:$0xff]
    %v1959 = vld [vmem:[#allocation10 + $0x150] sm:$0xff]
    %v1960 = vld [vmem:[#allocation10 + $0x158] sm:$0xff]
    %v1961 = vld [vmem:[#allocation10 + $0x160] sm:$0xff]
    %v1962 = vld [vmem:[#allocation10 + $0x168] sm:$0xff]
    %v1963 = vld [vmem:[#allocation10 + $0x170] sm:$0xff]
    %v1964 = vld [vmem:[#allocation10 + $0x178] sm:$0xff]
    %v1965 = vld [vmem:[#allocation10 + $0x180] sm:$0xff]
    %v1966 = vld [vmem:[#allocation10 + $0x188] sm:$0xff]
    %v1967 = vld [vmem:[#allocation10 + $0x190] sm:$0xff]
    %v1968 = vld [vmem:[#allocation10 + $0x198] sm:$0xff]
    %v1969 = vld [vmem:[#allocation10 + $0x1a0] sm:$0xff]
    %v1970 = vld [vmem:[#allocation10 + $0x1a8] sm:$0xff]
    %v1971 = vld [vmem:[#allocation10 + $0x1b0] sm:$0xff]
    %v1972 = vld [vmem:[#allocation10 + $0x1b8] sm:$0xff]
    %v1973 = vld [vmem:[#allocation10 + $0x1c0] sm:$0xff]
    %v1974 = vld [vmem:[#allocation10 + $0x1c8] sm:$0xff]
    %v1975 = vld [vmem:[#allocation10 + $0x1d0] sm:$0xff]
    %v1976 = vld [vmem:[#allocation10 + $0x1d8] sm:$0xff]
    %v1977 = vld [vmem:[#allocation10 + $0x1e0] sm:$0xff]
    %v1978 = vld [vmem:[#allocation10 + $0x1e8] sm:$0xff]
    %v1979 = vld [vmem:[#allocation10 + $0x1f0] sm:$0xff]
    %v1980 = vld [vmem:[#allocation10 + $0x1f8] sm:$0xff]
    %v1981 = vld [vmem:[%s6] sm:$0xf]
    %v1983 = vlaneseq
    %v1984 = vshrl.u32 %v1983, 7
    %v1985 = vsub.s32 0, %v1984
    %v1986 = vrot.slane %v1981, %v1985
    %v1987 = vlaneseq
    %v1988 = vshrl.u32 %v1987, 7
    %v1989 = vsub.s32 1, %v1988
    %v1990 = vrot.slane %v1981, %v1989
    %v1991 = vlaneseq
    %v1992 = vshrl.u32 %v1991, 7
    %v1993 = vsub.s32 2, %v1992
    %v1994 = vrot.slane %v1981, %v1993
    %v1995 = vlaneseq
    %v1996 = vshrl.u32 %v1995, 7
    %v1997 = vsub.s32 3, %v1996
    %v1998 = vrot.slane %v1981, %v1997
    %2003 = vmatprep.subr.mxu0 %v1918
    %2004 = vmatpush1.msra.mxu0 %v1917
    %2005 = vmatprep.subr.mxu0 %v1922
    %2006 = vmatpush1.msra.mxu0 %v1921
    %2007 = vmatprep.subr.mxu0 %v1926
    %2008 = vmatpush1.msra.mxu0 %v1925
    %2009 = vmatprep.subr.mxu0 %v1930
    %2010 = vmatpush1.msra.mxu0 %v1929
    %2011 = vmatprep.subr.mxu0 %v1934
    %2012 = vmatpush1.msra.mxu0 %v1933
    %2013 = vmatprep.subr.mxu0 %v1938
    %2014 = vmatpush1.msra.mxu0 %v1937
    %2015 = vmatprep.subr.mxu0 %v1942
    %2016 = vmatpush1.msra.mxu0 %v1941
    %2017 = vmatprep.subr.mxu0 %v1946
    %2018 = vmatpush1.msra.mxu0 %v1945
    %2019 = vmatprep.subr.mxu0 %v1950
    %2020 = vmatpush1.msra.mxu0 %v1949
    %2021 = vmatprep.subr.mxu0 %v1954
    %2022 = vmatpush1.msra.mxu0 %v1953
    %2023 = vmatprep.subr.mxu0 %v1958
    %2024 = vmatpush1.msra.mxu0 %v1957
    %2025 = vmatprep.subr.mxu0 %v1962
    %2026 = vmatpush1.msra.mxu0 %v1961
    %2027 = vmatprep.subr.mxu0 %v1966
    %2028 = vmatpush1.msra.mxu0 %v1965
    %2029 = vmatprep.subr.mxu0 %v1970
    %2030 = vmatpush1.msra.mxu0 %v1969
    %2031 = vmatprep.subr.mxu0 %v1974
    %2032 = vmatpush1.msra.mxu0 %v1973
    %2033 = vmatprep.subr.mxu0 %v1978
    %2034 = vmatpush1.msra.mxu0 %v1977
    %2035 = vmatprep.subr.mxu0 0.0
    %2036 = vmatpush1.msra.mxu0 0.0
    %2037 = vmatprep.subr.mxu0 0.0
    %2038 = vmatpush1.msra.mxu0 0.0
    %2039 = vmatprep.subr.mxu0 0.0
    %2040 = vmatpush1.msra.mxu0 0.0
    %2041 = vmatprep.subr.mxu0 0.0
    %2042 = vmatpush1.msra.mxu0 0.0
    %2043 = vmatprep.subr.mxu0 0.0
    %2044 = vmatpush1.msra.mxu0 0.0
    %2045 = vmatprep.subr.mxu0 0.0
    %2046 = vmatpush1.msra.mxu0 0.0
    %2047 = vmatprep.subr.mxu0 0.0
    %2048 = vmatpush1.msra.mxu0 0.0
    %2049 = vmatprep.subr.mxu0 0.0
    %2050 = vmatpush1.msra.mxu0 0.0
    %2051 = vmatprep.subr.mxu0 0.0
    %2052 = vmatpush1.msra.mxu0 0.0
    %2053 = vmatprep.subr.mxu0 0.0
    %2054 = vmatpush1.msra.mxu0 0.0
    %2055 = vmatprep.subr.mxu0 0.0
    %2056 = vmatpush1.msra.mxu0 0.0
    %2057 = vmatprep.subr.mxu0 0.0
    %2058 = vmatpush1.msra.mxu0 0.0
    %2059 = vmatprep.subr.mxu0 0.0
    %2060 = vmatpush1.msra.mxu0 0.0
    %2061 = vmatprep.subr.mxu0 0.0
    %2062 = vmatpush1.msra.mxu0 0.0
    %2063 = vmatprep.subr.mxu0 0.0
    %2064 = vmatpush1.msra.mxu0 0.0
    %2065 = vmatprep.subr.mxu0 0.0
    %2066 = vmatpush1.msra.mxu0 0.0
    %2067 = vmatprep.mubr.f32.mxu0 0.0
    %2068 = vmatmul.mubr.f32.gmra.mrb[0].mxu0 %v1909
    %v2069 = vpop.f32.mrb[0].mxu0
    %v2070 = vadd.f32 %v1986, %v2069
    %v2071 = vpop.f32.mrb[0].mxu0
    %v2072 = vadd.f32 %v1990, %v2071
    %2073 = vmatprep.mubr.f32.mxu0 0.0
    %2074 = vmatmul.mubr.f32.gmra.mrb[0].mxu0 %v1910
    %v2075 = vpop.f32.mrb[0].mxu0
    %v2076 = vadd.f32 %v1986, %v2075
    %v2077 = vpop.f32.mrb[0].mxu0
    %v2078 = vadd.f32 %v1990, %v2077
    %2079 = vmatprep.mubr.f32.mxu0 0.0
    %2080 = vmatmul.mubr.f32.gmra.mrb[0].mxu0 %v1911
    %v2081 = vpop.f32.mrb[0].mxu0
    %v2082 = vadd.f32 %v1986, %v2081
    %v2083 = vpop.f32.mrb[0].mxu0
    %v2084 = vadd.f32 %v1990, %v2083
    %2085 = vmatprep.mubr.f32.mxu0 0.0
    %2086 = vmatmul.mubr.f32.gmra.mrb[0].mxu0 %v1912
    %v2087 = vpop.f32.mrb[0].mxu0
    %v2088 = vadd.f32 %v1986, %v2087
    %v2089 = vpop.f32.mrb[0].mxu0
    %v2090 = vadd.f32 %v1990, %v2089
    %2091 = vmatprep.mubr.f32.mxu0 0.0
    %2092 = vmatmul.mubr.f32.gmra.mrb[0].mxu0 %v1913
    %v2093 = vpop.f32.mrb[0].mxu0
    %v2094 = vadd.f32 %v1986, %v2093
    %v2095 = vpop.f32.mrb[0].mxu0
    %v2096 = vadd.f32 %v1990, %v2095
    %2097 = vmatprep.mubr.f32.mxu0 0.0
    %2098 = vmatmul.mubr.f32.gmra.mrb[0].mxu0 %v1914
    %v2099 = vpop.f32.mrb[0].mxu0
    %v2100 = vadd.f32 %v1986, %v2099
    %v2101 = vpop.f32.mrb[0].mxu0
    %v2102 = vadd.f32 %v1990, %v2101
    %2103 = vmatprep.mubr.f32.mxu0 0.0
    %2104 = vmatmul.mubr.f32.gmra.mrb[0].mxu0 %v1915
    %v2105 = vpop.f32.mrb[0].mxu0
    %v2106 = vadd.f32 %v1986, %v2105
    %v2107 = vpop.f32.mrb[0].mxu0
    %v2108 = vadd.f32 %v1990, %v2107
    %2109 = vmatprep.mubr.f32.mxu0 0.0
    %2110 = vmatmul.mubr.f32.gmra.mrb[0].mxu0 %v1916
    %v2111 = vpop.f32.mrb[0].mxu0
    %v2112 = vadd.f32 %v1986, %v2111
    %v2113 = vpop.f32.mrb[0].mxu0
    %v2114 = vadd.f32 %v1990, %v2113
    %2115 = vdwg.mxu0
    %2116 = vmatprep.subr.mxu0 %v1920
    %2117 = vmatpush1.msra.mxu0 %v1919
    %2118 = vmatprep.subr.mxu0 %v1924
    %2119 = vmatpush1.msra.mxu0 %v1923
    %2120 = vmatprep.subr.mxu0 %v1928
    %2121 = vmatpush1.msra.mxu0 %v1927
    %2122 = vmatprep.subr.mxu0 %v1932
    %2123 = vmatpush1.msra.mxu0 %v1931
    %2124 = vmatprep.subr.mxu0 %v1936
    %2125 = vmatpush1.msra.mxu0 %v1935
    %2126 = vmatprep.subr.mxu0 %v1940
    %2127 = vmatpush1.msra.mxu0 %v1939
    %2128 = vmatprep.subr.mxu0 %v1944
    %2129 = vmatpush1.msra.mxu0 %v1943
    %2130 = vmatprep.subr.mxu0 %v1948
    %2131 = vmatpush1.msra.mxu0 %v1947
    %2132 = vmatprep.subr.mxu0 %v1952
    %2133 = vmatpush1.msra.mxu0 %v1951
    %2134 = vmatprep.subr.mxu0 %v1956
    %2135 = vmatpush1.msra.mxu0 %v1955
    %2136 = vmatprep.subr.mxu0 %v1960
    %2137 = vmatpush1.msra.mxu0 %v1959
    %2138 = vmatprep.subr.mxu0 %v1964
    %2139 = vmatpush1.msra.mxu0 %v1963
    %2140 = vmatprep.subr.mxu0 %v1968
    %2141 = vmatpush1.msra.mxu0 %v1967
    %2142 = vmatprep.subr.mxu0 %v1972
    %2143 = vmatpush1.msra.mxu0 %v1971
    %2144 = vmatprep.subr.mxu0 %v1976
    %2145 = vmatpush1.msra.mxu0 %v1975
    %2146 = vmatprep.subr.mxu0 %v1980
    %2147 = vmatpush1.msra.mxu0 %v1979
    %2148 = vmatprep.subr.mxu0 0.0
    %2149 = vmatpush1.msra.mxu0 0.0
    %2150 = vmatprep.subr.mxu0 0.0
    %2151 = vmatpush1.msra.mxu0 0.0
    %2152 = vmatprep.subr.mxu0 0.0
    %2153 = vmatpush1.msra.mxu0 0.0
    %2154 = vmatprep.subr.mxu0 0.0
    %2155 = vmatpush1.msra.mxu0 0.0
    %2156 = vmatprep.subr.mxu0 0.0
    %2157 = vmatpush1.msra.mxu0 0.0
    %2158 = vmatprep.subr.mxu0 0.0
    %2159 = vmatpush1.msra.mxu0 0.0
    %2160 = vmatprep.subr.mxu0 0.0
    %2161 = vmatpush1.msra.mxu0 0.0
    %2162 = vmatprep.subr.mxu0 0.0
    %2163 = vmatpush1.msra.mxu0 0.0
    %2164 = vmatprep.subr.mxu0 0.0
    %2165 = vmatpush1.msra.mxu0 0.0
    %2166 = vmatprep.subr.mxu0 0.0
    %2167 = vmatpush1.msra.mxu0 0.0
    %2168 = vmatprep.subr.mxu0 0.0
    %2169 = vmatpush1.msra.mxu0 0.0
    %2170 = vmatprep.subr.mxu0 0.0
    %2171 = vmatpush1.msra.mxu0 0.0
    %2172 = vmatprep.subr.mxu0 0.0
    %2173 = vmatpush1.msra.mxu0 0.0
    %2174 = vmatprep.subr.mxu0 0.0
    %2175 = vmatpush1.msra.mxu0 0.0
    %2176 = vmatprep.subr.mxu0 0.0
    %2177 = vmatpush1.msra.mxu0 0.0
    %2178 = vmatprep.subr.mxu0 0.0
    %2179 = vmatpush1.msra.mxu0 0.0
    %2180 = vmatprep.mubr.f32.mxu0 0.0
    %2181 = vmatmul.mubr.f32.gmra.mrb[0].mxu0 %v1909
    %v2182 = vpop.f32.mrb[0].mxu0
    %v2183 = vadd.f32 %v1994, %v2182
    %v2184 = vpop.f32.mrb[0].mxu0
    %v2185 = vadd.f32 %v1998, %v2184
    %2186 = vmatprep.mubr.f32.mxu0 0.0
    %2187 = vmatmul.mubr.f32.gmra.mrb[0].mxu0 %v1910
    %v2188 = vpop.f32.mrb[0].mxu0
    %v2189 = vadd.f32 %v1994, %v2188
    %v2190 = vpop.f32.mrb[0].mxu0
    %v2191 = vadd.f32 %v1998, %v2190
    %2192 = vmatprep.mubr.f32.mxu0 0.0
    %2193 = vmatmul.mubr.f32.gmra.mrb[0].mxu0 %v1911
    %v2194 = vpop.f32.mrb[0].mxu0
    %v2195 = vadd.f32 %v1994, %v2194
    %v2196 = vpop.f32.mrb[0].mxu0
    %v2197 = vadd.f32 %v1998, %v2196
    %2198 = vmatprep.mubr.f32.mxu0 0.0
    %2199 = vmatmul.mubr.f32.gmra.mrb[0].mxu0 %v1912
    %v2200 = vpop.f32.mrb[0].mxu0
    %v2201 = vadd.f32 %v1994, %v2200
    %v2202 = vpop.f32.mrb[0].mxu0
    %v2203 = vadd.f32 %v1998, %v2202
    %2204 = vmatprep.mubr.f32.mxu0 0.0
    %2205 = vmatmul.mubr.f32.gmra.mrb[0].mxu0 %v1913
    %v2206 = vpop.f32.mrb[0].mxu0
    %v2207 = vadd.f32 %v1994, %v2206
    %v2208 = vpop.f32.mrb[0].mxu0
    %v2209 = vadd.f32 %v1998, %v2208
    %2210 = vmatprep.mubr.f32.mxu0 0.0
    %2211 = vmatmul.mubr.f32.gmra.mrb[0].mxu0 %v1914
    %v2212 = vpop.f32.mrb[0].mxu0
    %v2213 = vadd.f32 %v1994, %v2212
    %v2214 = vpop.f32.mrb[0].mxu0
    %v2215 = vadd.f32 %v1998, %v2214
    %2216 = vmatprep.mubr.f32.mxu0 0.0
    %2217 = vmatmul.mubr.f32.gmra.mrb[0].mxu0 %v1915
    %v2218 = vpop.f32.mrb[0].mxu0
    %v2219 = vadd.f32 %v1994, %v2218
    %v2220 = vpop.f32.mrb[0].mxu0
    %v2221 = vadd.f32 %v1998, %v2220
    %2222 = vmatprep.mubr.f32.mxu0 0.0
    %2223 = vmatmul.mubr.f32.gmra.mrb[0].mxu0 %v1916
    %v2224 = vpop.f32.mrb[0].mxu0
    %v2225 = vadd.f32 %v1994, %v2224
    %v2226 = vpop.f32.mrb[0].mxu0
    %v2227 = vadd.f32 %v1998, %v2226
    %2228 = vdwg.mxu0
    %2229 = vst [vmem:[#allocation2] sm:$0xff] %v2070
    %2230 = vst [vmem:[#allocation2 + $0x8] sm:$0xff] %v2072
    %2231 = vst [vmem:[#allocation2 + $0x10] sm:$0xff] %v2183
    %2232 = vst [vmem:[#allocation2 + $0x18] sm:$0xff] %v2185
    %2233 = vst [vmem:[#allocation2 + $0x20] sm:$0xff] %v2076
    %2234 = vst [vmem:[#allocation2 + $0x28] sm:$0xff] %v2078
    %2235 = vst [vmem:[#allocation2 + $0x30] sm:$0xff] %v2189
    %2236 = vst [vmem:[#allocation2 + $0x38] sm:$0xff] %v2191
    %2237 = vst [vmem:[#allocation2 + $0x40] sm:$0xff] %v2082
    %2238 = vst [vmem:[#allocation2 + $0x48] sm:$0xff] %v2084
    %2239 = vst [vmem:[#allocation2 + $0x50] sm:$0xff] %v2195
    %2240 = vst [vmem:[#allocation2 + $0x58] sm:$0xff] %v2197
    %2241 = vst [vmem:[#allocation2 + $0x60] sm:$0xff] %v2088
    %2242 = vst [vmem:[#allocation2 + $0x68] sm:$0xff] %v2090
    %2243 = vst [vmem:[#allocation2 + $0x70] sm:$0xff] %v2201
    %2244 = vst [vmem:[#allocation2 + $0x78] sm:$0xff] %v2203
    %2245 = vst [vmem:[#allocation2 + $0x80] sm:$0xff] %v2094
    %2246 = vst [vmem:[#allocation2 + $0x88] sm:$0xff] %v2096
    %2247 = vst [vmem:[#allocation2 + $0x90] sm:$0xff] %v2207
    %2248 = vst [vmem:[#allocation2 + $0x98] sm:$0xff] %v2209
    %2249 = vst [vmem:[#allocation2 + $0xa0] sm:$0xff] %v2100
    %2250 = vst [vmem:[#allocation2 + $0xa8] sm:$0xff] %v2102
    %2251 = vst [vmem:[#allocation2 + $0xb0] sm:$0xff] %v2213
    %2252 = vst [vmem:[#allocation2 + $0xb8] sm:$0xff] %v2215
    %2253 = vst [vmem:[#allocation2 + $0xc0] sm:$0xff] %v2106
    %2254 = vst [vmem:[#allocation2 + $0xc8] sm:$0xff] %v2108
    %2255 = vst [vmem:[#allocation2 + $0xd0] sm:$0xff] %v2219
    %2256 = vst [vmem:[#allocation2 + $0xd8] sm:$0xff] %v2221
    %2257 = vst [vmem:[#allocation2 + $0xe0] sm:$0xff] %v2112
    %2258 = vst [vmem:[#allocation2 + $0xe8] sm:$0xff] %v2114
    %2259 = vst [vmem:[#allocation2 + $0xf0] sm:$0xff] %v2225
    %2260 = vst [vmem:[#allocation2 + $0xf8] sm:$0xff] %v2227
    %2261 = vst [vmem:[#allocation3] sm:$0xff] 0.0
    %2262 = vst [vmem:[#allocation4] sm:$0xff] 0.0
    %v2263 = vld [vmem:[#allocation12] sm:$0xff]
    %v2264 = vld [vmem:[#allocation12 + $0x8] sm:$0xff]
    %v2265 = vld [vmem:[#allocation12 + $0x10] sm:$0xff]
    %v2266 = vld [vmem:[#allocation12 + $0x18] sm:$0xff]
    %v2267 = vld [vmem:[#allocation12 + $0x20] sm:$0xff]
    %v2268 = vld [vmem:[#allocation12 + $0x28] sm:$0xff]
    %v2269 = vld [vmem:[#allocation12 + $0x30] sm:$0xff]
    %v2270 = vld [vmem:[#allocation12 + $0x38] sm:$0xff]
    %v2271 = vld [vmem:[#allocation12 + $0x40] sm:$0xff]
    %v2272 = vld [vmem:[#allocation12 + $0x48] sm:$0xff]
    %v2273 = vld [vmem:[#allocation12 + $0x50] sm:$0xff]
    %v2274 = vld [vmem:[#allocation12 + $0x58] sm:$0xff]
    %v2275 = vld [vmem:[#allocation12 + $0x60] sm:$0xff]
    %v2276 = vld [vmem:[#allocation12 + $0x68] sm:$0xff]
    %v2277 = vld [vmem:[#allocation12 + $0x70] sm:$0xff]
    %v2278 = vld [vmem:[#allocation12 + $0x78] sm:$0xff]
    %v2279 = vld [vmem:[#allocation12 + $0x80] sm:$0xff]
    %v2280 = vld [vmem:[#allocation12 + $0x88] sm:$0xff]
    %v2281 = vld [vmem:[#allocation12 + $0x90] sm:$0xff]
    %v2282 = vld [vmem:[#allocation12 + $0x98] sm:$0xff]
    %v2283 = vld [vmem:[#allocation12 + $0xa0] sm:$0xff]
    %v2284 = vld [vmem:[#allocation12 + $0xa8] sm:$0xff]
    %v2285 = vld [vmem:[#allocation12 + $0xb0] sm:$0xff]
    %v2286 = vld [vmem:[#allocation12 + $0xb8] sm:$0xff]
    %v2287 = vld [vmem:[#allocation12 + $0xc0] sm:$0xff]
    %v2288 = vld [vmem:[#allocation12 + $0xc8] sm:$0xff]
    %v2289 = vld [vmem:[#allocation12 + $0xd0] sm:$0xff]
    %v2290 = vld [vmem:[#allocation12 + $0xd8] sm:$0xff]
    %v2291 = vld [vmem:[#allocation12 + $0xe0] sm:$0xff]
    %v2292 = vld [vmem:[#allocation12 + $0xe8] sm:$0xff]
    %v2293 = vld [vmem:[#allocation12 + $0xf0] sm:$0xff]
    %v2294 = vld [vmem:[#allocation12 + $0xf8] sm:$0xff]
    %v2295 = vld [vmem:[#allocation12 + $0x100] sm:$0xff]
    %v2296 = vld [vmem:[#allocation12 + $0x108] sm:$0xff]
    %v2297 = vld [vmem:[#allocation12 + $0x110] sm:$0xff]
    %v2298 = vld [vmem:[#allocation12 + $0x118] sm:$0xff]
    %v2299 = vld [vmem:[#allocation12 + $0x120] sm:$0xff]
    %v2300 = vld [vmem:[#allocation12 + $0x128] sm:$0xff]
    %v2301 = vld [vmem:[#allocation12 + $0x130] sm:$0xff]
    %v2302 = vld [vmem:[#allocation12 + $0x138] sm:$0xff]
    %v2303 = vld [vmem:[#allocation12 + $0x140] sm:$0xff]
    %v2304 = vld [vmem:[#allocation12 + $0x148] sm:$0xff]
    %v2305 = vld [vmem:[#allocation12 + $0x150] sm:$0xff]
    %v2306 = vld [vmem:[#allocation12 + $0x158] sm:$0xff]
    %v2307 = vld [vmem:[#allocation12 + $0x160] sm:$0xff]
    %v2308 = vld [vmem:[#allocation12 + $0x168] sm:$0xff]
    %v2309 = vld [vmem:[#allocation12 + $0x170] sm:$0xff]
    %v2310 = vld [vmem:[#allocation12 + $0x178] sm:$0xff]
    %v2311 = vld [vmem:[#allocation12 + $0x180] sm:$0xff]
    %v2312 = vld [vmem:[#allocation12 + $0x188] sm:$0xff]
    %v2313 = vld [vmem:[#allocation12 + $0x190] sm:$0xff]
    %v2314 = vld [vmem:[#allocation12 + $0x198] sm:$0xff]
    %v2315 = vld [vmem:[#allocation12 + $0x1a0] sm:$0xff]
    %v2316 = vld [vmem:[#allocation12 + $0x1a8] sm:$0xff]
    %v2317 = vld [vmem:[#allocation12 + $0x1b0] sm:$0xff]
    %v2318 = vld [vmem:[#allocation12 + $0x1b8] sm:$0xff]
    %v2319 = vld [vmem:[#allocation12 + $0x1c0] sm:$0xff]
    %v2320 = vld [vmem:[#allocation12 + $0x1c8] sm:$0xff]
    %v2321 = vld [vmem:[#allocation12 + $0x1d0] sm:$0xff]
    %v2322 = vld [vmem:[#allocation12 + $0x1d8] sm:$0xff]
    %v2323 = vld [vmem:[#allocation12 + $0x1e0] sm:$0xff]
    %v2324 = vld [vmem:[#allocation12 + $0x1e8] sm:$0xff]
    %v2325 = vld [vmem:[#allocation12 + $0x1f0] sm:$0xff]
    %v2326 = vld [vmem:[#allocation12 + $0x1f8] sm:$0xff]
    %v2327 = vld [vmem:[#allocation2] sm:$0xff]
    %v2328 = vld [vmem:[#allocation2 + $0x8] sm:$0xff]
    %v2329 = vld [vmem:[#allocation2 + $0x10] sm:$0xff]
    %v2330 = vld [vmem:[#allocation2 + $0x18] sm:$0xff]
    %v2331 = vld [vmem:[#allocation3] sm:$0xff]
    %2332 = vmatprep.subr.mxu0 %v2264
    %2333 = vmatpush1.msra.mxu0 %v2263
    %2334 = vmatprep.subr.mxu0 %v2268
    %2335 = vmatpush1.msra.mxu0 %v2267
    %2336 = vmatprep.subr.mxu0 %v2272
    %2337 = vmatpush1.msra.mxu0 %v2271
    %2338 = vmatprep.subr.mxu0 %v2276
    %2339 = vmatpush1.msra.mxu0 %v2275
    %2340 = vmatprep.subr.mxu0 %v2280
    %2341 = vmatpush1.msra.mxu0 %v2279
    %2342 = vmatprep.subr.mxu0 %v2284
    %2343 = vmatpush1.msra.mxu0 %v2283
    %2344 = vmatprep.subr.mxu0 %v2288
    %2345 = vmatpush1.msra.mxu0 %v2287
    %2346 = vmatprep.subr.mxu0 %v2292
    %2347 = vmatpush1.msra.mxu0 %v2291
    %2348 = vmatprep.subr.mxu0 %v2296
    %2349 = vmatpush1.msra.mxu0 %v2295
    %2350 = vmatprep.subr.mxu0 %v2300
    %2351 = vmatpush1.msra.mxu0 %v2299
    %2352 = vmatprep.subr.mxu0 %v2304
    %2353 = vmatpush1.msra.mxu0 %v2303
    %2354 = vmatprep.subr.mxu0 %v2308
    %2355 = vmatpush1.msra.mxu0 %v2307
    %2356 = vmatprep.subr.mxu0 %v2312
    %2357 = vmatpush1.msra.mxu0 %v2311
    %2358 = vmatprep.subr.mxu0 %v2316
    %2359 = vmatpush1.msra.mxu0 %v2315
    %2360 = vmatprep.subr.mxu0 %v2320
    %2361 = vmatpush1.msra.mxu0 %v2319
    %2362 = vmatprep.subr.mxu0 %v2324
    %2363 = vmatpush1.msra.mxu0 %v2323
    %2364 = vmatprep.subr.mxu0 0.0
    %2365 = vmatpush1.msra.mxu0 0.0
    %2366 = vmatprep.subr.mxu0 0.0
    %2367 = vmatpush1.msra.mxu0 0.0
    %2368 = vmatprep.subr.mxu0 0.0
    %2369 = vmatpush1.msra.mxu0 0.0
    %2370 = vmatprep.subr.mxu0 0.0
    %2371 = vmatpush1.msra.mxu0 0.0
    %2372 = vmatprep.subr.mxu0 0.0
    %2373 = vmatpush1.msra.mxu0 0.0
    %2374 = vmatprep.subr.mxu0 0.0
    %2375 = vmatpush1.msra.mxu0 0.0
    %2376 = vmatprep.subr.mxu0 0.0
    %2377 = vmatpush1.msra.mxu0 0.0
    %2378 = vmatprep.subr.mxu0 0.0
    %2379 = vmatpush1.msra.mxu0 0.0
    %2380 = vmatprep.subr.mxu0 0.0
    %2381 = vmatpush1.msra.mxu0 0.0
    %2382 = vmatprep.subr.mxu0 0.0
    %2383 = vmatpush1.msra.mxu0 0.0
    %2384 = vmatprep.subr.mxu0 0.0
    %2385 = vmatpush1.msra.mxu0 0.0
    %2386 = vmatprep.subr.mxu0 0.0
    %2387 = vmatpush1.msra.mxu0 0.0
    %2388 = vmatprep.subr.mxu0 0.0
    %2389 = vmatpush1.msra.mxu0 0.0
    %2390 = vmatprep.subr.mxu0 0.0
    %2391 = vmatpush1.msra.mxu0 0.0
    %2392 = vmatprep.subr.mxu0 0.0
    %2393 = vmatpush1.msra.mxu0 0.0
    %2394 = vmatprep.subr.mxu0 0.0
    %2395 = vmatpush1.msra.mxu0 0.0
    %2396 = vmatprep.mubr.f32.mxu0 0.0
    %2397 = vmatmul.mubr.f32.gmra.mrb[0].mxu0 %v2331
    %v2398 = vpop.f32.mrb[0].mxu0
    %v2399 = vadd.f32 0.0, %v2398
    %v2400 = vpop.f32.mrb[0].mxu0
    %v2401 = vadd.f32 0.0, %v2400
    %2402 = vdwg.mxu0
    %2403 = vmatprep.subr.mxu0 %v2266
    %2404 = vmatpush1.msra.mxu0 %v2265
    %2405 = vmatprep.subr.mxu0 %v2270
    %2406 = vmatpush1.msra.mxu0 %v2269
    %2407 = vmatprep.subr.mxu0 %v2274
    %2408 = vmatpush1.msra.mxu0 %v2273
    %2409 = vmatprep.subr.mxu0 %v2278
    %2410 = vmatpush1.msra.mxu0 %v2277
    %2411 = vmatprep.subr.mxu0 %v2282
    %2412 = vmatpush1.msra.mxu0 %v2281
    %2413 = vmatprep.subr.mxu0 %v2286
    %2414 = vmatpush1.msra.mxu0 %v2285
    %2415 = vmatprep.subr.mxu0 %v2290
    %2416 = vmatpush1.msra.mxu0 %v2289
    %2417 = vmatprep.subr.mxu0 %v2294
    %2418 = vmatpush1.msra.mxu0 %v2293
    %2419 = vmatprep.subr.mxu0 %v2298
    %2420 = vmatpush1.msra.mxu0 %v2297
    %2421 = vmatprep.subr.mxu0 %v2302
    %2422 = vmatpush1.msra.mxu0 %v2301
    %2423 = vmatprep.subr.mxu0 %v2306
    %2424 = vmatpush1.msra.mxu0 %v2305
    %2425 = vmatprep.subr.mxu0 %v2310
    %2426 = vmatpush1.msra.mxu0 %v2309
    %2427 = vmatprep.subr.mxu0 %v2314
    %2428 = vmatpush1.msra.mxu0 %v2313
    %2429 = vmatprep.subr.mxu0 %v2318
    %2430 = vmatpush1.msra.mxu0 %v2317
    %2431 = vmatprep.subr.mxu0 %v2322
    %2432 = vmatpush1.msra.mxu0 %v2321
    %2433 = vmatprep.subr.mxu0 %v2326
    %2434 = vmatpush1.msra.mxu0 %v2325
    %2435 = vmatprep.subr.mxu0 0.0
    %2436 = vmatpush1.msra.mxu0 0.0
    %2437 = vmatprep.subr.mxu0 0.0
    %2438 = vmatpush1.msra.mxu0 0.0
    %2439 = vmatprep.subr.mxu0 0.0
    %2440 = vmatpush1.msra.mxu0 0.0
    %2441 = vmatprep.subr.mxu0 0.0
    %2442 = vmatpush1.msra.mxu0 0.0
    %2443 = vmatprep.subr.mxu0 0.0
    %2444 = vmatpush1.msra.mxu0 0.0
    %2445 = vmatprep.subr.mxu0 0.0
    %2446 = vmatpush1.msra.mxu0 0.0
    %2447 = vmatprep.subr.mxu0 0.0
    %2448 = vmatpush1.msra.mxu0 0.0
    %2449 = vmatprep.subr.mxu0 0.0
    %2450 = vmatpush1.msra.mxu0 0.0
    %2451 = vmatprep.subr.mxu0 0.0
    %2452 = vmatpush1.msra.mxu0 0.0
    %2453 = vmatprep.subr.mxu0 0.0
    %2454 = vmatpush1.msra.mxu0 0.0
    %2455 = vmatprep.subr.mxu0 0.0
    %2456 = vmatpush1.msra.mxu0 0.0
    %2457 = vmatprep.subr.mxu0 0.0
    %2458 = vmatpush1.msra.mxu0 0.0
    %2459 = vmatprep.subr.mxu0 0.0
    %2460 = vmatpush1.msra.mxu0 0.0
    %2461 = vmatprep.subr.mxu0 0.0
    %2462 = vmatpush1.msra.mxu0 0.0
    %2463 = vmatprep.subr.mxu0 0.0
    %2464 = vmatpush1.msra.mxu0 0.0
    %2465 = vmatprep.subr.mxu0 0.0
    %2466 = vmatpush1.msra.mxu0 0.0
    %2467 = vmatprep.mubr.f32.mxu0 0.0
    %2468 = vmatmul.mubr.f32.gmra.mrb[0].mxu0 %v2331
    %v2469 = vpop.f32.mrb[0].mxu0
    %v2470 = vadd.f32 0.0, %v2469
    %v2471 = vpop.f32.mrb[0].mxu0
    %v2472 = vadd.f32 0.0, %v2471
    %2473 = vdwg.mxu0
    %v2474 = vadd.f32 %v2327, %v2399
    %v2475 = vadd.f32 %v2328, %v2401
    %v2476 = vadd.f32 %v2329, %v2470
    %v2477 = vadd.f32 %v2330, %v2472
    %v2478 = vxor.u32 %v2474, 2147483648
    %v2479 = vmul.f32 %v2478, 1.442695
    %v2480 = vpow.pop %v2479
    %v2481 = vadd.f32 %v2480, 1.0
    %v2482 = vrcp.pop %v2481
    %v2483 = vmul.f32 1.0, %v2482
    %v2484 = vxor.u32 %v2475, 2147483648
    %v2485 = vmul.f32 %v2484, 1.442695
    %v2486 = vpow.pop %v2485
    %v2487 = vadd.f32 %v2486, 1.0
    %v2488 = vrcp.pop %v2487
    %v2489 = vmul.f32 1.0, %v2488
    %v2490 = vtanh.pop %v2476
    %v2491 = vxor.u32 %v2477, 2147483648
    %v2492 = vmul.f32 %v2491, 1.442695
    %v2493 = vpow.pop %v2492
    %v2494 = vadd.f32 %v2493, 1.0
    %v2495 = vrcp.pop %v2494
    %v2496 = vmul.f32 1.0, %v2495
    %v2497 = vld [vmem:[#allocation4] sm:$0xff]
    %v2498 = vmul.f32 %v2489, %v2497
    %v2499 = vmul.f32 %v2483, %v2490
    %v2500 = vadd.f32 %v2498, %v2499
    %v2501 = vtanh.pop %v2500
    %v2502 = vmul.f32 %v2496, %v2501
    %2503 = vst [vmem:[#allocation4] sm:$0xff] %v2500
    %2504 = vst [vmem:[#allocation3] sm:$0xff] %v2502
    %v2505 = vld [vmem:[#allocation2 + $0x20] sm:$0xff]
    %v2506 = vld [vmem:[#allocation2 + $0x28] sm:$0xff]
    %v2507 = vld [vmem:[#allocation2 + $0x30] sm:$0xff]
    %v2508 = vld [vmem:[#allocation2 + $0x38] sm:$0xff]
    %v2509 = vld [vmem:[#allocation3] sm:$0xff]
    %2510 = vmatprep.subr.mxu0 %v2264
    %2511 = vmatpush1.msra.mxu0 %v2263
    %2512 = vmatprep.subr.mxu0 %v2268
    %2513 = vmatpush1.msra.mxu0 %v2267
    %2514 = vmatprep.subr.mxu0 %v2272
    %2515 = vmatpush1.msra.mxu0 %v2271
    %2516 = vmatprep.subr.mxu0 %v2276
    %2517 = vmatpush1.msra.mxu0 %v2275
    %2518 = vmatprep.subr.mxu0 %v2280
    %2519 = vmatpush1.msra.mxu0 %v2279
    %2520 = vmatprep.subr.mxu0 %v2284
    %2521 = vmatpush1.msra.mxu0 %v2283
    %2522 = vmatprep.subr.mxu0 %v2288
    %2523 = vmatpush1.msra.mxu0 %v2287
    %2524 = vmatprep.subr.mxu0 %v2292
    %2525 = vmatpush1.msra.mxu0 %v2291
    %2526 = vmatprep.subr.mxu0 %v2296
    %2527 = vmatpush1.msra.mxu0 %v2295
    %2528 = vmatprep.subr.mxu0 %v2300
    %2529 = vmatpush1.msra.mxu0 %v2299
    %2530 = vmatprep.subr.mxu0 %v2304
    %2531 = vmatpush1.msra.mxu0 %v2303
    %2532 = vmatprep.subr.mxu0 %v2308
    %2533 = vmatpush1.msra.mxu0 %v2307
    %2534 = vmatprep.subr.mxu0 %v2312
    %2535 = vmatpush1.msra.mxu0 %v2311
    %2536 = vmatprep.subr.mxu0 %v2316
    %2537 = vmatpush1.msra.mxu0 %v2315
    %2538 = vmatprep.subr.mxu0 %v2320
    %2539 = vmatpush1.msra.mxu0 %v2319
    %2540 = vmatprep.subr.mxu0 %v2324
    %2541 = vmatpush1.msra.mxu0 %v2323
    %2542 = vmatprep.subr.mxu0 0.0
    %2543 = vmatpush1.msra.mxu0 0.0
    %2544 = vmatprep.subr.mxu0 0.0
    %2545 = vmatpush1.msra.mxu0 0.0
    %2546 = vmatprep.subr.mxu0 0.0
    %2547 = vmatpush1.msra.mxu0 0.0
    %2548 = vmatprep.subr.mxu0 0.0
    %2549 = vmatpush1.msra.mxu0 0.0
    %2550 = vmatprep.subr.mxu0 0.0
    %2551 = vmatpush1.msra.mxu0 0.0
    %2552 = vmatprep.subr.mxu0 0.0
    %2553 = vmatpush1.msra.mxu0 0.0
    %2554 = vmatprep.subr.mxu0 0.0
    %2555 = vmatpush1.msra.mxu0 0.0
    %2556 = vmatprep.subr.mxu0 0.0
    %2557 = vmatpush1.msra.mxu0 0.0
    %2558 = vmatprep.subr.mxu0 0.0
    %2559 = vmatpush1.msra.mxu0 0.0
    %2560 = vmatprep.subr.mxu0 0.0
    %2561 = vmatpush1.msra.mxu0 0.0
    %2562 = vmatprep.subr.mxu0 0.0
    %2563 = vmatpush1.msra.mxu0 0.0
    %2564 = vmatprep.subr.mxu0 0.0
    %2565 = vmatpush1.msra.mxu0 0.0
    %2566 = vmatprep.subr.mxu0 0.0
    %2567 = vmatpush1.msra.mxu0 0.0
    %2568 = vmatprep.subr.mxu0 0.0
    %2569 = vmatpush1.msra.mxu0 0.0
    %2570 = vmatprep.subr.mxu0 0.0
    %2571 = vmatpush1.msra.mxu0 0.0
    %2572 = vmatprep.subr.mxu0 0.0
    %2573 = vmatpush1.msra.mxu0 0.0
    %2574 = vmatprep.mubr.f32.mxu0 0.0
    %2575 = vmatmul.mubr.f32.gmra.mrb[0].mxu0 %v2509
    %v2576 = vpop.f32.mrb[0].mxu0
    %v2577 = vadd.f32 0.0, %v2576
    %v2578 = vpop.f32.mrb[0].mxu0
    %v2579 = vadd.f32 0.0, %v2578
    %2580 = vdwg.mxu0
    %2581 = vmatprep.subr.mxu0 %v2266
    %2582 = vmatpush1.msra.mxu0 %v2265
    %2583 = vmatprep.subr.mxu0 %v2270
    %2584 = vmatpush1.msra.mxu0 %v2269
    %2585 = vmatprep.subr.mxu0 %v2274
    %2586 = vmatpush1.msra.mxu0 %v2273
    %2587 = vmatprep.subr.mxu0 %v2278
    %2588 = vmatpush1.msra.mxu0 %v2277
    %2589 = vmatprep.subr.mxu0 %v2282
    %2590 = vmatpush1.msra.mxu0 %v2281
    %2591 = vmatprep.subr.mxu0 %v2286
    %2592 = vmatpush1.msra.mxu0 %v2285
    %2593 = vmatprep.subr.mxu0 %v2290
    %2594 = vmatpush1.msra.mxu0 %v2289
    %2595 = vmatprep.subr.mxu0 %v2294
    %2596 = vmatpush1.msra.mxu0 %v2293
    %2597 = vmatprep.subr.mxu0 %v2298
    %2598 = vmatpush1.msra.mxu0 %v2297
    %2599 = vmatprep.subr.mxu0 %v2302
    %2600 = vmatpush1.msra.mxu0 %v2301
    %2601 = vmatprep.subr.mxu0 %v2306
    %2602 = vmatpush1.msra.mxu0 %v2305
    %2603 = vmatprep.subr.mxu0 %v2310
    %2604 = vmatpush1.msra.mxu0 %v2309
    %2605 = vmatprep.subr.mxu0 %v2314
    %2606 = vmatpush1.msra.mxu0 %v2313
    %2607 = vmatprep.subr.mxu0 %v2318
    %2608 = vmatpush1.msra.mxu0 %v2317
    %2609 = vmatprep.subr.mxu0 %v2322
    %2610 = vmatpush1.msra.mxu0 %v2321
    %2611 = vmatprep.subr.mxu0 %v2326
    %2612 = vmatpush1.msra.mxu0 %v2325
    %2613 = vmatprep.subr.mxu0 0.0
    %2614 = vmatpush1.msra.mxu0 0.0
    %2615 = vmatprep.subr.mxu0 0.0
    %2616 = vmatpush1.msra.mxu0 0.0
    %2617 = vmatprep.subr.mxu0 0.0
    %2618 = vmatpush1.msra.mxu0 0.0
    %2619 = vmatprep.subr.mxu0 0.0
    %2620 = vmatpush1.msra.mxu0 0.0
    %2621 = vmatprep.subr.mxu0 0.0
    %2622 = vmatpush1.msra.mxu0 0.0
    %2623 = vmatprep.subr.mxu0 0.0
    %2624 = vmatpush1.msra.mxu0 0.0
    %2625 = vmatprep.subr.mxu0 0.0
    %2626 = vmatpush1.msra.mxu0 0.0
    %2627 = vmatprep.subr.mxu0 0.0
    %2628 = vmatpush1.msra.mxu0 0.0
    %2629 = vmatprep.subr.mxu0 0.0
    %2630 = vmatpush1.msra.mxu0 0.0
    %2631 = vmatprep.subr.mxu0 0.0
    %2632 = vmatpush1.msra.mxu0 0.0
    %2633 = vmatprep.subr.mxu0 0.0
    %2634 = vmatpush1.msra.mxu0 0.0
    %2635 = vmatprep.subr.mxu0 0.0
    %2636 = vmatpush1.msra.mxu0 0.0
    %2637 = vmatprep.subr.mxu0 0.0
    %2638 = vmatpush1.msra.mxu0 0.0
    %2639 = vmatprep.subr.mxu0 0.0
    %2640 = vmatpush1.msra.mxu0 0.0
    %2641 = vmatprep.subr.mxu0 0.0
    %2642 = vmatpush1.msra.mxu0 0.0
    %2643 = vmatprep.subr.mxu0 0.0
    %2644 = vmatpush1.msra.mxu0 0.0
    %2645 = vmatprep.mubr.f32.mxu0 0.0
    %2646 = vmatmul.mubr.f32.gmra.mrb[0].mxu0 %v2509
    %v2647 = vpop.f32.mrb[0].mxu0
    %v2648 = vadd.f32 0.0, %v2647
    %v2649 = vpop.f32.mrb[0].mxu0
    %v2650 = vadd.f32 0.0, %v2649
    %2651 = vdwg.mxu0
    %v2652 = vadd.f32 %v2505, %v2577
    %v2653 = vadd.f32 %v2506, %v2579
    %v2654 = vadd.f32 %v2507, %v2648
    %v2655 = vadd.f32 %v2508, %v2650
    %v2656 = vxor.u32 %v2652, 2147483648
    %v2657 = vmul.f32 %v2656, 1.442695
    %v2658 = vpow.pop %v2657
    %v2659 = vadd.f32 %v2658, 1.0
    %v2660 = vrcp.pop %v2659
    %v2661 = vmul.f32 1.0, %v2660
    %v2662 = vxor.u32 %v2653, 2147483648
    %v2663 = vmul.f32 %v2662, 1.442695
    %v2664 = vpow.pop %v2663
    %v2665 = vadd.f32 %v2664, 1.0
    %v2666 = vrcp.pop %v2665
    %v2667 = vmul.f32 1.0, %v2666
    %v2668 = vtanh.pop %v2654
    %v2669 = vxor.u32 %v2655, 2147483648
    %v2670 = vmul.f32 %v2669, 1.442695
    %v2671 = vpow.pop %v2670
    %v2672 = vadd.f32 %v2671, 1.0
    %v2673 = vrcp.pop %v2672
    %v2674 = vmul.f32 1.0, %v2673
    %v2675 = vld [vmem:[#allocation4] sm:$0xff]
    %v2676 = vmul.f32 %v2667, %v2675
    %v2677 = vmul.f32 %v2661, %v2668
    %v2678 = vadd.f32 %v2676, %v2677
    %v2679 = vtanh.pop %v2678
    %v2680 = vmul.f32 %v2674, %v2679
    %2681 = vst [vmem:[#allocation4] sm:$0xff] %v2678
    %2682 = vst [vmem:[#allocation3] sm:$0xff] %v2680
    %v2683 = vld [vmem:[#allocation2 + $0x40] sm:$0xff]
    %v2684 = vld [vmem:[#allocation2 + $0x48] sm:$0xff]
    %v2685 = vld [vmem:[#allocation2 + $0x50] sm:$0xff]
    %v2686 = vld [vmem:[#allocation2 + $0x58] sm:$0xff]
    %v2687 = vld [vmem:[#allocation3] sm:$0xff]
    %2688 = vmatprep.subr.mxu0 %v2264
    %2689 = vmatpush1.msra.mxu0 %v2263
    %2690 = vmatprep.subr.mxu0 %v2268
    %2691 = vmatpush1.msra.mxu0 %v2267
    %2692 = vmatprep.subr.mxu0 %v2272
    %2693 = vmatpush1.msra.mxu0 %v2271
    %2694 = vmatprep.subr.mxu0 %v2276
    %2695 = vmatpush1.msra.mxu0 %v2275
    %2696 = vmatprep.subr.mxu0 %v2280
    %2697 = vmatpush1.msra.mxu0 %v2279
    %2698 = vmatprep.subr.mxu0 %v2284
    %2699 = vmatpush1.msra.mxu0 %v2283
    %2700 = vmatprep.subr.mxu0 %v2288
    %2701 = vmatpush1.msra.mxu0 %v2287
    %2702 = vmatprep.subr.mxu0 %v2292
    %2703 = vmatpush1.msra.mxu0 %v2291
    %2704 = vmatprep.subr.mxu0 %v2296
    %2705 = vmatpush1.msra.mxu0 %v2295
    %2706 = vmatprep.subr.mxu0 %v2300
    %2707 = vmatpush1.msra.mxu0 %v2299
    %2708 = vmatprep.subr.mxu0 %v2304
    %2709 = vmatpush1.msra.mxu0 %v2303
    %2710 = vmatprep.subr.mxu0 %v2308
    %2711 = vmatpush1.msra.mxu0 %v2307
    %2712 = vmatprep.subr.mxu0 %v2312
    %2713 = vmatpush1.msra.mxu0 %v2311
    %2714 = vmatprep.subr.mxu0 %v2316
    %2715 = vmatpush1.msra.mxu0 %v2315
    %2716 = vmatprep.subr.mxu0 %v2320
    %2717 = vmatpush1.msra.mxu0 %v2319
    %2718 = vmatprep.subr.mxu0 %v2324
    %2719 = vmatpush1.msra.mxu0 %v2323
    %2720 = vmatprep.subr.mxu0 0.0
    %2721 = vmatpush1.msra.mxu0 0.0
    %2722 = vmatprep.subr.mxu0 0.0
    %2723 = vmatpush1.msra.mxu0 0.0
    %2724 = vmatprep.subr.mxu0 0.0
    %2725 = vmatpush1.msra.mxu0 0.0
    %2726 = vmatprep.subr.mxu0 0.0
    %2727 = vmatpush1.msra.mxu0 0.0
    %2728 = vmatprep.subr.mxu0 0.0
    %2729 = vmatpush1.msra.mxu0 0.0
    %2730 = vmatprep.subr.mxu0 0.0
    %2731 = vmatpush1.msra.mxu0 0.0
    %2732 = vmatprep.subr.mxu0 0.0
    %2733 = vmatpush1.msra.mxu0 0.0
    %2734 = vmatprep.subr.mxu0 0.0
    %2735 = vmatpush1.msra.mxu0 0.0
    %2736 = vmatprep.subr.mxu0 0.0
    %2737 = vmatpush1.msra.mxu0 0.0
    %2738 = vmatprep.subr.mxu0 0.0
    %2739 = vmatpush1.msra.mxu0 0.0
    %2740 = vmatprep.subr.mxu0 0.0
    %2741 = vmatpush1.msra.mxu0 0.0
    %2742 = vmatprep.subr.mxu0 0.0
    %2743 = vmatpush1.msra.mxu0 0.0
    %2744 = vmatprep.subr.mxu0 0.0
    %2745 = vmatpush1.msra.mxu0 0.0
    %2746 = vmatprep.subr.mxu0 0.0
    %2747 = vmatpush1.msra.mxu0 0.0
    %2748 = vmatprep.subr.mxu0 0.0
    %2749 = vmatpush1.msra.mxu0 0.0
    %2750 = vmatprep.subr.mxu0 0.0
    %2751 = vmatpush1.msra.mxu0 0.0
    %2752 = vmatprep.mubr.f32.mxu0 0.0
    %2753 = vmatmul.mubr.f32.gmra.mrb[0].mxu0 %v2687
    %v2754 = vpop.f32.mrb[0].mxu0
    %v2755 = vadd.f32 0.0, %v2754
    %v2756 = vpop.f32.mrb[0].mxu0
    %v2757 = vadd.f32 0.0, %v2756
    %2758 = vdwg.mxu0
    %2759 = vmatprep.subr.mxu0 %v2266
    %2760 = vmatpush1.msra.mxu0 %v2265
    %2761 = vmatprep.subr.mxu0 %v2270
    %2762 = vmatpush1.msra.mxu0 %v2269
    %2763 = vmatprep.subr.mxu0 %v2274
    %2764 = vmatpush1.msra.mxu0 %v2273
    %2765 = vmatprep.subr.mxu0 %v2278
    %2766 = vmatpush1.msra.mxu0 %v2277
    %2767 = vmatprep.subr.mxu0 %v2282
    %2768 = vmatpush1.msra.mxu0 %v2281
    %2769 = vmatprep.subr.mxu0 %v2286
    %2770 = vmatpush1.msra.mxu0 %v2285
    %2771 = vmatprep.subr.mxu0 %v2290
    %2772 = vmatpush1.msra.mxu0 %v2289
    %2773 = vmatprep.subr.mxu0 %v2294
    %2774 = vmatpush1.msra.mxu0 %v2293
    %2775 = vmatprep.subr.mxu0 %v2298
    %2776 = vmatpush1.msra.mxu0 %v2297
    %2777 = vmatprep.subr.mxu0 %v2302
    %2778 = vmatpush1.msra.mxu0 %v2301
    %2779 = vmatprep.subr.mxu0 %v2306
    %2780 = vmatpush1.msra.mxu0 %v2305
    %2781 = vmatprep.subr.mxu0 %v2310
    %2782 = vmatpush1.msra.mxu0 %v2309
    %2783 = vmatprep.subr.mxu0 %v2314
    %2784 = vmatpush1.msra.mxu0 %v2313
    %2785 = vmatprep.subr.mxu0 %v2318
    %2786 = vmatpush1.msra.mxu0 %v2317
    %2787 = vmatprep.subr.mxu0 %v2322
    %2788 = vmatpush1.msra.mxu0 %v2321
    %2789 = vmatprep.subr.mxu0 %v2326
    %2790 = vmatpush1.msra.mxu0 %v2325
    %2791 = vmatprep.subr.mxu0 0.0
    %2792 = vmatpush1.msra.mxu0 0.0
    %2793 = vmatprep.subr.mxu0 0.0
    %2794 = vmatpush1.msra.mxu0 0.0
    %2795 = vmatprep.subr.mxu0 0.0
    %2796 = vmatpush1.msra.mxu0 0.0
    %2797 = vmatprep.subr.mxu0 0.0
    %2798 = vmatpush1.msra.mxu0 0.0
    %2799 = vmatprep.subr.mxu0 0.0
    %2800 = vmatpush1.msra.mxu0 0.0
    %2801 = vmatprep.subr.mxu0 0.0
    %2802 = vmatpush1.msra.mxu0 0.0
    %2803 = vmatprep.subr.mxu0 0.0
    %2804 = vmatpush1.msra.mxu0 0.0
    %2805 = vmatprep.subr.mxu0 0.0
    %2806 = vmatpush1.msra.mxu0 0.0
    %2807 = vmatprep.subr.mxu0 0.0
    %2808 = vmatpush1.msra.mxu0 0.0
    %2809 = vmatprep.subr.mxu0 0.0
    %2810 = vmatpush1.msra.mxu0 0.0
    %2811 = vmatprep.subr.mxu0 0.0
    %2812 = vmatpush1.msra.mxu0 0.0
    %2813 = vmatprep.subr.mxu0 0.0
    %2814 = vmatpush1.msra.mxu0 0.0
    %2815 = vmatprep.subr.mxu0 0.0
    %2816 = vmatpush1.msra.mxu0 0.0
    %2817 = vmatprep.subr.mxu0 0.0
    %2818 = vmatpush1.msra.mxu0 0.0
    %2819 = vmatprep.subr.mxu0 0.0
    %2820 = vmatpush1.msra.mxu0 0.0
    %2821 = vmatprep.subr.mxu0 0.0
    %2822 = vmatpush1.msra.mxu0 0.0
    %2823 = vmatprep.mubr.f32.mxu0 0.0
    %2824 = vmatmul.mubr.f32.gmra.mrb[0].mxu0 %v2687
    %v2825 = vpop.f32.mrb[0].mxu0
    %v2826 = vadd.f32 0.0, %v2825
    %v2827 = vpop.f32.mrb[0].mxu0
    %v2828 = vadd.f32 0.0, %v2827
    %2829 = vdwg.mxu0
    %v2830 = vadd.f32 %v2683, %v2755
    %v2831 = vadd.f32 %v2684, %v2757
    %v2832 = vadd.f32 %v2685, %v2826
    %v2833 = vadd.f32 %v2686, %v2828
    %v2834 = vxor.u32 %v2830, 2147483648
    %v2835 = vmul.f32 %v2834, 1.442695
    %v2836 = vpow.pop %v2835
    %v2837 = vadd.f32 %v2836, 1.0
    %v2838 = vrcp.pop %v2837
    %v2839 = vmul.f32 1.0, %v2838
    %v2840 = vxor.u32 %v2831, 2147483648
    %v2841 = vmul.f32 %v2840, 1.442695
    %v2842 = vpow.pop %v2841
    %v2843 = vadd.f32 %v2842, 1.0
    %v2844 = vrcp.pop %v2843
    %v2845 = vmul.f32 1.0, %v2844
    %v2846 = vtanh.pop %v2832
    %v2847 = vxor.u32 %v2833, 2147483648
    %v2848 = vmul.f32 %v2847, 1.442695
    %v2849 = vpow.pop %v2848
    %v2850 = vadd.f32 %v2849, 1.0
    %v2851 = vrcp.pop %v2850
    %v2852 = vmul.f32 1.0, %v2851
    %v2853 = vld [vmem:[#allocation4] sm:$0xff]
    %v2854 = vmul.f32 %v2845, %v2853
    %v2855 = vmul.f32 %v2839, %v2846
    %v2856 = vadd.f32 %v2854, %v2855
    %v2857 = vtanh.pop %v2856
    %v2858 = vmul.f32 %v2852, %v2857
    %2859 = vst [vmem:[#allocation4] sm:$0xff] %v2856
    %2860 = vst [vmem:[#allocation3] sm:$0xff] %v2858
    %v2861 = vld [vmem:[#allocation2 + $0x60] sm:$0xff]
    %v2862 = vld [vmem:[#allocation2 + $0x68] sm:$0xff]
    %v2863 = vld [vmem:[#allocation2 + $0x70] sm:$0xff]
    %v2864 = vld [vmem:[#allocation2 + $0x78] sm:$0xff]
    %v2865 = vld [vmem:[#allocation3] sm:$0xff]
    %2866 = vmatprep.subr.mxu0 %v2264
    %2867 = vmatpush1.msra.mxu0 %v2263
    %2868 = vmatprep.subr.mxu0 %v2268
    %2869 = vmatpush1.msra.mxu0 %v2267
    %2870 = vmatprep.subr.mxu0 %v2272
    %2871 = vmatpush1.msra.mxu0 %v2271
    %2872 = vmatprep.subr.mxu0 %v2276
    %2873 = vmatpush1.msra.mxu0 %v2275
    %2874 = vmatprep.subr.mxu0 %v2280
    %2875 = vmatpush1.msra.mxu0 %v2279
    %2876 = vmatprep.subr.mxu0 %v2284
    %2877 = vmatpush1.msra.mxu0 %v2283
    %2878 = vmatprep.subr.mxu0 %v2288
    %2879 = vmatpush1.msra.mxu0 %v2287
    %2880 = vmatprep.subr.mxu0 %v2292
    %2881 = vmatpush1.msra.mxu0 %v2291
    %2882 = vmatprep.subr.mxu0 %v2296
    %2883 = vmatpush1.msra.mxu0 %v2295
    %2884 = vmatprep.subr.mxu0 %v2300
    %2885 = vmatpush1.msra.mxu0 %v2299
    %2886 = vmatprep.subr.mxu0 %v2304
    %2887 = vmatpush1.msra.mxu0 %v2303
    %2888 = vmatprep.subr.mxu0 %v2308
    %2889 = vmatpush1.msra.mxu0 %v2307
    %2890 = vmatprep.subr.mxu0 %v2312
    %2891 = vmatpush1.msra.mxu0 %v2311
    %2892 = vmatprep.subr.mxu0 %v2316
    %2893 = vmatpush1.msra.mxu0 %v2315
    %2894 = vmatprep.subr.mxu0 %v2320
    %2895 = vmatpush1.msra.mxu0 %v2319
    %2896 = vmatprep.subr.mxu0 %v2324
    %2897 = vmatpush1.msra.mxu0 %v2323
    %2898 = vmatprep.subr.mxu0 0.0
    %2899 = vmatpush1.msra.mxu0 0.0
    %2900 = vmatprep.subr.mxu0 0.0
    %2901 = vmatpush1.msra.mxu0 0.0
    %2902 = vmatprep.subr.mxu0 0.0
    %2903 = vmatpush1.msra.mxu0 0.0
    %2904 = vmatprep.subr.mxu0 0.0
    %2905 = vmatpush1.msra.mxu0 0.0
    %2906 = vmatprep.subr.mxu0 0.0
    %2907 = vmatpush1.msra.mxu0 0.0
    %2908 = vmatprep.subr.mxu0 0.0
    %2909 = vmatpush1.msra.mxu0 0.0
    %2910 = vmatprep.subr.mxu0 0.0
    %2911 = vmatpush1.msra.mxu0 0.0
    %2912 = vmatprep.subr.mxu0 0.0
    %2913 = vmatpush1.msra.mxu0 0.0
    %2914 = vmatprep.subr.mxu0 0.0
    %2915 = vmatpush1.msra.mxu0 0.0
    %2916 = vmatprep.subr.mxu0 0.0
    %2917 = vmatpush1.msra.mxu0 0.0
    %2918 = vmatprep.subr.mxu0 0.0
    %2919 = vmatpush1.msra.mxu0 0.0
    %2920 = vmatprep.subr.mxu0 0.0
    %2921 = vmatpush1.msra.mxu0 0.0
    %2922 = vmatprep.subr.mxu0 0.0
    %2923 = vmatpush1.msra.mxu0 0.0
    %2924 = vmatprep.subr.mxu0 0.0
    %2925 = vmatpush1.msra.mxu0 0.0
    %2926 = vmatprep.subr.mxu0 0.0
    %2927 = vmatpush1.msra.mxu0 0.0
    %2928 = vmatprep.subr.mxu0 0.0
    %2929 = vmatpush1.msra.mxu0 0.0
    %2930 = vmatprep.mubr.f32.mxu0 0.0
    %2931 = vmatmul.mubr.f32.gmra.mrb[0].mxu0 %v2865
    %v2932 = vpop.f32.mrb[0].mxu0
    %v2933 = vadd.f32 0.0, %v2932
    %v2934 = vpop.f32.mrb[0].mxu0
    %v2935 = vadd.f32 0.0, %v2934
    %2936 = vdwg.mxu0
    %2937 = vmatprep.subr.mxu0 %v2266
    %2938 = vmatpush1.msra.mxu0 %v2265
    %2939 = vmatprep.subr.mxu0 %v2270
    %2940 = vmatpush1.msra.mxu0 %v2269
    %2941 = vmatprep.subr.mxu0 %v2274
    %2942 = vmatpush1.msra.mxu0 %v2273
    %2943 = vmatprep.subr.mxu0 %v2278
    %2944 = vmatpush1.msra.mxu0 %v2277
    %2945 = vmatprep.subr.mxu0 %v2282
    %2946 = vmatpush1.msra.mxu0 %v2281
    %2947 = vmatprep.subr.mxu0 %v2286
    %2948 = vmatpush1.msra.mxu0 %v2285
    %2949 = vmatprep.subr.mxu0 %v2290
    %2950 = vmatpush1.msra.mxu0 %v2289
    %2951 = vmatprep.subr.mxu0 %v2294
    %2952 = vmatpush1.msra.mxu0 %v2293
    %2953 = vmatprep.subr.mxu0 %v2298
    %2954 = vmatpush1.msra.mxu0 %v2297
    %2955 = vmatprep.subr.mxu0 %v2302
    %2956 = vmatpush1.msra.mxu0 %v2301
    %2957 = vmatprep.subr.mxu0 %v2306
    %2958 = vmatpush1.msra.mxu0 %v2305
    %2959 = vmatprep.subr.mxu0 %v2310
    %2960 = vmatpush1.msra.mxu0 %v2309
    %2961 = vmatprep.subr.mxu0 %v2314
    %2962 = vmatpush1.msra.mxu0 %v2313
    %2963 = vmatprep.subr.mxu0 %v2318
    %2964 = vmatpush1.msra.mxu0 %v2317
    %2965 = vmatprep.subr.mxu0 %v2322
    %2966 = vmatpush1.msra.mxu0 %v2321
    %2967 = vmatprep.subr.mxu0 %v2326
    %2968 = vmatpush1.msra.mxu0 %v2325
    %2969 = vmatprep.subr.mxu0 0.0
    %2970 = vmatpush1.msra.mxu0 0.0
    %2971 = vmatprep.subr.mxu0 0.0
    %2972 = vmatpush1.msra.mxu0 0.0
    %2973 = vmatprep.subr.mxu0 0.0
    %2974 = vmatpush1.msra.mxu0 0.0
    %2975 = vmatprep.subr.mxu0 0.0
    %2976 = vmatpush1.msra.mxu0 0.0
    %2977 = vmatprep.subr.mxu0 0.0
    %2978 = vmatpush1.msra.mxu0 0.0
    %2979 = vmatprep.subr.mxu0 0.0
    %2980 = vmatpush1.msra.mxu0 0.0
    %2981 = vmatprep.subr.mxu0 0.0
    %2982 = vmatpush1.msra.mxu0 0.0
    %2983 = vmatprep.subr.mxu0 0.0
    %2984 = vmatpush1.msra.mxu0 0.0
    %2985 = vmatprep.subr.mxu0 0.0
    %2986 = vmatpush1.msra.mxu0 0.0
    %2987 = vmatprep.subr.mxu0 0.0
    %2988 = vmatpush1.msra.mxu0 0.0
    %2989 = vmatprep.subr.mxu0 0.0
    %2990 = vmatpush1.msra.mxu0 0.0
    %2991 = vmatprep.subr.mxu0 0.0
    %2992 = vmatpush1.msra.mxu0 0.0
    %2993 = vmatprep.subr.mxu0 0.0
    %2994 = vmatpush1.msra.mxu0 0.0
    %2995 = vmatprep.subr.mxu0 0.0
    %2996 = vmatpush1.msra.mxu0 0.0
    %2997 = vmatprep.subr.mxu0 0.0
    %2998 = vmatpush1.msra.mxu0 0.0
    %2999 = vmatprep.subr.mxu0 0.0
    %3000 = vmatpush1.msra.mxu0 0.0
    %3001 = vmatprep.mubr.f32.mxu0 0.0
    %3002 = vmatmul.mubr.f32.gmra.mrb[0].mxu0 %v2865
    %v3003 = vpop.f32.mrb[0].mxu0
    %v3004 = vadd.f32 0.0, %v3003
    %v3005 = vpop.f32.mrb[0].mxu0
    %v3006 = vadd.f32 0.0, %v3005
    %3007 = vdwg.mxu0
    %v3008 = vadd.f32 %v2861, %v2933
    %v3009 = vadd.f32 %v2862, %v2935
    %v3010 = vadd.f32 %v2863, %v3004
    %v3011 = vadd.f32 %v2864, %v3006
    %v3012 = vxor.u32 %v3008, 2147483648
    %v3013 = vmul.f32 %v3012, 1.442695
    %v3014 = vpow.pop %v3013
    %v3015 = vadd.f32 %v3014, 1.0
    %v3016 = vrcp.pop %v3015
    %v3017 = vmul.f32 1.0, %v3016
    %v3018 = vxor.u32 %v3009, 2147483648
    %v3019 = vmul.f32 %v3018, 1.442695
    %v3020 = vpow.pop %v3019
    %v3021 = vadd.f32 %v3020, 1.0
    %v3022 = vrcp.pop %v3021
    %v3023 = vmul.f32 1.0, %v3022
    %v3024 = vtanh.pop %v3010
    %v3025 = vxor.u32 %v3011, 2147483648
    %v3026 = vmul.f32 %v3025, 1.442695
    %v3027 = vpow.pop %v3026
    %v3028 = vadd.f32 %v3027, 1.0
    %v3029 = vrcp.pop %v3028
    %v3030 = vmul.f32 1.0, %v3029
    %v3031 = vld [vmem:[#allocation4] sm:$0xff]
    %v3032 = vmul.f32 %v3023, %v3031
    %v3033 = vmul.f32 %v3017, %v3024
    %v3034 = vadd.f32 %v3032, %v3033
    %v3035 = vtanh.pop %v3034
    %v3036 = vmul.f32 %v3030, %v3035
    %3037 = vst [vmem:[#allocation4] sm:$0xff] %v3034
    %3038 = vst [vmem:[#allocation3] sm:$0xff] %v3036
    %v3039 = vld [vmem:[#allocation2 + $0x80] sm:$0xff]
    %v3040 = vld [vmem:[#allocation2 + $0x88] sm:$0xff]
    %v3041 = vld [vmem:[#allocation2 + $0x90] sm:$0xff]
    %v3042 = vld [vmem:[#allocation2 + $0x98] sm:$0xff]
    %v3043 = vld [vmem:[#allocation3] sm:$0xff]
    %3044 = vmatprep.subr.mxu0 %v2264
    %3045 = vmatpush1.msra.mxu0 %v2263
    %3046 = vmatprep.subr.mxu0 %v2268
    %3047 = vmatpush1.msra.mxu0 %v2267
    %3048 = vmatprep.subr.mxu0 %v2272
    %3049 = vmatpush1.msra.mxu0 %v2271
    %3050 = vmatprep.subr.mxu0 %v2276
    %3051 = vmatpush1.msra.mxu0 %v2275
    %3052 = vmatprep.subr.mxu0 %v2280
    %3053 = vmatpush1.msra.mxu0 %v2279
    %3054 = vmatprep.subr.mxu0 %v2284
    %3055 = vmatpush1.msra.mxu0 %v2283
    %3056 = vmatprep.subr.mxu0 %v2288
    %3057 = vmatpush1.msra.mxu0 %v2287
    %3058 = vmatprep.subr.mxu0 %v2292
    %3059 = vmatpush1.msra.mxu0 %v2291
    %3060 = vmatprep.subr.mxu0 %v2296
    %3061 = vmatpush1.msra.mxu0 %v2295
    %3062 = vmatprep.subr.mxu0 %v2300
    %3063 = vmatpush1.msra.mxu0 %v2299
    %3064 = vmatprep.subr.mxu0 %v2304
    %3065 = vmatpush1.msra.mxu0 %v2303
    %3066 = vmatprep.subr.mxu0 %v2308
    %3067 = vmatpush1.msra.mxu0 %v2307
    %3068 = vmatprep.subr.mxu0 %v2312
    %3069 = vmatpush1.msra.mxu0 %v2311
    %3070 = vmatprep.subr.mxu0 %v2316
    %3071 = vmatpush1.msra.mxu0 %v2315
    %3072 = vmatprep.subr.mxu0 %v2320
    %3073 = vmatpush1.msra.mxu0 %v2319
    %3074 = vmatprep.subr.mxu0 %v2324
    %3075 = vmatpush1.msra.mxu0 %v2323
    %3076 = vmatprep.subr.mxu0 0.0
    %3077 = vmatpush1.msra.mxu0 0.0
    %3078 = vmatprep.subr.mxu0 0.0
    %3079 = vmatpush1.msra.mxu0 0.0
    %3080 = vmatprep.subr.mxu0 0.0
    %3081 = vmatpush1.msra.mxu0 0.0
    %3082 = vmatprep.subr.mxu0 0.0
    %3083 = vmatpush1.msra.mxu0 0.0
    %3084 = vmatprep.subr.mxu0 0.0
    %3085 = vmatpush1.msra.mxu0 0.0
    %3086 = vmatprep.subr.mxu0 0.0
    %3087 = vmatpush1.msra.mxu0 0.0
    %3088 = vmatprep.subr.mxu0 0.0
    %3089 = vmatpush1.msra.mxu0 0.0
    %3090 = vmatprep.subr.mxu0 0.0
    %3091 = vmatpush1.msra.mxu0 0.0
    %3092 = vmatprep.subr.mxu0 0.0
    %3093 = vmatpush1.msra.mxu0 0.0
    %3094 = vmatprep.subr.mxu0 0.0
    %3095 = vmatpush1.msra.mxu0 0.0
    %3096 = vmatprep.subr.mxu0 0.0
    %3097 = vmatpush1.msra.mxu0 0.0
    %3098 = vmatprep.subr.mxu0 0.0
    %3099 = vmatpush1.msra.mxu0 0.0
    %3100 = vmatprep.subr.mxu0 0.0
    %3101 = vmatpush1.msra.mxu0 0.0
    %3102 = vmatprep.subr.mxu0 0.0
    %3103 = vmatpush1.msra.mxu0 0.0
    %3104 = vmatprep.subr.mxu0 0.0
    %3105 = vmatpush1.msra.mxu0 0.0
    %3106 = vmatprep.subr.mxu0 0.0
    %3107 = vmatpush1.msra.mxu0 0.0
    %3108 = vmatprep.mubr.f32.mxu0 0.0
    %3109 = vmatmul.mubr.f32.gmra.mrb[0].mxu0 %v3043
    %v3110 = vpop.f32.mrb[0].mxu0
    %v3111 = vadd.f32 0.0, %v3110
    %v3112 = vpop.f32.mrb[0].mxu0
    %v3113 = vadd.f32 0.0, %v3112
    %3114 = vdwg.mxu0
    %3115 = vmatprep.subr.mxu0 %v2266
    %3116 = vmatpush1.msra.mxu0 %v2265
    %3117 = vmatprep.subr.mxu0 %v2270
    %3118 = vmatpush1.msra.mxu0 %v2269
    %3119 = vmatprep.subr.mxu0 %v2274
    %3120 = vmatpush1.msra.mxu0 %v2273
    %3121 = vmatprep.subr.mxu0 %v2278
    %3122 = vmatpush1.msra.mxu0 %v2277
    %3123 = vmatprep.subr.mxu0 %v2282
    %3124 = vmatpush1.msra.mxu0 %v2281
    %3125 = vmatprep.subr.mxu0 %v2286
    %3126 = vmatpush1.msra.mxu0 %v2285
    %3127 = vmatprep.subr.mxu0 %v2290
    %3128 = vmatpush1.msra.mxu0 %v2289
    %3129 = vmatprep.subr.mxu0 %v2294
    %3130 = vmatpush1.msra.mxu0 %v2293
    %3131 = vmatprep.subr.mxu0 %v2298
    %3132 = vmatpush1.msra.mxu0 %v2297
    %3133 = vmatprep.subr.mxu0 %v2302
    %3134 = vmatpush1.msra.mxu0 %v2301
    %3135 = vmatprep.subr.mxu0 %v2306
    %3136 = vmatpush1.msra.mxu0 %v2305
    %3137 = vmatprep.subr.mxu0 %v2310
    %3138 = vmatpush1.msra.mxu0 %v2309
    %3139 = vmatprep.subr.mxu0 %v2314
    %3140 = vmatpush1.msra.mxu0 %v2313
    %3141 = vmatprep.subr.mxu0 %v2318
    %3142 = vmatpush1.msra.mxu0 %v2317
    %3143 = vmatprep.subr.mxu0 %v2322
    %3144 = vmatpush1.msra.mxu0 %v2321
    %3145 = vmatprep.subr.mxu0 %v2326
    %3146 = vmatpush1.msra.mxu0 %v2325
    %3147 = vmatprep.subr.mxu0 0.0
    %3148 = vmatpush1.msra.mxu0 0.0
    %3149 = vmatprep.subr.mxu0 0.0
    %3150 = vmatpush1.msra.mxu0 0.0
    %3151 = vmatprep.subr.mxu0 0.0
    %3152 = vmatpush1.msra.mxu0 0.0
    %3153 = vmatprep.subr.mxu0 0.0
    %3154 = vmatpush1.msra.mxu0 0.0
    %3155 = vmatprep.subr.mxu0 0.0
    %3156 = vmatpush1.msra.mxu0 0.0
    %3157 = vmatprep.subr.mxu0 0.0
    %3158 = vmatpush1.msra.mxu0 0.0
    %3159 = vmatprep.subr.mxu0 0.0
    %3160 = vmatpush1.msra.mxu0 0.0
    %3161 = vmatprep.subr.mxu0 0.0
    %3162 = vmatpush1.msra.mxu0 0.0
    %3163 = vmatprep.subr.mxu0 0.0
    %3164 = vmatpush1.msra.mxu0 0.0
    %3165 = vmatprep.subr.mxu0 0.0
    %3166 = vmatpush1.msra.mxu0 0.0
    %3167 = vmatprep.subr.mxu0 0.0
    %3168 = vmatpush1.msra.mxu0 0.0
    %3169 = vmatprep.subr.mxu0 0.0
    %3170 = vmatpush1.msra.mxu0 0.0
    %3171 = vmatprep.subr.mxu0 0.0
    %3172 = vmatpush1.msra.mxu0 0.0
    %3173 = vmatprep.subr.mxu0 0.0
    %3174 = vmatpush1.msra.mxu0 0.0
    %3175 = vmatprep.subr.mxu0 0.0
    %3176 = vmatpush1.msra.mxu0 0.0
    %3177 = vmatprep.subr.mxu0 0.0
    %3178 = vmatpush1.msra.mxu0 0.0
    %3179 = vmatprep.mubr.f32.mxu0 0.0
    %3180 = vmatmul.mubr.f32.gmra.mrb[0].mxu0 %v3043
    %v3181 = vpop.f32.mrb[0].mxu0
    %v3182 = vadd.f32 0.0, %v3181
    %v3183 = vpop.f32.mrb[0].mxu0
    %v3184 = vadd.f32 0.0, %v3183
    %3185 = vdwg.mxu0
    %v3186 = vadd.f32 %v3039, %v3111
    %v3187 = vadd.f32 %v3040, %v3113
    %v3188 = vadd.f32 %v3041, %v3182
    %v3189 = vadd.f32 %v3042, %v3184
    %v3190 = vxor.u32 %v3186, 2147483648
    %v3191 = vmul.f32 %v3190, 1.442695
    %v3192 = vpow.pop %v3191
    %v3193 = vadd.f32 %v3192, 1.0
    %v3194 = vrcp.pop %v3193
    %v3195 = vmul.f32 1.0, %v3194
    %v3196 = vxor.u32 %v3187, 2147483648
    %v3197 = vmul.f32 %v3196, 1.442695
    %v3198 = vpow.pop %v3197
    %v3199 = vadd.f32 %v3198, 1.0
    %v3200 = vrcp.pop %v3199
    %v3201 = vmul.f32 1.0, %v3200
    %v3202 = vtanh.pop %v3188
    %v3203 = vxor.u32 %v3189, 2147483648
    %v3204 = vmul.f32 %v3203, 1.442695
    %v3205 = vpow.pop %v3204
    %v3206 = vadd.f32 %v3205, 1.0
    %v3207 = vrcp.pop %v3206
    %v3208 = vmul.f32 1.0, %v3207
    %v3209 = vld [vmem:[#allocation4] sm:$0xff]
    %v3210 = vmul.f32 %v3201, %v3209
    %v3211 = vmul.f32 %v3195, %v3202
    %v3212 = vadd.f32 %v3210, %v3211
    %v3213 = vtanh.pop %v3212
    %v3214 = vmul.f32 %v3208, %v3213
    %3215 = vst [vmem:[#allocation4] sm:$0xff] %v3212
    %3216 = vst [vmem:[#allocation3] sm:$0xff] %v3214
    %v3217 = vld [vmem:[#allocation2 + $0xa0] sm:$0xff]
    %v3218 = vld [vmem:[#allocation2 + $0xa8] sm:$0xff]
    %v3219 = vld [vmem:[#allocation2 + $0xb0] sm:$0xff]
    %v3220 = vld [vmem:[#allocation2 + $0xb8] sm:$0xff]
    %v3221 = vld [vmem:[#allocation3] sm:$0xff]
    %3222 = vmatprep.subr.mxu0 %v2264
    %3223 = vmatpush1.msra.mxu0 %v2263
    %3224 = vmatprep.subr.mxu0 %v2268
    %3225 = vmatpush1.msra.mxu0 %v2267
    %3226 = vmatprep.subr.mxu0 %v2272
    %3227 = vmatpush1.msra.mxu0 %v2271
    %3228 = vmatprep.subr.mxu0 %v2276
    %3229 = vmatpush1.msra.mxu0 %v2275
    %3230 = vmatprep.subr.mxu0 %v2280
    %3231 = vmatpush1.msra.mxu0 %v2279
    %3232 = vmatprep.subr.mxu0 %v2284
    %3233 = vmatpush1.msra.mxu0 %v2283
    %3234 = vmatprep.subr.mxu0 %v2288
    %3235 = vmatpush1.msra.mxu0 %v2287
    %3236 = vmatprep.subr.mxu0 %v2292
    %3237 = vmatpush1.msra.mxu0 %v2291
    %3238 = vmatprep.subr.mxu0 %v2296
    %3239 = vmatpush1.msra.mxu0 %v2295
    %3240 = vmatprep.subr.mxu0 %v2300
    %3241 = vmatpush1.msra.mxu0 %v2299
    %3242 = vmatprep.subr.mxu0 %v2304
    %3243 = vmatpush1.msra.mxu0 %v2303
    %3244 = vmatprep.subr.mxu0 %v2308
    %3245 = vmatpush1.msra.mxu0 %v2307
    %3246 = vmatprep.subr.mxu0 %v2312
    %3247 = vmatpush1.msra.mxu0 %v2311
    %3248 = vmatprep.subr.mxu0 %v2316
    %3249 = vmatpush1.msra.mxu0 %v2315
    %3250 = vmatprep.subr.mxu0 %v2320
    %3251 = vmatpush1.msra.mxu0 %v2319
    %3252 = vmatprep.subr.mxu0 %v2324
    %3253 = vmatpush1.msra.mxu0 %v2323
    %3254 = vmatprep.subr.mxu0 0.0
    %3255 = vmatpush1.msra.mxu0 0.0
    %3256 = vmatprep.subr.mxu0 0.0
    %3257 = vmatpush1.msra.mxu0 0.0
    %3258 = vmatprep.subr.mxu0 0.0
    %3259 = vmatpush1.msra.mxu0 0.0
    %3260 = vmatprep.subr.mxu0 0.0
    %3261 = vmatpush1.msra.mxu0 0.0
    %3262 = vmatprep.subr.mxu0 0.0
    %3263 = vmatpush1.msra.mxu0 0.0
    %3264 = vmatprep.subr.mxu0 0.0
    %3265 = vmatpush1.msra.mxu0 0.0
    %3266 = vmatprep.subr.mxu0 0.0
    %3267 = vmatpush1.msra.mxu0 0.0
    %3268 = vmatprep.subr.mxu0 0.0
    %3269 = vmatpush1.msra.mxu0 0.0
    %3270 = vmatprep.subr.mxu0 0.0
    %3271 = vmatpush1.msra.mxu0 0.0
    %3272 = vmatprep.subr.mxu0 0.0
    %3273 = vmatpush1.msra.mxu0 0.0
    %3274 = vmatprep.subr.mxu0 0.0
    %3275 = vmatpush1.msra.mxu0 0.0
    %3276 = vmatprep.subr.mxu0 0.0
    %3277 = vmatpush1.msra.mxu0 0.0
    %3278 = vmatprep.subr.mxu0 0.0
    %3279 = vmatpush1.msra.mxu0 0.0
    %3280 = vmatprep.subr.mxu0 0.0
    %3281 = vmatpush1.msra.mxu0 0.0
    %3282 = vmatprep.subr.mxu0 0.0
    %3283 = vmatpush1.msra.mxu0 0.0
    %3284 = vmatprep.subr.mxu0 0.0
    %3285 = vmatpush1.msra.mxu0 0.0
    %3286 = vmatprep.mubr.f32.mxu0 0.0
    %3287 = vmatmul.mubr.f32.gmra.mrb[0].mxu0 %v3221
    %v3288 = vpop.f32.mrb[0].mxu0
    %v3289 = vadd.f32 0.0, %v3288
    %v3290 = vpop.f32.mrb[0].mxu0
    %v3291 = vadd.f32 0.0, %v3290
    %3292 = vdwg.mxu0
    %3293 = vmatprep.subr.mxu0 %v2266
    %3294 = vmatpush1.msra.mxu0 %v2265
    %3295 = vmatprep.subr.mxu0 %v2270
    %3296 = vmatpush1.msra.mxu0 %v2269
    %3297 = vmatprep.subr.mxu0 %v2274
    %3298 = vmatpush1.msra.mxu0 %v2273
    %3299 = vmatprep.subr.mxu0 %v2278
    %3300 = vmatpush1.msra.mxu0 %v2277
    %3301 = vmatprep.subr.mxu0 %v2282
    %3302 = vmatpush1.msra.mxu0 %v2281
    %3303 = vmatprep.subr.mxu0 %v2286
    %3304 = vmatpush1.msra.mxu0 %v2285
    %3305 = vmatprep.subr.mxu0 %v2290
    %3306 = vmatpush1.msra.mxu0 %v2289
    %3307 = vmatprep.subr.mxu0 %v2294
    %3308 = vmatpush1.msra.mxu0 %v2293
    %3309 = vmatprep.subr.mxu0 %v2298
    %3310 = vmatpush1.msra.mxu0 %v2297
    %3311 = vmatprep.subr.mxu0 %v2302
    %3312 = vmatpush1.msra.mxu0 %v2301
    %3313 = vmatprep.subr.mxu0 %v2306
    %3314 = vmatpush1.msra.mxu0 %v2305
    %3315 = vmatprep.subr.mxu0 %v2310
    %3316 = vmatpush1.msra.mxu0 %v2309
    %3317 = vmatprep.subr.mxu0 %v2314
    %3318 = vmatpush1.msra.mxu0 %v2313
    %3319 = vmatprep.subr.mxu0 %v2318
    %3320 = vmatpush1.msra.mxu0 %v2317
    %3321 = vmatprep.subr.mxu0 %v2322
    %3322 = vmatpush1.msra.mxu0 %v2321
    %3323 = vmatprep.subr.mxu0 %v2326
    %3324 = vmatpush1.msra.mxu0 %v2325
    %3325 = vmatprep.subr.mxu0 0.0
    %3326 = vmatpush1.msra.mxu0 0.0
    %3327 = vmatprep.subr.mxu0 0.0
    %3328 = vmatpush1.msra.mxu0 0.0
    %3329 = vmatprep.subr.mxu0 0.0
    %3330 = vmatpush1.msra.mxu0 0.0
    %3331 = vmatprep.subr.mxu0 0.0
    %3332 = vmatpush1.msra.mxu0 0.0
    %3333 = vmatprep.subr.mxu0 0.0
    %3334 = vmatpush1.msra.mxu0 0.0
    %3335 = vmatprep.subr.mxu0 0.0
    %3336 = vmatpush1.msra.mxu0 0.0
    %3337 = vmatprep.subr.mxu0 0.0
    %3338 = vmatpush1.msra.mxu0 0.0
    %3339 = vmatprep.subr.mxu0 0.0
    %3340 = vmatpush1.msra.mxu0 0.0
    %3341 = vmatprep.subr.mxu0 0.0
    %3342 = vmatpush1.msra.mxu0 0.0
    %3343 = vmatprep.subr.mxu0 0.0
    %3344 = vmatpush1.msra.mxu0 0.0
    %3345 = vmatprep.subr.mxu0 0.0
    %3346 = vmatpush1.msra.mxu0 0.0
    %3347 = vmatprep.subr.mxu0 0.0
    %3348 = vmatpush1.msra.mxu0 0.0
    %3349 = vmatprep.subr.mxu0 0.0
    %3350 = vmatpush1.msra.mxu0 0.0
    %3351 = vmatprep.subr.mxu0 0.0
    %3352 = vmatpush1.msra.mxu0 0.0
    %3353 = vmatprep.subr.mxu0 0.0
    %3354 = vmatpush1.msra.mxu0 0.0
    %3355 = vmatprep.subr.mxu0 0.0
    %3356 = vmatpush1.msra.mxu0 0.0
    %3357 = vmatprep.mubr.f32.mxu0 0.0
    %3358 = vmatmul.mubr.f32.gmra.mrb[0].mxu0 %v3221
    %v3359 = vpop.f32.mrb[0].mxu0
    %v3360 = vadd.f32 0.0, %v3359
    %v3361 = vpop.f32.mrb[0].mxu0
    %v3362 = vadd.f32 0.0, %v3361
    %3363 = vdwg.mxu0
    %v3364 = vadd.f32 %v3217, %v3289
    %v3365 = vadd.f32 %v3218, %v3291
    %v3366 = vadd.f32 %v3219, %v3360
    %v3367 = vadd.f32 %v3220, %v3362
    %v3368 = vxor.u32 %v3364, 2147483648
    %v3369 = vmul.f32 %v3368, 1.442695
    %v3370 = vpow.pop %v3369
    %v3371 = vadd.f32 %v3370, 1.0
    %v3372 = vrcp.pop %v3371
    %v3373 = vmul.f32 1.0, %v3372
    %v3374 = vxor.u32 %v3365, 2147483648
    %v3375 = vmul.f32 %v3374, 1.442695
    %v3376 = vpow.pop %v3375
    %v3377 = vadd.f32 %v3376, 1.0
    %v3378 = vrcp.pop %v3377
    %v3379 = vmul.f32 1.0, %v3378
    %v3380 = vtanh.pop %v3366
    %v3381 = vxor.u32 %v3367, 2147483648
    %v3382 = vmul.f32 %v3381, 1.442695
    %v3383 = vpow.pop %v3382
    %v3384 = vadd.f32 %v3383, 1.0
    %v3385 = vrcp.pop %v3384
    %v3386 = vmul.f32 1.0, %v3385
    %v3387 = vld [vmem:[#allocation4] sm:$0xff]
    %v3388 = vmul.f32 %v3379, %v3387
    %v3389 = vmul.f32 %v3373, %v3380
    %v3390 = vadd.f32 %v3388, %v3389
    %v3391 = vtanh.pop %v3390
    %v3392 = vmul.f32 %v3386, %v3391
    %3393 = vst [vmem:[#allocation4] sm:$0xff] %v3390
    %3394 = vst [vmem:[#allocation3] sm:$0xff] %v3392
    %v3395 = vld [vmem:[#allocation2 + $0xc0] sm:$0xff]
    %v3396 = vld [vmem:[#allocation2 + $0xc8] sm:$0xff]
    %v3397 = vld [vmem:[#allocation2 + $0xd0] sm:$0xff]
    %v3398 = vld [vmem:[#allocation2 + $0xd8] sm:$0xff]
    %v3399 = vld [vmem:[#allocation3] sm:$0xff]
    %3400 = vmatprep.subr.mxu0 %v2264
    %3401 = vmatpush1.msra.mxu0 %v2263
    %3402 = vmatprep.subr.mxu0 %v2268
    %3403 = vmatpush1.msra.mxu0 %v2267
    %3404 = vmatprep.subr.mxu0 %v2272
    %3405 = vmatpush1.msra.mxu0 %v2271
    %3406 = vmatprep.subr.mxu0 %v2276
    %3407 = vmatpush1.msra.mxu0 %v2275
    %3408 = vmatprep.subr.mxu0 %v2280
    %3409 = vmatpush1.msra.mxu0 %v2279
    %3410 = vmatprep.subr.mxu0 %v2284
    %3411 = vmatpush1.msra.mxu0 %v2283
    %3412 = vmatprep.subr.mxu0 %v2288
    %3413 = vmatpush1.msra.mxu0 %v2287
    %3414 = vmatprep.subr.mxu0 %v2292
    %3415 = vmatpush1.msra.mxu0 %v2291
    %3416 = vmatprep.subr.mxu0 %v2296
    %3417 = vmatpush1.msra.mxu0 %v2295
    %3418 = vmatprep.subr.mxu0 %v2300
    %3419 = vmatpush1.msra.mxu0 %v2299
    %3420 = vmatprep.subr.mxu0 %v2304
    %3421 = vmatpush1.msra.mxu0 %v2303
    %3422 = vmatprep.subr.mxu0 %v2308
    %3423 = vmatpush1.msra.mxu0 %v2307
    %3424 = vmatprep.subr.mxu0 %v2312
    %3425 = vmatpush1.msra.mxu0 %v2311
    %3426 = vmatprep.subr.mxu0 %v2316
    %3427 = vmatpush1.msra.mxu0 %v2315
    %3428 = vmatprep.subr.mxu0 %v2320
    %3429 = vmatpush1.msra.mxu0 %v2319
    %3430 = vmatprep.subr.mxu0 %v2324
    %3431 = vmatpush1.msra.mxu0 %v2323
    %3432 = vmatprep.subr.mxu0 0.0
    %3433 = vmatpush1.msra.mxu0 0.0
    %3434 = vmatprep.subr.mxu0 0.0
    %3435 = vmatpush1.msra.mxu0 0.0
    %3436 = vmatprep.subr.mxu0 0.0
    %3437 = vmatpush1.msra.mxu0 0.0
    %3438 = vmatprep.subr.mxu0 0.0
    %3439 = vmatpush1.msra.mxu0 0.0
    %3440 = vmatprep.subr.mxu0 0.0
    %3441 = vmatpush1.msra.mxu0 0.0
    %3442 = vmatprep.subr.mxu0 0.0
    %3443 = vmatpush1.msra.mxu0 0.0
    %3444 = vmatprep.subr.mxu0 0.0
    %3445 = vmatpush1.msra.mxu0 0.0
    %3446 = vmatprep.subr.mxu0 0.0
    %3447 = vmatpush1.msra.mxu0 0.0
    %3448 = vmatprep.subr.mxu0 0.0
    %3449 = vmatpush1.msra.mxu0 0.0
    %3450 = vmatprep.subr.mxu0 0.0
    %3451 = vmatpush1.msra.mxu0 0.0
    %3452 = vmatprep.subr.mxu0 0.0
    %3453 = vmatpush1.msra.mxu0 0.0
    %3454 = vmatprep.subr.mxu0 0.0
    %3455 = vmatpush1.msra.mxu0 0.0
    %3456 = vmatprep.subr.mxu0 0.0
    %3457 = vmatpush1.msra.mxu0 0.0
    %3458 = vmatprep.subr.mxu0 0.0
    %3459 = vmatpush1.msra.mxu0 0.0
    %3460 = vmatprep.subr.mxu0 0.0
    %3461 = vmatpush1.msra.mxu0 0.0
    %3462 = vmatprep.subr.mxu0 0.0
    %3463 = vmatpush1.msra.mxu0 0.0
    %3464 = vmatprep.mubr.f32.mxu0 0.0
    %3465 = vmatmul.mubr.f32.gmra.mrb[0].mxu0 %v3399
    %v3466 = vpop.f32.mrb[0].mxu0
    %v3467 = vadd.f32 0.0, %v3466
    %v3468 = vpop.f32.mrb[0].mxu0
    %v3469 = vadd.f32 0.0, %v3468
    %3470 = vdwg.mxu0
    %3471 = vmatprep.subr.mxu0 %v2266
    %3472 = vmatpush1.msra.mxu0 %v2265
    %3473 = vmatprep.subr.mxu0 %v2270
    %3474 = vmatpush1.msra.mxu0 %v2269
    %3475 = vmatprep.subr.mxu0 %v2274
    %3476 = vmatpush1.msra.mxu0 %v2273
    %3477 = vmatprep.subr.mxu0 %v2278
    %3478 = vmatpush1.msra.mxu0 %v2277
    %3479 = vmatprep.subr.mxu0 %v2282
    %3480 = vmatpush1.msra.mxu0 %v2281
    %3481 = vmatprep.subr.mxu0 %v2286
    %3482 = vmatpush1.msra.mxu0 %v2285
    %3483 = vmatprep.subr.mxu0 %v2290
    %3484 = vmatpush1.msra.mxu0 %v2289
    %3485 = vmatprep.subr.mxu0 %v2294
    %3486 = vmatpush1.msra.mxu0 %v2293
    %3487 = vmatprep.subr.mxu0 %v2298
    %3488 = vmatpush1.msra.mxu0 %v2297
    %3489 = vmatprep.subr.mxu0 %v2302
    %3490 = vmatpush1.msra.mxu0 %v2301
    %3491 = vmatprep.subr.mxu0 %v2306
    %3492 = vmatpush1.msra.mxu0 %v2305
    %3493 = vmatprep.subr.mxu0 %v2310
    %3494 = vmatpush1.msra.mxu0 %v2309
    %3495 = vmatprep.subr.mxu0 %v2314
    %3496 = vmatpush1.msra.mxu0 %v2313
    %3497 = vmatprep.subr.mxu0 %v2318
    %3498 = vmatpush1.msra.mxu0 %v2317
    %3499 = vmatprep.subr.mxu0 %v2322
    %3500 = vmatpush1.msra.mxu0 %v2321
    %3501 = vmatprep.subr.mxu0 %v2326
    %3502 = vmatpush1.msra.mxu0 %v2325
    %3503 = vmatprep.subr.mxu0 0.0
    %3504 = vmatpush1.msra.mxu0 0.0
    %3505 = vmatprep.subr.mxu0 0.0
    %3506 = vmatpush1.msra.mxu0 0.0
    %3507 = vmatprep.subr.mxu0 0.0
    %3508 = vmatpush1.msra.mxu0 0.0
    %3509 = vmatprep.subr.mxu0 0.0
    %3510 = vmatpush1.msra.mxu0 0.0
    %3511 = vmatprep.subr.mxu0 0.0
    %3512 = vmatpush1.msra.mxu0 0.0
    %3513 = vmatprep.subr.mxu0 0.0
    %3514 = vmatpush1.msra.mxu0 0.0
    %3515 = vmatprep.subr.mxu0 0.0
    %3516 = vmatpush1.msra.mxu0 0.0
    %3517 = vmatprep.subr.mxu0 0.0
    %3518 = vmatpush1.msra.mxu0 0.0
    %3519 = vmatprep.subr.mxu0 0.0
    %3520 = vmatpush1.msra.mxu0 0.0
    %3521 = vmatprep.subr.mxu0 0.0
    %3522 = vmatpush1.msra.mxu0 0.0
    %3523 = vmatprep.subr.mxu0 0.0
    %3524 = vmatpush1.msra.mxu0 0.0
    %3525 = vmatprep.subr.mxu0 0.0
    %3526 = vmatpush1.msra.mxu0 0.0
    %3527 = vmatprep.subr.mxu0 0.0
    %3528 = vmatpush1.msra.mxu0 0.0
    %3529 = vmatprep.subr.mxu0 0.0
    %3530 = vmatpush1.msra.mxu0 0.0
    %3531 = vmatprep.subr.mxu0 0.0
    %3532 = vmatpush1.msra.mxu0 0.0
    %3533 = vmatprep.subr.mxu0 0.0
    %3534 = vmatpush1.msra.mxu0 0.0
    %3535 = vmatprep.mubr.f32.mxu0 0.0
    %3536 = vmatmul.mubr.f32.gmra.mrb[0].mxu0 %v3399
    %v3537 = vpop.f32.mrb[0].mxu0
    %v3538 = vadd.f32 0.0, %v3537
    %v3539 = vpop.f32.mrb[0].mxu0
    %v3540 = vadd.f32 0.0, %v3539
    %3541 = vdwg.mxu0
    %v3542 = vadd.f32 %v3395, %v3467
    %v3543 = vadd.f32 %v3396, %v3469
    %v3544 = vadd.f32 %v3397, %v3538
    %v3545 = vadd.f32 %v3398, %v3540
    %v3546 = vxor.u32 %v3542, 2147483648
    %v3547 = vmul.f32 %v3546, 1.442695
    %v3548 = vpow.pop %v3547
    %v3549 = vadd.f32 %v3548, 1.0
    %v3550 = vrcp.pop %v3549
    %v3551 = vmul.f32 1.0, %v3550
    %v3552 = vxor.u32 %v3543, 2147483648
    %v3553 = vmul.f32 %v3552, 1.442695
    %v3554 = vpow.pop %v3553
    %v3555 = vadd.f32 %v3554, 1.0
    %v3556 = vrcp.pop %v3555
    %v3557 = vmul.f32 1.0, %v3556
    %v3558 = vtanh.pop %v3544
    %v3559 = vxor.u32 %v3545, 2147483648
    %v3560 = vmul.f32 %v3559, 1.442695
    %v3561 = vpow.pop %v3560
    %v3562 = vadd.f32 %v3561, 1.0
    %v3563 = vrcp.pop %v3562
    %v3564 = vmul.f32 1.0, %v3563
    %v3565 = vld [vmem:[#allocation4] sm:$0xff]
    %v3566 = vmul.f32 %v3557, %v3565
    %v3567 = vmul.f32 %v3551, %v3558
    %v3568 = vadd.f32 %v3566, %v3567
    %v3569 = vtanh.pop %v3568
    %v3570 = vmul.f32 %v3564, %v3569
    %3571 = vst [vmem:[#allocation4] sm:$0xff] %v3568
    %3572 = vst [vmem:[#allocation3] sm:$0xff] %v3570
    %v3573 = vld [vmem:[#allocation2 + $0xe0] sm:$0xff]
    %v3574 = vld [vmem:[#allocation2 + $0xe8] sm:$0xff]
    %v3575 = vld [vmem:[#allocation2 + $0xf0] sm:$0xff]
    %v3576 = vld [vmem:[#allocation2 + $0xf8] sm:$0xff]
    %v3577 = vld [vmem:[#allocation3] sm:$0xff]
    %3578 = vmatprep.subr.mxu0 %v2264
    %3579 = vmatpush1.msra.mxu0 %v2263
    %3580 = vmatprep.subr.mxu0 %v2268
    %3581 = vmatpush1.msra.mxu0 %v2267
    %3582 = vmatprep.subr.mxu0 %v2272
    %3583 = vmatpush1.msra.mxu0 %v2271
    %3584 = vmatprep.subr.mxu0 %v2276
    %3585 = vmatpush1.msra.mxu0 %v2275
    %3586 = vmatprep.subr.mxu0 %v2280
    %3587 = vmatpush1.msra.mxu0 %v2279
    %3588 = vmatprep.subr.mxu0 %v2284
    %3589 = vmatpush1.msra.mxu0 %v2283
    %3590 = vmatprep.subr.mxu0 %v2288
    %3591 = vmatpush1.msra.mxu0 %v2287
    %3592 = vmatprep.subr.mxu0 %v2292
    %3593 = vmatpush1.msra.mxu0 %v2291
    %3594 = vmatprep.subr.mxu0 %v2296
    %3595 = vmatpush1.msra.mxu0 %v2295
    %3596 = vmatprep.subr.mxu0 %v2300
    %3597 = vmatpush1.msra.mxu0 %v2299
    %3598 = vmatprep.subr.mxu0 %v2304
    %3599 = vmatpush1.msra.mxu0 %v2303
    %3600 = vmatprep.subr.mxu0 %v2308
    %3601 = vmatpush1.msra.mxu0 %v2307
    %3602 = vmatprep.subr.mxu0 %v2312
    %3603 = vmatpush1.msra.mxu0 %v2311
    %3604 = vmatprep.subr.mxu0 %v2316
    %3605 = vmatpush1.msra.mxu0 %v2315
    %3606 = vmatprep.subr.mxu0 %v2320
    %3607 = vmatpush1.msra.mxu0 %v2319
    %3608 = vmatprep.subr.mxu0 %v2324
    %3609 = vmatpush1.msra.mxu0 %v2323
    %3610 = vmatprep.subr.mxu0 0.0
    %3611 = vmatpush1.msra.mxu0 0.0
    %3612 = vmatprep.subr.mxu0 0.0
    %3613 = vmatpush1.msra.mxu0 0.0
    %3614 = vmatprep.subr.mxu0 0.0
    %3615 = vmatpush1.msra.mxu0 0.0
    %3616 = vmatprep.subr.mxu0 0.0
    %3617 = vmatpush1.msra.mxu0 0.0
    %3618 = vmatprep.subr.mxu0 0.0
    %3619 = vmatpush1.msra.mxu0 0.0
    %3620 = vmatprep.subr.mxu0 0.0
    %3621 = vmatpush1.msra.mxu0 0.0
    %3622 = vmatprep.subr.mxu0 0.0
    %3623 = vmatpush1.msra.mxu0 0.0
    %3624 = vmatprep.subr.mxu0 0.0
    %3625 = vmatpush1.msra.mxu0 0.0
    %3626 = vmatprep.subr.mxu0 0.0
    %3627 = vmatpush1.msra.mxu0 0.0
    %3628 = vmatprep.subr.mxu0 0.0
    %3629 = vmatpush1.msra.mxu0 0.0
    %3630 = vmatprep.subr.mxu0 0.0
    %3631 = vmatpush1.msra.mxu0 0.0
    %3632 = vmatprep.subr.mxu0 0.0
    %3633 = vmatpush1.msra.mxu0 0.0
    %3634 = vmatprep.subr.mxu0 0.0
    %3635 = vmatpush1.msra.mxu0 0.0
    %3636 = vmatprep.subr.mxu0 0.0
    %3637 = vmatpush1.msra.mxu0 0.0
    %3638 = vmatprep.subr.mxu0 0.0
    %3639 = vmatpush1.msra.mxu0 0.0
    %3640 = vmatprep.subr.mxu0 0.0
    %3641 = vmatpush1.msra.mxu0 0.0
    %3642 = vmatprep.mubr.f32.mxu0 0.0
    %3643 = vmatmul.mubr.f32.gmra.mrb[0].mxu0 %v3577
    %v3644 = vpop.f32.mrb[0].mxu0
    %v3645 = vadd.f32 0.0, %v3644
    %v3646 = vpop.f32.mrb[0].mxu0
    %v3647 = vadd.f32 0.0, %v3646
    %3648 = vdwg.mxu0
    %3649 = vmatprep.subr.mxu0 %v2266
    %3650 = vmatpush1.msra.mxu0 %v2265
    %3651 = vmatprep.subr.mxu0 %v2270
    %3652 = vmatpush1.msra.mxu0 %v2269
    %3653 = vmatprep.subr.mxu0 %v2274
    %3654 = vmatpush1.msra.mxu0 %v2273
    %3655 = vmatprep.subr.mxu0 %v2278
    %3656 = vmatpush1.msra.mxu0 %v2277
    %3657 = vmatprep.subr.mxu0 %v2282
    %3658 = vmatpush1.msra.mxu0 %v2281
    %3659 = vmatprep.subr.mxu0 %v2286
    %3660 = vmatpush1.msra.mxu0 %v2285
    %3661 = vmatprep.subr.mxu0 %v2290
    %3662 = vmatpush1.msra.mxu0 %v2289
    %3663 = vmatprep.subr.mxu0 %v2294
    %3664 = vmatpush1.msra.mxu0 %v2293
    %3665 = vmatprep.subr.mxu0 %v2298
    %3666 = vmatpush1.msra.mxu0 %v2297
    %3667 = vmatprep.subr.mxu0 %v2302
    %3668 = vmatpush1.msra.mxu0 %v2301
    %3669 = vmatprep.subr.mxu0 %v2306
    %3670 = vmatpush1.msra.mxu0 %v2305
    %3671 = vmatprep.subr.mxu0 %v2310
    %3672 = vmatpush1.msra.mxu0 %v2309
    %3673 = vmatprep.subr.mxu0 %v2314
    %3674 = vmatpush1.msra.mxu0 %v2313
    %3675 = vmatprep.subr.mxu0 %v2318
    %3676 = vmatpush1.msra.mxu0 %v2317
    %3677 = vmatprep.subr.mxu0 %v2322
    %3678 = vmatpush1.msra.mxu0 %v2321
    %3679 = vmatprep.subr.mxu0 %v2326
    %3680 = vmatpush1.msra.mxu0 %v2325
    %3681 = vmatprep.subr.mxu0 0.0
    %3682 = vmatpush1.msra.mxu0 0.0
    %3683 = vmatprep.subr.mxu0 0.0
    %3684 = vmatpush1.msra.mxu0 0.0
    %3685 = vmatprep.subr.mxu0 0.0
    %3686 = vmatpush1.msra.mxu0 0.0
    %3687 = vmatprep.subr.mxu0 0.0
    %3688 = vmatpush1.msra.mxu0 0.0
    %3689 = vmatprep.subr.mxu0 0.0
    %3690 = vmatpush1.msra.mxu0 0.0
    %3691 = vmatprep.subr.mxu0 0.0
    %3692 = vmatpush1.msra.mxu0 0.0
    %3693 = vmatprep.subr.mxu0 0.0
    %3694 = vmatpush1.msra.mxu0 0.0
    %3695 = vmatprep.subr.mxu0 0.0
    %3696 = vmatpush1.msra.mxu0 0.0
    %3697 = vmatprep.subr.mxu0 0.0
    %3698 = vmatpush1.msra.mxu0 0.0
    %3699 = vmatprep.subr.mxu0 0.0
    %3700 = vmatpush1.msra.mxu0 0.0
    %3701 = vmatprep.subr.mxu0 0.0
    %3702 = vmatpush1.msra.mxu0 0.0
    %3703 = vmatprep.subr.mxu0 0.0
    %3704 = vmatpush1.msra.mxu0 0.0
    %3705 = vmatprep.subr.mxu0 0.0
    %3706 = vmatpush1.msra.mxu0 0.0
    %3707 = vmatprep.subr.mxu0 0.0
    %3708 = vmatpush1.msra.mxu0 0.0
    %3709 = vmatprep.subr.mxu0 0.0
    %3710 = vmatpush1.msra.mxu0 0.0
    %3711 = vmatprep.subr.mxu0 0.0
    %3712 = vmatpush1.msra.mxu0 0.0
    %3713 = vmatprep.mubr.f32.mxu0 0.0
    %3714 = vmatmul.mubr.f32.gmra.mrb[0].mxu0 %v3577
    %v3715 = vpop.f32.mrb[0].mxu0
    %v3716 = vadd.f32 0.0, %v3715
    %v3717 = vpop.f32.mrb[0].mxu0
    %v3718 = vadd.f32 0.0, %v3717
    %3719 = vdwg.mxu0
    %v3720 = vadd.f32 %v3573, %v3645
    %v3721 = vadd.f32 %v3574, %v3647
    %v3722 = vadd.f32 %v3575, %v3716
    %v3723 = vadd.f32 %v3576, %v3718
    %v3724 = vxor.u32 %v3720, 2147483648
    %v3725 = vmul.f32 %v3724, 1.442695
    %v3726 = vpow.pop %v3725
    %v3727 = vadd.f32 %v3726, 1.0
    %v3728 = vrcp.pop %v3727
    %v3729 = vmul.f32 1.0, %v3728
    %v3730 = vxor.u32 %v3721, 2147483648
    %v3731 = vmul.f32 %v3730, 1.442695
    %v3732 = vpow.pop %v3731
    %v3733 = vadd.f32 %v3732, 1.0
    %v3734 = vrcp.pop %v3733
    %v3735 = vmul.f32 1.0, %v3734
    %v3736 = vtanh.pop %v3722
    %v3737 = vxor.u32 %v3723, 2147483648
    %v3738 = vmul.f32 %v3737, 1.442695
    %v3739 = vpow.pop %v3738
    %v3740 = vadd.f32 %v3739, 1.0
    %v3741 = vrcp.pop %v3740
    %v3742 = vmul.f32 1.0, %v3741
    %v3743 = vld [vmem:[#allocation4] sm:$0xff]
    %v3744 = vmul.f32 %v3735, %v3743
    %v3745 = vmul.f32 %v3729, %v3736
    %v3746 = vadd.f32 %v3744, %v3745
    %v3747 = vtanh.pop %v3746
    %v3748 = vmul.f32 %v3742, %v3747
    %3749 = vst [vmem:[#allocation4] sm:$0xff] %v3746
    %3750 = vst [vmem:[#allocation3] sm:$0xff] %v3748
    %v3751 = vld [vmem:[#allocation3] sm:$0xff]
    %3752 = vst [vmem:[#allocation5 + $0x8] sm:$0xff] %v3751
    %v3753 = vld [vmem:[#allocation5] sm:$0xff]
    %v3754 = vld [vmem:[#allocation5 + $0x8] sm:$0xff]
    %v3755 = vld [vmem:[#allocation13] sm:$0xff]
    %v3756 = vld [vmem:[#allocation13 + $0x8] sm:$0xff]
    %v3757 = vld [vmem:[#allocation13 + $0x10] sm:$0xff]
    %v3758 = vld [vmem:[#allocation13 + $0x18] sm:$0xff]
    %v3759 = vld [vmem:[#allocation13 + $0x20] sm:$0xff]
    %v3760 = vld [vmem:[#allocation13 + $0x28] sm:$0xff]
    %v3761 = vld [vmem:[#allocation13 + $0x30] sm:$0xff]
    %v3762 = vld [vmem:[#allocation13 + $0x38] sm:$0xff]
    %v3763 = vld [vmem:[#allocation13 + $0x40] sm:$0xff]
    %v3764 = vld [vmem:[#allocation13 + $0x48] sm:$0xff]
    %v3765 = vld [vmem:[#allocation13 + $0x50] sm:$0xff]
    %v3766 = vld [vmem:[#allocation13 + $0x58] sm:$0xff]
    %v3767 = vld [vmem:[#allocation13 + $0x60] sm:$0xff]
    %v3768 = vld [vmem:[#allocation13 + $0x68] sm:$0xff]
    %v3769 = vld [vmem:[#allocation13 + $0x70] sm:$0xff]
    %v3770 = vld [vmem:[#allocation13 + $0x78] sm:$0xff]
    %v3771 = vld [vmem:[%s8] sm:$0x1]
    %v3773 = vlaneseq
    %v3774 = vshrl.u32 %v3773, 7
    %v3775 = vsub.s32 0, %v3774
    %v3776 = vrot.slane %v3771, %v3775
    %3778 = vmatprep.subr.mxu0 0.0
    %3779 = vmatpush1.msra.mxu0 %v3755
    %3780 = vmatprep.subr.mxu0 0.0
    %3781 = vmatpush1.msra.mxu0 %v3756
    %3782 = vmatprep.subr.mxu0 0.0
    %3783 = vmatpush1.msra.mxu0 %v3757
    %3784 = vmatprep.subr.mxu0 0.0
    %3785 = vmatpush1.msra.mxu0 %v3758
    %3786 = vmatprep.subr.mxu0 0.0
    %3787 = vmatpush1.msra.mxu0 %v3759
    %3788 = vmatprep.subr.mxu0 0.0
    %3789 = vmatpush1.msra.mxu0 %v3760
    %3790 = vmatprep.subr.mxu0 0.0
    %3791 = vmatpush1.msra.mxu0 %v3761
    %3792 = vmatprep.subr.mxu0 0.0
    %3793 = vmatpush1.msra.mxu0 %v3762
    %3794 = vmatprep.subr.mxu0 0.0
    %3795 = vmatpush1.msra.mxu0 %v3763
    %3796 = vmatprep.subr.mxu0 0.0
    %3797 = vmatpush1.msra.mxu0 %v3764
    %3798 = vmatprep.subr.mxu0 0.0
    %3799 = vmatpush1.msra.mxu0 %v3765
    %3800 = vmatprep.subr.mxu0 0.0
    %3801 = vmatpush1.msra.mxu0 %v3766
    %3802 = vmatprep.subr.mxu0 0.0
    %3803 = vmatpush1.msra.mxu0 %v3767
    %3804 = vmatprep.subr.mxu0 0.0
    %3805 = vmatpush1.msra.mxu0 %v3768
    %3806 = vmatprep.subr.mxu0 0.0
    %3807 = vmatpush1.msra.mxu0 %v3769
    %3808 = vmatprep.subr.mxu0 0.0
    %3809 = vmatpush1.msra.mxu0 %v3770
    %3810 = vmatprep.subr.mxu0 0.0
    %3811 = vmatpush1.msra.mxu0 0.0
    %3812 = vmatprep.subr.mxu0 0.0
    %3813 = vmatpush1.msra.mxu0 0.0
    %3814 = vmatprep.subr.mxu0 0.0
    %3815 = vmatpush1.msra.mxu0 0.0
    %3816 = vmatprep.subr.mxu0 0.0
    %3817 = vmatpush1.msra.mxu0 0.0
    %3818 = vmatprep.subr.mxu0 0.0
    %3819 = vmatpush1.msra.mxu0 0.0
    %3820 = vmatprep.subr.mxu0 0.0
    %3821 = vmatpush1.msra.mxu0 0.0
    %3822 = vmatprep.subr.mxu0 0.0
    %3823 = vmatpush1.msra.mxu0 0.0
    %3824 = vmatprep.subr.mxu0 0.0
    %3825 = vmatpush1.msra.mxu0 0.0
    %3826 = vmatprep.subr.mxu0 0.0
    %3827 = vmatpush1.msra.mxu0 0.0
    %3828 = vmatprep.subr.mxu0 0.0
    %3829 = vmatpush1.msra.mxu0 0.0
    %3830 = vmatprep.subr.mxu0 0.0
    %3831 = vmatpush1.msra.mxu0 0.0
    %3832 = vmatprep.subr.mxu0 0.0
    %3833 = vmatpush1.msra.mxu0 0.0
    %3834 = vmatprep.subr.mxu0 0.0
    %3835 = vmatpush1.msra.mxu0 0.0
    %3836 = vmatprep.subr.mxu0 0.0
    %3837 = vmatpush1.msra.mxu0 0.0
    %3838 = vmatprep.subr.mxu0 0.0
    %3839 = vmatpush1.msra.mxu0 0.0
    %3840 = vmatprep.subr.mxu0 0.0
    %3841 = vmatpush1.msra.mxu0 0.0
    %3842 = vmatprep.mubr.f32.mxu0 0.0
    %3843 = vmatmul.mubr.f32.gmra.mrb[0].mxu0 %v3753
    %v3844 = vpop.f32.mrb[0].mxu0
    %v3845 = vadd.f32 %v3776, %v3844
    %v3846 = vpop.f32.mrb[0].mxu0
    %3847 = vmatprep.mubr.f32.mxu0 0.0
    %3848 = vmatmul.mubr.f32.gmra.mrb[0].mxu0 %v3754
    %v3849 = vpop.f32.mrb[0].mxu0
    %v3850 = vadd.f32 %v3776, %v3849
    %v3851 = vpop.f32.mrb[0].mxu0
    %3852 = vdwg.mxu0
    %3853 = vst [vmem:[#allocation15] sm:$0xff] %v3845
    %3854 = vst [vmem:[#allocation15 + $0x8] sm:$0xff] %v3850
    // Predicated region
    $region54: #{tpu_custom_call.1} parent=1 // pred_check
      _
    $region55: #{tpu_custom_call.1} parent=1 // pred_check_branch
      %3856 = sbr.rel (0) target = $region57
    $region56: #{tpu_custom_call.1} parent=1 // pred_region
      %s3858 = ssub.s32 256, 256
      %3859 = vsyncadd [#allocation9], %s3858
      %s3860 = sshll.u32 [#allocation15], 4
      %s3861 = int_to_ptr.vmem [resolvable:$true] %s3860
      %3866 = dma.vmem_to_hbm [thread:$0]  %s3861, 256, %s9, [#allocation9], 128, 128, 8
    $region57: #{tpu_custom_call.1} parent=1 // pred_fallthru
      _
    // Predicated region
    $region58: #{tpu_custom_call.1} parent=1 // pred_check
      _
    $region59: #{tpu_custom_call.1} parent=1 // pred_check_branch
      %3868 = sbr.rel (0) target = $region61
    $region60: #{tpu_custom_call.1} parent=1 // pred_region
      %3869 = dma.done [#allocation9], 256
    $region61: #{tpu_custom_call.1} parent=1 // pred_fallthru
      _
    %3870 = vsyncpa [#allocation8], 1
    %3871 = vsyncpa [#allocation11], 1
    %3872 = vsyncpa [#allocation14], 1
    %3873 = vsyncpa [#allocation9], 1

</llo_original>
